<compile_context>
chip_gen: v7x
topology: tpu7x:2x2x1
jax: 0.10.0
libtpu: 0.0.40
codegen_flags: <defaults>
</compile_context>

<pallas_src>
import functools

import jax
import jax.numpy as jnp
from jax import lax
from jax.experimental import pallas as pl
from jax.experimental.pallas import tpu as pltpu

BN_EPS = 1e-5
LEAKY_SLOPE = 0.1


def _round_up(v, m):
    return (v + m - 1) // m * m


# -----------------------------------------------------------------------------
# Pass 1: in-kernel im2col conv (MXU) + per-channel sum / sum-of-squares,
#         finalized into BN (scale, shift) at the last image.
# grid = (OC tiles [parallel], N images [arbitrary / stats reduction])
# -----------------------------------------------------------------------------
def conv_stats_kernel(x_ref, w_ref, gamma_ref, beta_ref,
                      y_ref, scale_ref, shift_ref,
                      sum_ref, sumsq_ref,
                      *, kh, kw, stride, oh, ow, cin, inv_m):
    b = pl.program_id(1)  # image index (reduction axis for the BN statistics)

    @pl.when(b == 0)
    def _init():
        sum_ref[...] = jnp.zeros_like(sum_ref)
        sumsq_ref[...] = jnp.zeros_like(sumsq_ref)

    x = x_ref[0]                      # (HP, WP, Cin) bf16 — whole padded image
    tn = w_ref.shape[-1]
    hs = (oh - 1) * stride + 1
    ws = (ow - 1) * stride + 1

    # In-kernel im2col: KH*KW shifted sub-matmuls accumulated in f32 on the MXU.
    acc = jnp.zeros((oh * ow, tn), jnp.float32)
    for ki in range(kh):
        for kj in range(kw):
            patch = x[ki:ki + hs:stride, kj:kj + ws:stride, :]   # (OH, OW, Cin)
            patch = patch.reshape(oh * ow, cin)
            acc = acc + jnp.dot(patch, w_ref[ki * kw + kj],
                                preferred_element_type=jnp.float32)

    # bf16 writeback (statistics below use the f32 accumulator, so BN is exact).
    y_ref[0] = acc.astype(y_ref.dtype)

    # Per-channel statistics, single fused pass over the f32 accumulator.
    sum_ref[...] += jnp.sum(acc, axis=0, keepdims=True)
    sumsq_ref[...] += jnp.sum(acc * acc, axis=0, keepdims=True)

    @pl.when(b == pl.num_programs(1) - 1)
    def _finalize():
        mean = sum_ref[...] * inv_m
        # Single-pass variance; clamp >= 0 against f32 cancellation.
        # TODO(synk): Welford-style combine for very large N*OH*OW.
        var = jnp.maximum(sumsq_ref[...] * inv_m - mean * mean, 0.0)
        s = gamma_ref[...] * lax.rsqrt(var + BN_EPS)
        scale_ref[...] = s
        shift_ref[...] = beta_ref[...] - mean * s


# -----------------------------------------------------------------------------
# Pass 2: normalize + affine + LeakyReLU, written directly channel-first
#         (NHWC->NCHW transpose folded into the kernel). Fully parallel grid.
# -----------------------------------------------------------------------------
def bn_act_nchw_kernel(y_ref, scale_ref, shift_ref, out_ref):
    z = y_ref[0].astype(jnp.float32) * scale_ref[...] + shift_ref[...]
    z = jnp.where(z >= 0, z, LEAKY_SLOPE * z)
    out_ref[0] = z.T                  # (OH*OW, TN) -> (TN, OH*OW)


@functools.partial(jax.jit, static_argnames=("stride", "padding"))
def cnn_block_forward(x, weight, gamma, beta, *, stride, padding):
    """x: (N, Cin, H, W) NCHW f32, weight: (OC, Cin, KH, KW). Returns NCHW f32."""
    n, cin, h, w = x.shape
    oc, _, kh, kw = weight.shape
    hp, wp = h + 2 * padding, w + 2 * padding
    oh = (hp - kh) // stride + 1
    ow = (wp - kw) // stride + 1
    m = n * oh * ow

    ocp = _round_up(oc, 128)
    tn = 256 if ocp % 256 == 0 else 128   # 256 fills the v6e/v7x MXU; else 128 (v5e-friendly)
    noc = ocp // tn

    # Single fused XLA op: NCHW->NHWC, spatial zero-pad, cast to bf16 (~1x input bytes).
    xpad = jnp.pad(x.transpose(0, 2, 3, 1).astype(jnp.bfloat16),
                   ((0, 0), (padding, padding), (padding, padding), (0, 0)))

    # weight (OC, Cin, KH, KW) -> (KH*KW, Cin, OCp); kernel indexes w_ref[ki*KW + kj].
    w3 = weight.astype(jnp.bfloat16).transpose(2, 3, 1, 0).reshape(kh * kw, cin, oc)
    w3 = jnp.pad(w3, ((0, 0), (0, 0), (0, ocp - oc)))
    gamma2 = jnp.pad(gamma.astype(jnp.float32).reshape(1, oc), ((0, 0), (0, ocp - oc)))
    beta2 = jnp.pad(beta.astype(jnp.float32).reshape(1, oc), ((0, 0), (0, ocp - oc)))

    # ----------------- pass 1: conv (in-kernel im2col) + BN statistics -----------------
    flops1 = 2 * m * kh * kw * cin * ocp + 4 * m * ocp
    bytes1 = xpad.size * 2 * noc + w3.size * 2 + m * ocp * 2 + 4 * ocp * 4
    y, scale, shift = pl.pallas_call(
        functools.partial(conv_stats_kernel, kh=kh, kw=kw, stride=stride,
                          oh=oh, ow=ow, cin=cin, inv_m=1.0 / m),
        out_shape=(
            jax.ShapeDtypeStruct((n, oh * ow, ocp), jnp.bfloat16),  # conv result
            jax.ShapeDtypeStruct((1, ocp), jnp.float32),            # gamma * inv_std
            jax.ShapeDtypeStruct((1, ocp), jnp.float32),            # beta - mean*scale
        ),
        grid=(noc, n),
        in_specs=[
            pl.BlockSpec((1, hp, wp, cin), lambda j, b: (b, 0, 0, 0)),
            pl.BlockSpec((kh * kw, cin, tn), lambda j, b: (0, 0, j)),
            pl.BlockSpec((1, tn), lambda j, b: (0, j)),
            pl.BlockSpec((1, tn), lambda j, b: (0, j)),
        ],
        out_specs=(
            pl.BlockSpec((1, oh * ow, tn), lambda j, b: (b, 0, j)),
            pl.BlockSpec((1, tn), lambda j, b: (0, j)),
            pl.BlockSpec((1, tn), lambda j, b: (0, j)),
        ),
        scratch_shapes=[
            pltpu.VMEM((1, tn), jnp.float32),   # per-channel sum
            pltpu.VMEM((1, tn), jnp.float32),   # per-channel sum of squares
        ],
        compiler_params=pltpu.CompilerParams(
            dimension_semantics=("parallel", "arbitrary"),
            vmem_limit_bytes=32 << 20),
        cost_estimate=pl.CostEstimate(
            flops=flops1, transcendentals=ocp, bytes_accessed=bytes1),
    )(xpad, w3, gamma2, beta2)

    # ----------------- pass 2: normalize + LeakyReLU + NCHW layout ---------------------
    flops2 = 4 * m * ocp
    bytes2 = m * ocp * (2 + 4) + 2 * ocp * 4
    out_cf = pl.pallas_call(
        bn_act_nchw_kernel,
        out_shape=jax.ShapeDtypeStruct((n, ocp, oh * ow), jnp.float32),
        grid=(n, noc),
        in_specs=[
            pl.BlockSpec((1, oh * ow, tn), lambda b, j: (b, 0, j)),
            pl.BlockSpec((1, tn), lambda b, j: (0, j)),
            pl.BlockSpec((1, tn), lambda b, j: (0, j)),
        ],
        out_specs=pl.BlockSpec((1, tn, oh * ow), lambda b, j: (b, j, 0)),
        compiler_params=pltpu.CompilerParams(
            dimension_semantics=("parallel", "parallel"),
            vmem_limit_bytes=32 << 20),
        cost_estimate=pl.CostEstimate(
            flops=flops2, transcendentals=0, bytes_accessed=bytes2),
    )(y, scale, shift)

    # Strip channel padding; (N, OC, OH*OW) -> (N, OC, OH, OW) is a free reshape.
    return out_cf[:, :oc, :].reshape(n, oc, oh, ow)


if __name__ == "__main__":
    # Small shapes consistent with a YOLO CNNBlock: 3x3 conv, stride 1, pad 1.
    N, CIN, H, W = 2, 4, 16, 16
    OC, KH, KW = 8, 3, 3
    STRIDE, PAD = 1, 1

    key = jax.random.PRNGKey(0)
    kx, kw_, kg, kb = jax.random.split(key, 4)
    x = jax.random.normal(kx, (N, CIN, H, W), dtype=jnp.float32)
    weight = jax.random.normal(kw_, (OC, CIN, KH, KW), dtype=jnp.float32) * 0.1
    gamma = 1.0 + 0.1 * jax.random.normal(kg, (OC,), dtype=jnp.float32)
    beta = 0.05 * jax.random.normal(kb, (OC,), dtype=jnp.float32)

    out = cnn_block_forward(x, weight, gamma, beta, stride=STRIDE, padding=PAD)
    out = jax.block_until_ready(out)

    # Reference: bf16-operand conv with f32 accumulation (same MXU path), f32 BN
    # statistics, and the conv intermediate rounded to bf16 to mirror the kernel's
    # bf16 y writeback.
    ref_conv = lax.conv_general_dilated(
        x.astype(jnp.bfloat16), weight.astype(jnp.bfloat16),
        window_strides=(STRIDE, STRIDE),
        padding=((PAD, PAD), (PAD, PAD)),
        dimension_numbers=("NCHW", "OIHW", "NCHW"),
        preferred_element_type=jnp.float32)
    mu = jnp.mean(ref_conv, axis=(0, 2, 3), keepdims=True)
    var = jnp.mean((ref_conv - mu) ** 2, axis=(0, 2, 3), keepdims=True)
    yq = ref_conv.astype(jnp.bfloat16).astype(jnp.float32)
    ref = (yq - mu) * lax.rsqrt(var + BN_EPS)
    ref = ref * gamma.reshape(1, OC, 1, 1) + beta.reshape(1, OC, 1, 1)
    ref = jnp.where(ref >= 0, ref, LEAKY_SLOPE * ref)

    assert out.shape == (N, OC, H, W)
    err = jnp.abs(out - ref)
    max_err = float(jnp.max(err))
    mean_err = float(jnp.mean(err))
    # max tolerance covers a single bf16-ulp rounding difference in the stored conv
    # intermediate after normalization; mean tolerance catches structural bugs.
    assert max_err < 5e-2, f"max abs err {max_err}"
    assert mean_err < 2e-3, f"mean abs err {mean_err}"

    print("KERNEL_OK")
</pallas_src>

<mosaic_0001>
module attributes {stable_mosaic.version = 11 : i64} {
  func.func @bn_act_nchw_kernel(%arg0: i32, %arg1: i32, %arg2: memref<1x256x128xbf16, #tpu.memory_space<vmem>>, %arg3: memref<1x128xf32, #tpu.memory_space<vmem>>, %arg4: memref<1x128xf32, #tpu.memory_space<vmem>>, %arg5: memref<1x128x256xf32, #tpu.memory_space<vmem>>) attributes {dimension_semantics = [#tpu.dimension_semantics<parallel>, #tpu.dimension_semantics<parallel>], iteration_bounds = array<i64: 2, 1>, scalar_prefetch = 0 : i64, scratch_operands = 0 : i64, tpu.core_type = #tpu.core_type<tc>, window_params = [{transform_indices = @transform_0, window_bounds = array<i64: 1, 256, 128>}, {transform_indices = @transform_1, window_bounds = array<i64: 1, 128>}, {transform_indices = @transform_2, window_bounds = array<i64: 1, 128>}, {transform_indices = @transform_3, window_bounds = array<i64: 1, 128, 256>}]} {
    %c0 = arith.constant 0 : index
    %c0_0 = arith.constant 0 : index
    %c0_1 = arith.constant 0 : index
    %0 = vector.load %arg2[%c0, %c0_0, %c0_1] : memref<1x256x128xbf16, #tpu.memory_space<vmem>>, vector<1x256x128xbf16>
    %1 = vector.shape_cast %0 : vector<1x256x128xbf16> to vector<256x128xbf16>
    %2 = arith.extf %1 : vector<256x128xbf16> to vector<256x128xf32>
    %c0_2 = arith.constant 0 : index
    %c0_3 = arith.constant 0 : index
    %3 = vector.load %arg3[%c0_2, %c0_3] : memref<1x128xf32, #tpu.memory_space<vmem>>, vector<1x128xf32>
    %4 = vector.broadcast %3 : vector<1x128xf32> to vector<256x128xf32>
    %5 = arith.mulf %2, %4 : vector<256x128xf32>
    %c0_4 = arith.constant 0 : index
    %c0_5 = arith.constant 0 : index
    %6 = vector.load %arg4[%c0_4, %c0_5] : memref<1x128xf32, #tpu.memory_space<vmem>>, vector<1x128xf32>
    %7 = vector.broadcast %6 : vector<1x128xf32> to vector<256x128xf32>
    %8 = arith.addf %5, %7 : vector<256x128xf32>
    %cst = arith.constant 0.000000e+00 : f32
    %9 = vector.broadcast %cst : f32 to vector<256x128xf32>
    %10 = arith.cmpf oge, %8, %9 : vector<256x128xf32>
    %cst_6 = arith.constant 1.000000e-01 : f32
    %11 = vector.broadcast %cst_6 : f32 to vector<256x128xf32>
    %12 = arith.mulf %11, %8 : vector<256x128xf32>
    %13 = arith.select %10, %8, %12 : vector<256x128xi1>, vector<256x128xf32>
    %14 = tpu.transpose %13, [1, 0] : vector<256x128xf32> -> vector<128x256xf32>
    %c0_7 = arith.constant 0 : index
    %c0_8 = arith.constant 0 : index
    %c0_9 = arith.constant 0 : index
    %15 = vector.load %arg5[%c0_7, %c0_8, %c0_9] : memref<1x128x256xf32, #tpu.memory_space<vmem>>, vector<1x128x256xf32>
    %16 = vector.shape_cast %15 : vector<1x128x256xf32> to vector<128x256xf32>
    %17 = vector.shape_cast %14 : vector<128x256xf32> to vector<1x128x256xf32>
    tpu.vector_store %arg5[%c0_7, %c0_8, %c0_9], %17 {strides = array<i32>} : memref<1x128x256xf32, #tpu.memory_space<vmem>>, vector<1x128x256xf32>,
    return
  }
  func.func @transform_0(%arg0: i32, %arg1: i32) -> (i32, i32, i32) {
    %c0_i32 = arith.constant 0 : i32
    %c0_i32_0 = arith.constant 0 : i32
    return %arg0, %c0_i32, %arg1 : i32, i32, i32
  }
  func.func @transform_1(%arg0: i32, %arg1: i32) -> (i32, i32) {
    %c0_i32 = arith.constant 0 : i32
    %c0_i32_0 = arith.constant 0 : i32
    return %c0_i32, %arg1 : i32, i32
  }
  func.func @transform_2(%arg0: i32, %arg1: i32) -> (i32, i32) {
    %c0_i32 = arith.constant 0 : i32
    %c0_i32_0 = arith.constant 0 : i32
    return %c0_i32, %arg1 : i32, i32
  }
  func.func @transform_3(%arg0: i32, %arg1: i32) -> (i32, i32, i32) {
    %c0_i32 = arith.constant 0 : i32
    %c0_i32_0 = arith.constant 0 : i32
    return %arg0, %arg1, %c0_i32 : i32, i32, i32
  }
}

module attributes {stable_mosaic.version = 11 : i64} {
  func.func @conv_stats_kernel(%arg0: i32, %arg1: i32, %arg2: memref<1x18x18x4xbf16, #tpu.memory_space<vmem>>, %arg3: memref<9x4x128xbf16, #tpu.memory_space<vmem>>, %arg4: memref<1x128xf32, #tpu.memory_space<vmem>>, %arg5: memref<1x128xf32, #tpu.memory_space<vmem>>, %arg6: memref<1x256x128xbf16, #tpu.memory_space<vmem>>, %arg7: memref<1x128xf32, #tpu.memory_space<vmem>>, %arg8: memref<1x128xf32, #tpu.memory_space<vmem>>, %arg9: memref<1x128xf32, #tpu.memory_space<vmem>>, %arg10: memref<1x128xf32, #tpu.memory_space<vmem>>) attributes {dimension_semantics = [#tpu.dimension_semantics<parallel>, #tpu.dimension_semantics<arbitrary>], iteration_bounds = array<i64: 1, 2>, scalar_prefetch = 0 : i64, scratch_operands = 2 : i64, tpu.core_type = #tpu.core_type<tc>, window_params = [{transform_indices = @transform_0, window_bounds = array<i64: 1, 18, 18, 4>}, {transform_indices = @transform_1, window_bounds = array<i64: 9, 4, 128>}, {transform_indices = @transform_2, window_bounds = array<i64: 1, 128>}, {transform_indices = @transform_3, window_bounds = array<i64: 1, 128>}, {transform_indices = @transform_4, window_bounds = array<i64: 1, 256, 128>}, {transform_indices = @transform_5, window_bounds = array<i64: 1, 128>}, {transform_indices = @transform_6, window_bounds = array<i64: 1, 128>}]} {
    %c0_i32 = arith.constant 0 : i32
    %0 = arith.cmpi eq, %arg1, %c0_i32 : i32
    %1 = arith.extui %0 : i1 to i32
    %c0_i32_0 = arith.constant 0 : i32
    %2 = arith.cmpi ne, %1, %c0_i32_0 : i32
    scf.if %2 {
      %cst_46 = arith.constant 0.000000e+00 : f32
      %78 = vector.broadcast %cst_46 : f32 to vector<1x128xf32>
      %c0_47 = arith.constant 0 : index
      %c0_48 = arith.constant 0 : index
      %79 = vector.load %arg9[%c0_47, %c0_48] : memref<1x128xf32, #tpu.memory_space<vmem>>, vector<1x128xf32>
      tpu.vector_store %arg9[%c0_47, %c0_48], %78 {strides = array<i32>} : memref<1x128xf32, #tpu.memory_space<vmem>>, vector<1x128xf32>,
      %cst_49 = arith.constant 0.000000e+00 : f32
      %80 = vector.broadcast %cst_49 : f32 to vector<1x128xf32>
      %c0_50 = arith.constant 0 : index
      %c0_51 = arith.constant 0 : index
      %81 = vector.load %arg10[%c0_50, %c0_51] : memref<1x128xf32, #tpu.memory_space<vmem>>, vector<1x128xf32>
      tpu.vector_store %arg10[%c0_50, %c0_51], %80 {strides = array<i32>} : memref<1x128xf32, #tpu.memory_space<vmem>>, vector<1x128xf32>,
    } else {
    }
    %c0 = arith.constant 0 : index
    %c0_1 = arith.constant 0 : index
    %c0_2 = arith.constant 0 : index
    %c0_3 = arith.constant 0 : index
    %3 = vector.load %arg2[%c0, %c0_1, %c0_2, %c0_3] : memref<1x18x18x4xbf16, #tpu.memory_space<vmem>>, vector<1x18x18x4xbf16>
    %4 = vector.shape_cast %3 : vector<1x18x18x4xbf16> to vector<18x18x4xbf16>
    %cst = arith.constant 0.000000e+00 : f32
    %5 = vector.broadcast %cst : f32 to vector<256x128xf32>
    %6 = vector.extract_strided_slice %4 {offsets = [0, 0, 0], sizes = [16, 16, 4], strides = [1, 1, 1]} : vector<18x18x4xbf16> to vector<16x16x4xbf16>
    %7 = vector.shape_cast %6 : vector<16x16x4xbf16> to vector<256x4xbf16>
    %c0_4 = arith.constant 0 : index
    %c0_5 = arith.constant 0 : index
    %c0_6 = arith.constant 0 : index
    %8 = vector.load %arg3[%c0_4, %c0_5, %c0_6] : memref<9x4x128xbf16, #tpu.memory_space<vmem>>, vector<1x4x128xbf16>
    %9 = vector.shape_cast %8 : vector<1x4x128xbf16> to vector<4x128xbf16>
    %cst_7 = arith.constant dense<0.000000e+00> : vector<256x128xf32>
    %10 = tpu.matmul %7, %9, %cst_7 {dimension_numbers = #tpu.dot_dimension_numbers<[1], [0], [0], [1], [0, 0, 1, 1], [], []>} : vector<256x4xbf16>, vector<4x128xbf16>, vector<256x128xf32> -> vector<256x128xf32>
    %11 = arith.addf %5, %10 : vector<256x128xf32>
    %12 = vector.extract_strided_slice %4 {offsets = [0, 1, 0], sizes = [16, 16, 4], strides = [1, 1, 1]} : vector<18x18x4xbf16> to vector<16x16x4xbf16>
    %13 = vector.shape_cast %12 : vector<16x16x4xbf16> to vector<256x4xbf16>
    %c1 = arith.constant 1 : index
    %c0_8 = arith.constant 0 : index
    %c0_9 = arith.constant 0 : index
    %14 = vector.load %arg3[%c1, %c0_8, %c0_9] : memref<9x4x128xbf16, #tpu.memory_space<vmem>>, vector<1x4x128xbf16>
    %15 = vector.shape_cast %14 : vector<1x4x128xbf16> to vector<4x128xbf16>
    %cst_10 = arith.constant dense<0.000000e+00> : vector<256x128xf32>
    %16 = tpu.matmul %13, %15, %cst_10 {dimension_numbers = #tpu.dot_dimension_numbers<[1], [0], [0], [1], [0, 0, 1, 1], [], []>} : vector<256x4xbf16>, vector<4x128xbf16>, vector<256x128xf32> -> vector<256x128xf32>
    %17 = arith.addf %11, %16 : vector<256x128xf32>
    %18 = vector.extract_strided_slice %4 {offsets = [0, 2, 0], sizes = [16, 16, 4], strides = [1, 1, 1]} : vector<18x18x4xbf16> to vector<16x16x4xbf16>
    %19 = vector.shape_cast %18 : vector<16x16x4xbf16> to vector<256x4xbf16>
    %c2 = arith.constant 2 : index
    %c0_11 = arith.constant 0 : index
    %c0_12 = arith.constant 0 : index
    %20 = vector.load %arg3[%c2, %c0_11, %c0_12] : memref<9x4x128xbf16, #tpu.memory_space<vmem>>, vector<1x4x128xbf16>
    %21 = vector.shape_cast %20 : vector<1x4x128xbf16> to vector<4x128xbf16>
    %cst_13 = arith.constant dense<0.000000e+00> : vector<256x128xf32>
    %22 = tpu.matmul %19, %21, %cst_13 {dimension_numbers = #tpu.dot_dimension_numbers<[1], [0], [0], [1], [0, 0, 1, 1], [], []>} : vector<256x4xbf16>, vector<4x128xbf16>, vector<256x128xf32> -> vector<256x128xf32>
    %23 = arith.addf %17, %22 : vector<256x128xf32>
    %24 = vector.extract_strided_slice %4 {offsets = [1, 0, 0], sizes = [16, 16, 4], strides = [1, 1, 1]} : vector<18x18x4xbf16> to vector<16x16x4xbf16>
    %25 = vector.shape_cast %24 : vector<16x16x4xbf16> to vector<256x4xbf16>
    %c3 = arith.constant 3 : index
    %c0_14 = arith.constant 0 : index
    %c0_15 = arith.constant 0 : index
    %26 = vector.load %arg3[%c3, %c0_14, %c0_15] : memref<9x4x128xbf16, #tpu.memory_space<vmem>>, vector<1x4x128xbf16>
    %27 = vector.shape_cast %26 : vector<1x4x128xbf16> to vector<4x128xbf16>
    %cst_16 = arith.constant dense<0.000000e+00> : vector<256x128xf32>
    %28 = tpu.matmul %25, %27, %cst_16 {dimension_numbers = #tpu.dot_dimension_numbers<[1], [0], [0], [1], [0, 0, 1, 1], [], []>} : vector<256x4xbf16>, vector<4x128xbf16>, vector<256x128xf32> -> vector<256x128xf32>
    %29 = arith.addf %23, %28 : vector<256x128xf32>
    %30 = vector.extract_strided_slice %4 {offsets = [1, 1, 0], sizes = [16, 16, 4], strides = [1, 1, 1]} : vector<18x18x4xbf16> to vector<16x16x4xbf16>
    %31 = vector.shape_cast %30 : vector<16x16x4xbf16> to vector<256x4xbf16>
    %c4 = arith.constant 4 : index
    %c0_17 = arith.constant 0 : index
    %c0_18 = arith.constant 0 : index
    %32 = vector.load %arg3[%c4, %c0_17, %c0_18] : memref<9x4x128xbf16, #tpu.memory_space<vmem>>, vector<1x4x128xbf16>
    %33 = vector.shape_cast %32 : vector<1x4x128xbf16> to vector<4x128xbf16>
    %cst_19 = arith.constant dense<0.000000e+00> : vector<256x128xf32>
    %34 = tpu.matmul %31, %33, %cst_19 {dimension_numbers = #tpu.dot_dimension_numbers<[1], [0], [0], [1], [0, 0, 1, 1], [], []>} : vector<256x4xbf16>, vector<4x128xbf16>, vector<256x128xf32> -> vector<256x128xf32>
    %35 = arith.addf %29, %34 : vector<256x128xf32>
    %36 = vector.extract_strided_slice %4 {offsets = [1, 2, 0], sizes = [16, 16, 4], strides = [1, 1, 1]} : vector<18x18x4xbf16> to vector<16x16x4xbf16>
    %37 = vector.shape_cast %36 : vector<16x16x4xbf16> to vector<256x4xbf16>
    %c5 = arith.constant 5 : index
    %c0_20 = arith.constant 0 : index
    %c0_21 = arith.constant 0 : index
    %38 = vector.load %arg3[%c5, %c0_20, %c0_21] : memref<9x4x128xbf16, #tpu.memory_space<vmem>>, vector<1x4x128xbf16>
    %39 = vector.shape_cast %38 : vector<1x4x128xbf16> to vector<4x128xbf16>
    %cst_22 = arith.constant dense<0.000000e+00> : vector<256x128xf32>
    %40 = tpu.matmul %37, %39, %cst_22 {dimension_numbers = #tpu.dot_dimension_numbers<[1], [0], [0], [1], [0, 0, 1, 1], [], []>} : vector<256x4xbf16>, vector<4x128xbf16>, vector<256x128xf32> -> vector<256x128xf32>
    %41 = arith.addf %35, %40 : vector<256x128xf32>
    %42 = vector.extract_strided_slice %4 {offsets = [2, 0, 0], sizes = [16, 16, 4], strides = [1, 1, 1]} : vector<18x18x4xbf16> to vector<16x16x4xbf16>
    %43 = vector.shape_cast %42 : vector<16x16x4xbf16> to vector<256x4xbf16>
    %c6 = arith.constant 6 : index
    %c0_23 = arith.constant 0 : index
    %c0_24 = arith.constant 0 : index
    %44 = vector.load %arg3[%c6, %c0_23, %c0_24] : memref<9x4x128xbf16, #tpu.memory_space<vmem>>, vector<1x4x128xbf16>
    %45 = vector.shape_cast %44 : vector<1x4x128xbf16> to vector<4x128xbf16>
    %cst_25 = arith.constant dense<0.000000e+00> : vector<256x128xf32>
    %46 = tpu.matmul %43, %45, %cst_25 {dimension_numbers = #tpu.dot_dimension_numbers<[1], [0], [0], [1], [0, 0, 1, 1], [], []>} : vector<256x4xbf16>, vector<4x128xbf16>, vector<256x128xf32> -> vector<256x128xf32>
    %47 = arith.addf %41, %46 : vector<256x128xf32>
    %48 = vector.extract_strided_slice %4 {offsets = [2, 1, 0], sizes = [16, 16, 4], strides = [1, 1, 1]} : vector<18x18x4xbf16> to vector<16x16x4xbf16>
    %49 = vector.shape_cast %48 : vector<16x16x4xbf16> to vector<256x4xbf16>
    %c7 = arith.constant 7 : index
    %c0_26 = arith.constant 0 : index
    %c0_27 = arith.constant 0 : index
    %50 = vector.load %arg3[%c7, %c0_26, %c0_27] : memref<9x4x128xbf16, #tpu.memory_space<vmem>>, vector<1x4x128xbf16>
    %51 = vector.shape_cast %50 : vector<1x4x128xbf16> to vector<4x128xbf16>
    %cst_28 = arith.constant dense<0.000000e+00> : vector<256x128xf32>
    %52 = tpu.matmul %49, %51, %cst_28 {dimension_numbers = #tpu.dot_dimension_numbers<[1], [0], [0], [1], [0, 0, 1, 1], [], []>} : vector<256x4xbf16>, vector<4x128xbf16>, vector<256x128xf32> -> vector<256x128xf32>
    %53 = arith.addf %47, %52 : vector<256x128xf32>
    %54 = vector.extract_strided_slice %4 {offsets = [2, 2, 0], sizes = [16, 16, 4], strides = [1, 1, 1]} : vector<18x18x4xbf16> to vector<16x16x4xbf16>
    %55 = vector.shape_cast %54 : vector<16x16x4xbf16> to vector<256x4xbf16>
    %c8 = arith.constant 8 : index
    %c0_29 = arith.constant 0 : index
    %c0_30 = arith.constant 0 : index
    %56 = vector.load %arg3[%c8, %c0_29, %c0_30] : memref<9x4x128xbf16, #tpu.memory_space<vmem>>, vector<1x4x128xbf16>
    %57 = vector.shape_cast %56 : vector<1x4x128xbf16> to vector<4x128xbf16>
    %cst_31 = arith.constant dense<0.000000e+00> : vector<256x128xf32>
    %58 = tpu.matmul %55, %57, %cst_31 {dimension_numbers = #tpu.dot_dimension_numbers<[1], [0], [0], [1], [0, 0, 1, 1], [], []>} : vector<256x4xbf16>, vector<4x128xbf16>, vector<256x128xf32> -> vector<256x128xf32>
    %59 = arith.addf %53, %58 : vector<256x128xf32>
    %60 = arith.truncf %59 : vector<256x128xf32> to vector<256x128xbf16>
    %c0_32 = arith.constant 0 : index
    %c0_33 = arith.constant 0 : index
    %c0_34 = arith.constant 0 : index
    %61 = vector.load %arg6[%c0_32, %c0_33, %c0_34] : memref<1x256x128xbf16, #tpu.memory_space<vmem>>, vector<1x256x128xbf16>
    %62 = vector.shape_cast %61 : vector<1x256x128xbf16> to vector<256x128xbf16>
    %63 = vector.shape_cast %60 : vector<256x128xbf16> to vector<1x256x128xbf16>
    tpu.vector_store %arg6[%c0_32, %c0_33, %c0_34], %63 {strides = array<i32>} : memref<1x256x128xbf16, #tpu.memory_space<vmem>>, vector<1x256x128xbf16>,
    %c0_35 = arith.constant 0 : index
    %c0_36 = arith.constant 0 : index
    %64 = vector.load %arg9[%c0_35, %c0_36] : memref<1x128xf32, #tpu.memory_space<vmem>>, vector<1x128xf32>
    %cst_37 = arith.constant dense<0.000000e+00> : vector<128xf32>
    %65 = vector.multi_reduction <add>, %59, %cst_37 [0] : vector<256x128xf32> to vector<128xf32>
    %66 = vector.shape_cast %65 : vector<128xf32> to vector<1x128xf32>
    %67 = arith.addf %64, %66 : vector<1x128xf32>
    %c0_38 = arith.constant 0 : index
    %c0_39 = arith.constant 0 : index
    %68 = vector.load %arg9[%c0_38, %c0_39] : memref<1x128xf32, #tpu.memory_space<vmem>>, vector<1x128xf32>
    tpu.vector_store %arg9[%c0_38, %c0_39], %67 {strides = array<i32>} : memref<1x128xf32, #tpu.memory_space<vmem>>, vector<1x128xf32>,
    %c0_40 = arith.constant 0 : index
    %c0_41 = arith.constant 0 : index
    %69 = vector.load %arg10[%c0_40, %c0_41] : memref<1x128xf32, #tpu.memory_space<vmem>>, vector<1x128xf32>
    %70 = arith.mulf %59, %59 : vector<256x128xf32>
    %cst_42 = arith.constant dense<0.000000e+00> : vector<128xf32>
    %71 = vector.multi_reduction <add>, %70, %cst_42 [0] : vector<256x128xf32> to vector<128xf32>
    %72 = vector.shape_cast %71 : vector<128xf32> to vector<1x128xf32>
    %73 = arith.addf %69, %72 : vector<1x128xf32>
    %c0_43 = arith.constant 0 : index
    %c0_44 = arith.constant 0 : index
    %74 = vector.load %arg10[%c0_43, %c0_44] : memref<1x128xf32, #tpu.memory_space<vmem>>, vector<1x128xf32>
    tpu.vector_store %arg10[%c0_43, %c0_44], %73 {strides = array<i32>} : memref<1x128xf32, #tpu.memory_space<vmem>>, vector<1x128xf32>,
    %c1_i32 = arith.constant 1 : i32
    %75 = arith.cmpi eq, %arg1, %c1_i32 : i32
    %76 = arith.extui %75 : i1 to i32
    %c0_i32_45 = arith.constant 0 : i32
    %77 = arith.cmpi ne, %76, %c0_i32_45 : i32
    scf.if %77 {
      %c0_46 = arith.constant 0 : index
      %c0_47 = arith.constant 0 : index
      %78 = vector.load %arg9[%c0_46, %c0_47] : memref<1x128xf32, #tpu.memory_space<vmem>>, vector<1x128xf32>
      %cst_48 = arith.constant 0.001953125 : f32
      %79 = vector.broadcast %cst_48 : f32 to vector<1x128xf32>
      %80 = arith.mulf %78, %79 : vector<1x128xf32>
      %c0_49 = arith.constant 0 : index
      %c0_50 = arith.constant 0 : index
      %81 = vector.load %arg10[%c0_49, %c0_50] : memref<1x128xf32, #tpu.memory_space<vmem>>, vector<1x128xf32>
      %cst_51 = arith.constant 0.001953125 : f32
      %82 = vector.broadcast %cst_51 : f32 to vector<1x128xf32>
      %83 = arith.mulf %81, %82 : vector<1x128xf32>
      %84 = arith.mulf %80, %80 : vector<1x128xf32>
      %85 = arith.subf %83, %84 : vector<1x128xf32>
      %cst_52 = arith.constant 0.000000e+00 : f32
      %86 = vector.broadcast %cst_52 : f32 to vector<1x128xf32>
      %87 = arith.maximumf %85, %86 : vector<1x128xf32>
      %c0_53 = arith.constant 0 : index
      %c0_54 = arith.constant 0 : index
      %88 = vector.load %arg4[%c0_53, %c0_54] : memref<1x128xf32, #tpu.memory_space<vmem>>, vector<1x128xf32>
      %cst_55 = arith.constant 9.99999974E-6 : f32
      %89 = vector.broadcast %cst_55 : f32 to vector<1x128xf32>
      %90 = arith.addf %87, %89 : vector<1x128xf32>
      %91 = math.rsqrt %90 : vector<1x128xf32>
      %92 = arith.mulf %88, %91 : vector<1x128xf32>
      %c0_56 = arith.constant 0 : index
      %c0_57 = arith.constant 0 : index
      %93 = vector.load %arg7[%c0_56, %c0_57] : memref<1x128xf32, #tpu.memory_space<vmem>>, vector<1x128xf32>
      tpu.vector_store %arg7[%c0_56, %c0_57], %92 {strides = array<i32>} : memref<1x128xf32, #tpu.memory_space<vmem>>, vector<1x128xf32>,
      %c0_58 = arith.constant 0 : index
      %c0_59 = arith.constant 0 : index
      %94 = vector.load %arg5[%c0_58, %c0_59] : memref<1x128xf32, #tpu.memory_space<vmem>>, vector<1x128xf32>
      %95 = arith.mulf %80, %92 : vector<1x128xf32>
      %96 = arith.subf %94, %95 : vector<1x128xf32>
      %c0_60 = arith.constant 0 : index
      %c0_61 = arith.constant 0 : index
      %97 = vector.load %arg8[%c0_60, %c0_61] : memref<1x128xf32, #tpu.memory_space<vmem>>, vector<1x128xf32>
      tpu.vector_store %arg8[%c0_60, %c0_61], %96 {strides = array<i32>} : memref<1x128xf32, #tpu.memory_space<vmem>>, vector<1x128xf32>,
    } else {
    }
    return
  }
  func.func @transform_0(%arg0: i32, %arg1: i32) -> (i32, i32, i32, i32) {
    %c0_i32 = arith.constant 0 : i32
    %c0_i32_0 = arith.constant 0 : i32
    %c0_i32_1 = arith.constant 0 : i32
    %c0_i32_2 = arith.constant 0 : i32
    return %arg1, %c0_i32, %c0_i32_0, %c0_i32_1 : i32, i32, i32, i32
  }
  func.func @transform_1(%arg0: i32, %arg1: i32) -> (i32, i32, i32) {
    %c0_i32 = arith.constant 0 : i32
    %c0_i32_0 = arith.constant 0 : i32
    %c0_i32_1 = arith.constant 0 : i32
    return %c0_i32, %c0_i32_0, %arg0 : i32, i32, i32
  }
  func.func @transform_2(%arg0: i32, %arg1: i32) -> (i32, i32) {
    %c0_i32 = arith.constant 0 : i32
    %c0_i32_0 = arith.constant 0 : i32
    return %c0_i32, %arg0 : i32, i32
  }
  func.func @transform_3(%arg0: i32, %arg1: i32) -> (i32, i32) {
    %c0_i32 = arith.constant 0 : i32
    %c0_i32_0 = arith.constant 0 : i32
    return %c0_i32, %arg0 : i32, i32
  }
  func.func @transform_4(%arg0: i32, %arg1: i32) -> (i32, i32, i32) {
    %c0_i32 = arith.constant 0 : i32
    %c0_i32_0 = arith.constant 0 : i32
    return %arg1, %c0_i32, %arg0 : i32, i32, i32
  }
  func.func @transform_5(%arg0: i32, %arg1: i32) -> (i32, i32) {
    %c0_i32 = arith.constant 0 : i32
    %c0_i32_0 = arith.constant 0 : i32
    return %c0_i32, %arg0 : i32, i32
  }
  func.func @transform_6(%arg0: i32, %arg1: i32) -> (i32, i32) {
    %c0_i32 = arith.constant 0 : i32
    %c0_i32_0 = arith.constant 0 : i32
    return %c0_i32, %arg0 : i32, i32
  }
}

</mosaic_0001>

<llo_original>
// kernel: cnn_block_forward.3
$region0: #{cnn_block_forward.3}
  #allocation0 [shape = 'u32[]', space=smem, size = 0x4, offset = 0x4, fixed_abs, tag = 'smem constant byte address 0x4 - core index']
  #allocation1 [shape = 'u32[144,128]{1,0:T(1,128)}', space=vmem, size = 0x12000, scoped, tag = 'internal scratch']
  %s0 = inlined_call_operand.vmem [shape: bf16[2,256,128], index: 0, kind: input, shape index: {}]
  %s1 = inlined_call_operand.vmem [shape: f32[1,128], index: 1, kind: input, shape index: {}]
  %s2 = inlined_call_operand.vmem [shape: f32[1,128], index: 2, kind: input, shape index: {}]
  %s3 = inlined_call_operand.vmem [shape: f32[2,128,256], index: 3, kind: output, shape index: {}]
  %s4 = sld [smem:[#allocation0]]
  $region45: #{cnn_block_forward.3} parent=0
    _
  %s6 = ssub.s32 1, %s4
  %s7 = scalar_select 0, %s6, %s4
  loop: start=0, step=1, limit=4
  $region2: #{cnn_block_forward.3} parent=0 // loop_pre_header
    _
  $region3: #{cnn_block_forward.3} parent=0 // loop_header
    %s9 = sphi 0, %s13
    %p10 = scmp.ge.s32.totalorder %s9, 4
    %s16 = sphi 0, %s28
    %s17 = sphi 0, %s24
    %s18 = sphi 0, %s16
    %s19 = sphi 0, %s17
    %s20 = sphi 0, %s18
    %s21 = sphi 0, %s19
    %s33 = sphi 0, %s35
    %s36 = sphi 0, %s33
    %s37 = sphi 0, %s36
    %s53 = sphi 0, %s37
    %s59 = sphi 0, %s61
    %s62 = sphi 0, %s59
    %s63 = sphi 0, %s62
    %s79 = sphi 0, %s63
    %s85 = sphi 0, %s87
    %s88 = sphi 0, %s85
    %s89 = sphi 0, %s88
    %s105 = sphi 0, %s89
    %s113 = sphi 0, %s115
    %s116 = sphi 0, %s113
    %s117 = sphi 0, %s116
    %s133 = sphi 0, %s117
  $region4: #{cnn_block_forward.3} parent=0 // loop_header_branch
    %12 = sbr.rel (%p10) target = $region8
  $region5: #{cnn_block_forward.3} parent=0 // loop_body
    %s14 = ssub.s32 %s9, 1
    %s15 = ssub.s32 %s9, 2
    %s22 = sadd.s32 1, %s17
    %p23 = scmp.ge.s32.totalorder %s22, 1
    %s24 = scalar_select %p23, 0, %s22
    %s25 = sadd.s32 1, %s16
    %s26 = scalar_select %p23, %s25, %s16
    %p27 = scmp.ge.s32.totalorder %s26, 2
    %s28 = scalar_select %p27, 0, %s26
    %s29 = ssub.s32 %s16, %s28
    %s30 = ssub.s32 %s17, %s24
    %s31 = sor.u32 %s29, %s30
    %p32 = scmp.eq.s32.totalorder %s31, 0
    %s34 = sadd.s32 %s33, 1
    %s35 = scalar_select %p32, %s33, %s34
    %p38 = pneg %p32
    %p39 = scmp.eq.s32.totalorder %s9, 1
    %p40 = por %p38, %p39
    %p41 = scmp.ne.s32.totalorder %s33, %s36
    %p42 = scmp.eq.s32.totalorder %s9, 0
    %p43 = por %p41, %p42
    %p44 = scmp.ne.s32.totalorder %s33, %s36
    %p45 = scmp.eq.s32.totalorder %s14, 1
    %p46 = por %p44, %p45
    %p47 = scmp.ne.s32.totalorder %s36, %s37
    %p48 = scmp.eq.s32.totalorder %s14, 0
    %p49 = por %p47, %p48
    %p50 = scmp.ne.s32.totalorder %s36, %s37
    %p51 = scmp.eq.s32.totalorder %s15, 1
    %p52 = por %p50, %p51
    %p54 = scmp.ne.s32.totalorder %s37, %s53
    %p55 = scmp.eq.s32.totalorder %s15, 0
    %p56 = por %p54, %p55
    %s57 = ssub.s32 %s17, %s24
    %p58 = scmp.eq.s32.totalorder %s57, 0
    %s60 = sadd.s32 %s59, 1
    %s61 = scalar_select %p58, %s59, %s60
    %p64 = pneg %p58
    %p65 = scmp.eq.s32.totalorder %s9, 1
    %p66 = por %p64, %p65
    %p67 = scmp.ne.s32.totalorder %s59, %s62
    %p68 = scmp.eq.s32.totalorder %s9, 0
    %p69 = por %p67, %p68
    %p70 = scmp.ne.s32.totalorder %s59, %s62
    %p71 = scmp.eq.s32.totalorder %s14, 1
    %p72 = por %p70, %p71
    %p73 = scmp.ne.s32.totalorder %s62, %s63
    %p74 = scmp.eq.s32.totalorder %s14, 0
    %p75 = por %p73, %p74
    %p76 = scmp.ne.s32.totalorder %s62, %s63
    %p77 = scmp.eq.s32.totalorder %s15, 1
    %p78 = por %p76, %p77
    %p80 = scmp.ne.s32.totalorder %s63, %s79
    %p81 = scmp.eq.s32.totalorder %s15, 0
    %p82 = por %p80, %p81
    %s83 = ssub.s32 %s17, %s24
    %p84 = scmp.eq.s32.totalorder %s83, 0
    %s86 = sadd.s32 %s85, 1
    %s87 = scalar_select %p84, %s85, %s86
    %p90 = pneg %p84
    %p91 = scmp.eq.s32.totalorder %s9, 1
    %p92 = por %p90, %p91
    %p93 = scmp.ne.s32.totalorder %s85, %s88
    %p94 = scmp.eq.s32.totalorder %s9, 0
    %p95 = por %p93, %p94
    %p96 = scmp.ne.s32.totalorder %s85, %s88
    %p97 = scmp.eq.s32.totalorder %s14, 1
    %p98 = por %p96, %p97
    %p99 = scmp.ne.s32.totalorder %s88, %s89
    %p100 = scmp.eq.s32.totalorder %s14, 0
    %p101 = por %p99, %p100
    %p102 = scmp.ne.s32.totalorder %s88, %s89
    %p103 = scmp.eq.s32.totalorder %s15, 1
    %p104 = por %p102, %p103
    %p106 = scmp.ne.s32.totalorder %s89, %s105
    %p107 = scmp.eq.s32.totalorder %s15, 0
    %p108 = por %p106, %p107
    %s109 = ssub.s32 %s16, %s28
    %s110 = ssub.s32 %s17, %s24
    %s111 = sor.u32 %s109, %s110
    %p112 = scmp.eq.s32.totalorder %s111, 0
    %s114 = sadd.s32 %s113, 1
    %s115 = scalar_select %p112, %s113, %s114
    %p118 = pneg %p112
    %p119 = scmp.eq.s32.totalorder %s9, 1
    %p120 = por %p118, %p119
    %p121 = scmp.ne.s32.totalorder %s113, %s116
    %p122 = scmp.eq.s32.totalorder %s9, 0
    %p123 = por %p121, %p122
    %p124 = scmp.ne.s32.totalorder %s113, %s116
    %p125 = scmp.eq.s32.totalorder %s14, 1
    %p126 = por %p124, %p125
    %p127 = scmp.ne.s32.totalorder %s116, %s117
    %p128 = scmp.eq.s32.totalorder %s14, 0
    %p129 = por %p127, %p128
    %p130 = scmp.ne.s32.totalorder %s116, %s117
    %p131 = scmp.eq.s32.totalorder %s15, 1
    %p132 = por %p130, %p131
    %p134 = scmp.ne.s32.totalorder %s117, %s133
    %p135 = scmp.eq.s32.totalorder %s15, 0
    %p136 = por %p134, %p135
    %p137 = scmp.le.s32.totalorder 1, %s9
    %p138 = scmp.lt.s32.totalorder %s9, 3
    %p139 = pnand %p137, %p138
    %p140 = pneg %p139
    // Predicated region
    $region9: #{cnn_block_forward.3} parent=5 // pred_check
      _
    $region10: #{cnn_block_forward.3} parent=5 // pred_check_branch
      %142 = sbr.rel (%p139) target = $region12
    $region11: #{cnn_block_forward.3} parent=5 // pred_region
      %s143 = ssub.s32 %s9, 1
      // Predicated region
      $region13: #{cnn_block_forward.3} parent=11 // pred_check
        %p144 = pneg %p75
      $region14: #{cnn_block_forward.3} parent=11 // pred_check_branch
        %146 = sbr.rel (%p144) target = $region16
      $region15: #{cnn_block_forward.3} parent=11 // pred_region
        %p147 = scmp.lt.s32.totalorder %s19, 0
        %s148 = scalar_select %p147, %s19, 0
        %s149 = scalar_lea.vmem %s1, %s148
      $region16: #{cnn_block_forward.3} parent=11 // pred_fallthru
        _
      // Predicated region
      $region17: #{cnn_block_forward.3} parent=11 // pred_check
        %p150 = pneg %p101
      $region18: #{cnn_block_forward.3} parent=11 // pred_check_branch
        %152 = sbr.rel (%p150) target = $region20
      $region19: #{cnn_block_forward.3} parent=11 // pred_region
        %p153 = scmp.lt.s32.totalorder %s19, 0
        %s154 = scalar_select %p153, %s19, 0
        %s155 = scalar_lea.vmem %s2, %s154
      $region20: #{cnn_block_forward.3} parent=11 // pred_fallthru
        _
    $region12: #{cnn_block_forward.3} parent=5 // pred_fallthru
      _
    %p156 = scmp.lt.s32.totalorder %s9, 2
    // Predicated region
    $region21: #{cnn_block_forward.3} parent=5 // pred_check
      %p157 = pneg %p156
    $region22: #{cnn_block_forward.3} parent=5 // pred_check_branch
      %159 = sbr.rel (%p157) target = $region24
    $region23: #{cnn_block_forward.3} parent=5 // pred_region
      // Predicated region
      $region25: #{cnn_block_forward.3} parent=23 // pred_check
        %p160 = pneg %p43
      $region26: #{cnn_block_forward.3} parent=23 // pred_check_branch
        %162 = sbr.rel (%p160) target = $region28
      $region27: #{cnn_block_forward.3} parent=23 // pred_region
        %p163 = scmp.lt.s32.totalorder %s16, 1
        %s164 = scalar_select %p163, %s16, 1
        %p165 = scmp.lt.s32.totalorder %s17, 0
        %s166 = scalar_select %p165, %s17, 0
        %s167 = smul.addr %s164, 32
        %s168 = sadd.s32 %s166, %s167
        %s169 = smul.addr %s168, 4
        %s170 = scalar_lea.vmem %s0, %s169
      $region28: #{cnn_block_forward.3} parent=23 // pred_fallthru
        _
    $region24: #{cnn_block_forward.3} parent=5 // pred_fallthru
      _
    %p171 = scmp.le.s32.totalorder 1, %s9
    %p172 = scmp.lt.s32.totalorder %s9, 3
    %p173 = pnand %p171, %p172
    %p174 = pneg %p173
    // Predicated region
    $region29: #{cnn_block_forward.3} parent=5 // pred_check
      _
    $region30: #{cnn_block_forward.3} parent=5 // pred_check_branch
      %176 = sbr.rel (%p173) target = $region32
    $region31: #{cnn_block_forward.3} parent=5 // pred_region
      %s177 = ssub.s32 %s9, 1
      %p178 = scmp.lt.s32.totalorder %s18, 1
      %s179 = scalar_select %p178, %s18, 1
      %p180 = scmp.lt.s32.totalorder %s19, 0
      %s181 = scalar_select %p180, %s19, 0
      %s182 = smul.addr %s179, 32
      %s183 = sadd.s32 %s181, %s182
      %s184 = smul.addr %s183, 4
      %s185 = scalar_lea.vmem %s0, %s184
      %p186 = pneg %p49
      %p187 = pneg %p46
      %p188 = scmp.lt.s32.totalorder %s19, 0
      %s189 = scalar_select %p188, %s19, 0
      %s190 = scalar_lea.vmem %s1, %s189
      %p191 = pneg %p75
      %p192 = pneg %p72
      %p193 = scmp.lt.s32.totalorder %s19, 0
      %s194 = scalar_select %p193, %s19, 0
      %s195 = scalar_lea.vmem %s2, %s194
      %p196 = pneg %p101
      %p197 = pneg %p98
      %p198 = pneg %p129
      %p199 = pneg %p126
      %s200 = smul.u32 16, %s19
      %p201 = scmp.lt.s32.totalorder %s18, 1
      %s202 = scalar_select %p201, %s18, 1
      %p203 = scmp.lt.s32.totalorder %s200, 15
      %s204 = scalar_select %p203, %s200, 15
      %s205 = smul.addr %s204, 2
      %s206 = smul.addr %s202, 32
      %s207 = sadd.s32 %s205, %s206
      %s208 = smul.addr %s207, 8
      %s209 = scalar_lea.vmem %s3, %s208
      %p210 = scmp.lt.s32.totalorder %s18, 1
      %s211 = scalar_select %p210, %s18, 1
      %p212 = scmp.lt.s32.totalorder %s19, 0
      %s213 = scalar_select %p212, %s19, 0
      %s214 = smul.addr %s211, 32
      %s215 = sadd.s32 %s213, %s214
      %s216 = smul.addr %s215, 4
      %s217 = scalar_lea.vmem %s0, %s216
      %p218 = scmp.lt.s32.totalorder %s19, 0
      %s219 = scalar_select %p218, %s19, 0
      %s220 = scalar_lea.vmem %s1, %s219
      %p221 = scmp.lt.s32.totalorder %s19, 0
      %s222 = scalar_select %p221, %s19, 0
      %s223 = scalar_lea.vmem %s2, %s222
      %s224 = smul.u32 16, %s19
      %p225 = scmp.lt.s32.totalorder %s18, 1
      %s226 = scalar_select %p225, %s18, 1
      %p227 = scmp.lt.s32.totalorder %s224, 15
      %s228 = scalar_select %p227, %s224, 15
      %s229 = smul.addr %s228, 2
      %s230 = smul.addr %s226, 32
      %s231 = sadd.s32 %s229, %s230
      %s232 = smul.addr %s231, 8
      %s233 = scalar_lea.vmem %s3, %s232
      %s234 = smul.u32 16, %s19
      %v235 = vld [vmem:[%s217] sm:$0xf]
      %v236 = vld [vmem:[%s217 + $0x4] sm:$0xf]
      %v237 = vld [vmem:[%s217 + $0x8] sm:$0xf]
      %v238 = vld [vmem:[%s217 + $0xc] sm:$0xf]
      %v239 = vld [vmem:[%s217 + $0x10] sm:$0xf]
      %v240 = vld [vmem:[%s217 + $0x14] sm:$0xf]
      %v241 = vld [vmem:[%s217 + $0x18] sm:$0xf]
      %v242 = vld [vmem:[%s217 + $0x1c] sm:$0xf]
      %v243 = vld [vmem:[%s217 + $0x20] sm:$0xf]
      %v244 = vld [vmem:[%s217 + $0x24] sm:$0xf]
      %v245 = vld [vmem:[%s217 + $0x28] sm:$0xf]
      %v246 = vld [vmem:[%s217 + $0x2c] sm:$0xf]
      %v247 = vld [vmem:[%s217 + $0x30] sm:$0xf]
      %v248 = vld [vmem:[%s217 + $0x34] sm:$0xf]
      %v249 = vld [vmem:[%s217 + $0x38] sm:$0xf]
      %v250 = vld [vmem:[%s217 + $0x3c] sm:$0xf]
      %v251 = vld [vmem:[%s217 + $0x40] sm:$0xf]
      %v252 = vld [vmem:[%s217 + $0x44] sm:$0xf]
      %v253 = vld [vmem:[%s217 + $0x48] sm:$0xf]
      %v254 = vld [vmem:[%s217 + $0x4c] sm:$0xf]
      %v255 = vld [vmem:[%s217 + $0x50] sm:$0xf]
      %v256 = vld [vmem:[%s217 + $0x54] sm:$0xf]
      %v257 = vld [vmem:[%s217 + $0x58] sm:$0xf]
      %v258 = vld [vmem:[%s217 + $0x5c] sm:$0xf]
      %v259 = vld [vmem:[%s217 + $0x60] sm:$0xf]
      %v260 = vld [vmem:[%s217 + $0x64] sm:$0xf]
      %v261 = vld [vmem:[%s217 + $0x68] sm:$0xf]
      %v262 = vld [vmem:[%s217 + $0x6c] sm:$0xf]
      %v263 = vld [vmem:[%s217 + $0x70] sm:$0xf]
      %v264 = vld [vmem:[%s217 + $0x74] sm:$0xf]
      %v265 = vld [vmem:[%s217 + $0x78] sm:$0xf]
      %v266 = vld [vmem:[%s217 + $0x7c] sm:$0xf]
      %v267 = vunpack.c.l.bf16 %v235
      %v268 = vunpack.c.l.bf16 %v236
      %v269 = vunpack.c.l.bf16 %v237
      %v270 = vunpack.c.l.bf16 %v238
      %v271 = vunpack.c.l.bf16 %v239
      %v272 = vunpack.c.l.bf16 %v240
      %v273 = vunpack.c.l.bf16 %v241
      %v274 = vunpack.c.l.bf16 %v242
      %v275 = vunpack.c.l.bf16 %v243
      %v276 = vunpack.c.l.bf16 %v244
      %v277 = vunpack.c.l.bf16 %v245
      %v278 = vunpack.c.l.bf16 %v246
      %v279 = vunpack.c.l.bf16 %v247
      %v280 = vunpack.c.l.bf16 %v248
      %v281 = vunpack.c.l.bf16 %v249
      %v282 = vunpack.c.l.bf16 %v250
      %v283 = vunpack.c.l.bf16 %v251
      %v284 = vunpack.c.l.bf16 %v252
      %v285 = vunpack.c.l.bf16 %v253
      %v286 = vunpack.c.l.bf16 %v254
      %v287 = vunpack.c.l.bf16 %v255
      %v288 = vunpack.c.l.bf16 %v256
      %v289 = vunpack.c.l.bf16 %v257
      %v290 = vunpack.c.l.bf16 %v258
      %v291 = vunpack.c.l.bf16 %v259
      %v292 = vunpack.c.l.bf16 %v260
      %v293 = vunpack.c.l.bf16 %v261
      %v294 = vunpack.c.l.bf16 %v262
      %v295 = vunpack.c.l.bf16 %v263
      %v296 = vunpack.c.l.bf16 %v264
      %v297 = vunpack.c.l.bf16 %v265
      %v298 = vunpack.c.l.bf16 %v266
      %v299 = vld [vmem:[%s220] sm:$0x1]
      %v301 = vlaneseq
      %v302 = vshrl.u32 %v301, 7
      %v303 = vsub.s32 0, %v302
      %v304 = vrot.slane %v299, %v303
      %v306 = vmul.f32 %v267, %v304
      %v307 = vmul.f32 %v268, %v304
      %v308 = vmul.f32 %v269, %v304
      %v309 = vmul.f32 %v270, %v304
      %v310 = vmul.f32 %v271, %v304
      %v311 = vmul.f32 %v272, %v304
      %v312 = vmul.f32 %v273, %v304
      %v313 = vmul.f32 %v274, %v304
      %v314 = vmul.f32 %v275, %v304
      %v315 = vmul.f32 %v276, %v304
      %v316 = vmul.f32 %v277, %v304
      %v317 = vmul.f32 %v278, %v304
      %v318 = vmul.f32 %v279, %v304
      %v319 = vmul.f32 %v280, %v304
      %v320 = vmul.f32 %v281, %v304
      %v321 = vmul.f32 %v282, %v304
      %v322 = vmul.f32 %v283, %v304
      %v323 = vmul.f32 %v284, %v304
      %v324 = vmul.f32 %v285, %v304
      %v325 = vmul.f32 %v286, %v304
      %v326 = vmul.f32 %v287, %v304
      %v327 = vmul.f32 %v288, %v304
      %v328 = vmul.f32 %v289, %v304
      %v329 = vmul.f32 %v290, %v304
      %v330 = vmul.f32 %v291, %v304
      %v331 = vmul.f32 %v292, %v304
      %v332 = vmul.f32 %v293, %v304
      %v333 = vmul.f32 %v294, %v304
      %v334 = vmul.f32 %v295, %v304
      %v335 = vmul.f32 %v296, %v304
      %v336 = vmul.f32 %v297, %v304
      %v337 = vmul.f32 %v298, %v304
      %v338 = vld [vmem:[%s223] sm:$0x1]
      %v340 = vlaneseq
      %v341 = vshrl.u32 %v340, 7
      %v342 = vsub.s32 0, %v341
      %v343 = vrot.slane %v338, %v342
      %v345 = vadd.f32 %v306, %v343
      %v346 = vadd.f32 %v307, %v343
      %v347 = vadd.f32 %v308, %v343
      %v348 = vadd.f32 %v309, %v343
      %v349 = vadd.f32 %v310, %v343
      %v350 = vadd.f32 %v311, %v343
      %v351 = vadd.f32 %v312, %v343
      %v352 = vadd.f32 %v313, %v343
      %v353 = vadd.f32 %v314, %v343
      %v354 = vadd.f32 %v315, %v343
      %v355 = vadd.f32 %v316, %v343
      %v356 = vadd.f32 %v317, %v343
      %v357 = vadd.f32 %v318, %v343
      %v358 = vadd.f32 %v319, %v343
      %v359 = vadd.f32 %v320, %v343
      %v360 = vadd.f32 %v321, %v343
      %v361 = vadd.f32 %v322, %v343
      %v362 = vadd.f32 %v323, %v343
      %v363 = vadd.f32 %v324, %v343
      %v364 = vadd.f32 %v325, %v343
      %v365 = vadd.f32 %v326, %v343
      %v366 = vadd.f32 %v327, %v343
      %v367 = vadd.f32 %v328, %v343
      %v368 = vadd.f32 %v329, %v343
      %v369 = vadd.f32 %v330, %v343
      %v370 = vadd.f32 %v331, %v343
      %v371 = vadd.f32 %v332, %v343
      %v372 = vadd.f32 %v333, %v343
      %v373 = vadd.f32 %v334, %v343
      %v374 = vadd.f32 %v335, %v343
      %v375 = vadd.f32 %v336, %v343
      %v376 = vadd.f32 %v337, %v343
      %vm377 = vcmp.ge.f32.partialorder %v345, 0.0
      %vm378 = vcmp.ge.f32.partialorder %v346, 0.0
      %vm379 = vcmp.ge.f32.partialorder %v347, 0.0
      %vm380 = vcmp.ge.f32.partialorder %v348, 0.0
      %vm381 = vcmp.ge.f32.partialorder %v349, 0.0
      %vm382 = vcmp.ge.f32.partialorder %v350, 0.0
      %vm383 = vcmp.ge.f32.partialorder %v351, 0.0
      %vm384 = vcmp.ge.f32.partialorder %v352, 0.0
      %vm385 = vcmp.ge.f32.partialorder %v353, 0.0
      %vm386 = vcmp.ge.f32.partialorder %v354, 0.0
      %vm387 = vcmp.ge.f32.partialorder %v355, 0.0
      %vm388 = vcmp.ge.f32.partialorder %v356, 0.0
      %vm389 = vcmp.ge.f32.partialorder %v357, 0.0
      %vm390 = vcmp.ge.f32.partialorder %v358, 0.0
      %vm391 = vcmp.ge.f32.partialorder %v359, 0.0
      %vm392 = vcmp.ge.f32.partialorder %v360, 0.0
      %vm393 = vcmp.ge.f32.partialorder %v361, 0.0
      %vm394 = vcmp.ge.f32.partialorder %v362, 0.0
      %vm395 = vcmp.ge.f32.partialorder %v363, 0.0
      %vm396 = vcmp.ge.f32.partialorder %v364, 0.0
      %vm397 = vcmp.ge.f32.partialorder %v365, 0.0
      %vm398 = vcmp.ge.f32.partialorder %v366, 0.0
      %vm399 = vcmp.ge.f32.partialorder %v367, 0.0
      %vm400 = vcmp.ge.f32.partialorder %v368, 0.0
      %vm401 = vcmp.ge.f32.partialorder %v369, 0.0
      %vm402 = vcmp.ge.f32.partialorder %v370, 0.0
      %vm403 = vcmp.ge.f32.partialorder %v371, 0.0
      %vm404 = vcmp.ge.f32.partialorder %v372, 0.0
      %vm405 = vcmp.ge.f32.partialorder %v373, 0.0
      %vm406 = vcmp.ge.f32.partialorder %v374, 0.0
      %vm407 = vcmp.ge.f32.partialorder %v375, 0.0
      %vm408 = vcmp.ge.f32.partialorder %v376, 0.0
      %v409 = vmul.f32 %v345, 0.1
      %v410 = vmul.f32 %v346, 0.1
      %v411 = vmul.f32 %v347, 0.1
      %v412 = vmul.f32 %v348, 0.1
      %v413 = vmul.f32 %v349, 0.1
      %v414 = vmul.f32 %v350, 0.1
      %v415 = vmul.f32 %v351, 0.1
      %v416 = vmul.f32 %v352, 0.1
      %v417 = vmul.f32 %v353, 0.1
      %v418 = vmul.f32 %v354, 0.1
      %v419 = vmul.f32 %v355, 0.1
      %v420 = vmul.f32 %v356, 0.1
      %v421 = vmul.f32 %v357, 0.1
      %v422 = vmul.f32 %v358, 0.1
      %v423 = vmul.f32 %v359, 0.1
      %v424 = vmul.f32 %v360, 0.1
      %v425 = vmul.f32 %v361, 0.1
      %v426 = vmul.f32 %v362, 0.1
      %v427 = vmul.f32 %v363, 0.1
      %v428 = vmul.f32 %v364, 0.1
      %v429 = vmul.f32 %v365, 0.1
      %v430 = vmul.f32 %v366, 0.1
      %v431 = vmul.f32 %v367, 0.1
      %v432 = vmul.f32 %v368, 0.1
      %v433 = vmul.f32 %v369, 0.1
      %v434 = vmul.f32 %v370, 0.1
      %v435 = vmul.f32 %v371, 0.1
      %v436 = vmul.f32 %v372, 0.1
      %v437 = vmul.f32 %v373, 0.1
      %v438 = vmul.f32 %v374, 0.1
      %v439 = vmul.f32 %v375, 0.1
      %v440 = vmul.f32 %v376, 0.1
      %v441 = vsel %vm377, %v345, %v409
      %v442 = vsel %vm378, %v346, %v410
      %v443 = vsel %vm379, %v347, %v411
      %v444 = vsel %vm380, %v348, %v412
      %v445 = vsel %vm381, %v349, %v413
      %v446 = vsel %vm382, %v350, %v414
      %v447 = vsel %vm383, %v351, %v415
      %v448 = vsel %vm384, %v352, %v416
      %v449 = vsel %vm385, %v353, %v417
      %v450 = vsel %vm386, %v354, %v418
      %v451 = vsel %vm387, %v355, %v419
      %v452 = vsel %vm388, %v356, %v420
      %v453 = vsel %vm389, %v357, %v421
      %v454 = vsel %vm390, %v358, %v422
      %v455 = vsel %vm391, %v359, %v423
      %v456 = vsel %vm392, %v360, %v424
      %v457 = vsel %vm393, %v361, %v425
      %v458 = vsel %vm394, %v362, %v426
      %v459 = vsel %vm395, %v363, %v427
      %v460 = vsel %vm396, %v364, %v428
      %v461 = vsel %vm397, %v365, %v429
      %v462 = vsel %vm398, %v366, %v430
      %v463 = vsel %vm399, %v367, %v431
      %v464 = vsel %vm400, %v368, %v432
      %v465 = vsel %vm401, %v369, %v433
      %v466 = vsel %vm402, %v370, %v434
      %v467 = vsel %vm403, %v371, %v435
      %v468 = vsel %vm404, %v372, %v436
      %v469 = vsel %vm405, %v373, %v437
      %v470 = vsel %vm406, %v374, %v438
      %v471 = vsel %vm407, %v375, %v439
      %v472 = vsel %vm408, %v376, %v440
      %473 = vxpose.xlu0.b32.start [1/16] %v441, 128
      %474 = vxpose.xlu0.b32.cont [2/16] %v442, 128
      %475 = vxpose.xlu0.b32.cont [3/16] %v443, 128
      %476 = vxpose.xlu0.b32.cont [4/16] %v444, 128
      %477 = vxpose.xlu0.b32.cont [5/16] %v445, 128
      %478 = vxpose.xlu0.b32.cont [6/16] %v446, 128
      %479 = vxpose.xlu0.b32.cont [7/16] %v447, 128
      %480 = vxpose.xlu0.b32.cont [8/16] %v448, 128
      %481 = vxpose.xlu0.b32.cont [9/16] %v449, 128
      %482 = vxpose.xlu0.b32.cont [10/16] %v450, 128
      %483 = vxpose.xlu0.b32.cont [11/16] %v451, 128
      %484 = vxpose.xlu0.b32.cont [12/16] %v452, 128
      %485 = vxpose.xlu0.b32.cont [13/16] %v453, 128
      %486 = vxpose.xlu0.b32.cont [14/16] %v454, 128
      %487 = vxpose.xlu0.b32.cont [15/16] %v455, 128
      %488 = vxpose.xlu0.b32.end [16/16] %v456, 128
      %v489 = vpop.trf.xlu0
      %v490 = vpop.trf.xlu0
      %v491 = vpop.trf.xlu0
      %v492 = vpop.trf.xlu0
      %v493 = vpop.trf.xlu0
      %v494 = vpop.trf.xlu0
      %v495 = vpop.trf.xlu0
      %v496 = vpop.trf.xlu0
      %v497 = vpop.trf.xlu0
      %v498 = vpop.trf.xlu0
      %v499 = vpop.trf.xlu0
      %v500 = vpop.trf.xlu0
      %v501 = vpop.trf.xlu0
      %v502 = vpop.trf.xlu0
      %v503 = vpop.trf.xlu0
      %v504 = vpop.trf.xlu0
      %505 = vxpose.xlu0.b32.start [1/16] %v457, 128
      %506 = vxpose.xlu0.b32.cont [2/16] %v458, 128
      %507 = vxpose.xlu0.b32.cont [3/16] %v459, 128
      %508 = vxpose.xlu0.b32.cont [4/16] %v460, 128
      %509 = vxpose.xlu0.b32.cont [5/16] %v461, 128
      %510 = vxpose.xlu0.b32.cont [6/16] %v462, 128
      %511 = vxpose.xlu0.b32.cont [7/16] %v463, 128
      %512 = vxpose.xlu0.b32.cont [8/16] %v464, 128
      %513 = vxpose.xlu0.b32.cont [9/16] %v465, 128
      %514 = vxpose.xlu0.b32.cont [10/16] %v466, 128
      %515 = vxpose.xlu0.b32.cont [11/16] %v467, 128
      %516 = vxpose.xlu0.b32.cont [12/16] %v468, 128
      %517 = vxpose.xlu0.b32.cont [13/16] %v469, 128
      %518 = vxpose.xlu0.b32.cont [14/16] %v470, 128
      %519 = vxpose.xlu0.b32.cont [15/16] %v471, 128
      %520 = vxpose.xlu0.b32.end [16/16] %v472, 128
      %v521 = vpop.trf.xlu0
      %v522 = vpop.trf.xlu0
      %v523 = vpop.trf.xlu0
      %v524 = vpop.trf.xlu0
      %v525 = vpop.trf.xlu0
      %v526 = vpop.trf.xlu0
      %v527 = vpop.trf.xlu0
      %v528 = vpop.trf.xlu0
      %v529 = vpop.trf.xlu0
      %v530 = vpop.trf.xlu0
      %v531 = vpop.trf.xlu0
      %v532 = vpop.trf.xlu0
      %v533 = vpop.trf.xlu0
      %v534 = vpop.trf.xlu0
      %v535 = vpop.trf.xlu0
      %v536 = vpop.trf.xlu0
      %537 = vst [vmem:[%s233] sm:$0xff] %v489
      %538 = vst [vmem:[%s233 + $0x8] sm:$0xff] %v521
      %539 = vst [vmem:[%s233 + $0x10] sm:$0xff] %v490
      %540 = vst [vmem:[%s233 + $0x18] sm:$0xff] %v522
      %541 = vst [vmem:[%s233 + $0x20] sm:$0xff] %v491
      %542 = vst [vmem:[%s233 + $0x28] sm:$0xff] %v523
      %543 = vst [vmem:[%s233 + $0x30] sm:$0xff] %v492
      %544 = vst [vmem:[%s233 + $0x38] sm:$0xff] %v524
      %545 = vst [vmem:[%s233 + $0x40] sm:$0xff] %v493
      %546 = vst [vmem:[%s233 + $0x48] sm:$0xff] %v525
      %547 = vst [vmem:[%s233 + $0x50] sm:$0xff] %v494
      %548 = vst [vmem:[%s233 + $0x58] sm:$0xff] %v526
      %549 = vst [vmem:[%s233 + $0x60] sm:$0xff] %v495
      %550 = vst [vmem:[%s233 + $0x68] sm:$0xff] %v527
      %551 = vst [vmem:[%s233 + $0x70] sm:$0xff] %v496
      %552 = vst [vmem:[%s233 + $0x78] sm:$0xff] %v528
      %553 = vst [vmem:[%s233 + $0x80] sm:$0xff] %v497
      %554 = vst [vmem:[%s233 + $0x88] sm:$0xff] %v529
      %555 = vst [vmem:[%s233 + $0x90] sm:$0xff] %v498
      %556 = vst [vmem:[%s233 + $0x98] sm:$0xff] %v530
      %557 = vst [vmem:[%s233 + $0xa0] sm:$0xff] %v499
      %558 = vst [vmem:[%s233 + $0xa8] sm:$0xff] %v531
      %559 = vst [vmem:[%s233 + $0xb0] sm:$0xff] %v500
      %560 = vst [vmem:[%s233 + $0xb8] sm:$0xff] %v532
      %561 = vst [vmem:[%s233 + $0xc0] sm:$0xff] %v501
      %562 = vst [vmem:[%s233 + $0xc8] sm:$0xff] %v533
      %563 = vst [vmem:[%s233 + $0xd0] sm:$0xff] %v502
      %564 = vst [vmem:[%s233 + $0xd8] sm:$0xff] %v534
      %565 = vst [vmem:[%s233 + $0xe0] sm:$0xff] %v503
      %566 = vst [vmem:[%s233 + $0xe8] sm:$0xff] %v535
      %567 = vst [vmem:[%s233 + $0xf0] sm:$0xff] %v504
      %568 = vst [vmem:[%s233 + $0xf8] sm:$0xff] %v536
      %s569 = smul.u32 16, %s19
      %p570 = scmp.lt.s32.totalorder %s18, 1
      %s571 = scalar_select %p570, %s18, 1
      %p572 = scmp.lt.s32.totalorder %s569, 15
      %s573 = scalar_select %p572, %s569, 15
      %s574 = smul.addr %s573, 2
      %s575 = smul.addr %s571, 32
      %s576 = sadd.s32 %s574, %s575
      %s577 = smul.addr %s576, 8
      %s578 = scalar_lea.vmem %s3, %s577
      // Predicated region
      $region33: #{cnn_block_forward.3} parent=31 // pred_check
        %p579 = pneg %p126
      $region34: #{cnn_block_forward.3} parent=31 // pred_check_branch
        %581 = sbr.rel (%p579) target = $region36
      $region35: #{cnn_block_forward.3} parent=31 // pred_region
        %s582 = smul.u32 16, %s19
      $region36: #{cnn_block_forward.3} parent=31 // pred_fallthru
        _
    $region32: #{cnn_block_forward.3} parent=5 // pred_fallthru
      _
    %p583 = scmp.le.s32.totalorder 2, %s9
    // Predicated region
    $region37: #{cnn_block_forward.3} parent=5 // pred_check
      %p584 = pneg %p583
    $region38: #{cnn_block_forward.3} parent=5 // pred_check_branch
      %586 = sbr.rel (%p584) target = $region40
    $region39: #{cnn_block_forward.3} parent=5 // pred_region
      %s587 = ssub.s32 %s9, 2
      // Predicated region
      $region41: #{cnn_block_forward.3} parent=39 // pred_check
        %p588 = pneg %p132
      $region42: #{cnn_block_forward.3} parent=39 // pred_check_branch
        %590 = sbr.rel (%p588) target = $region44
      $region43: #{cnn_block_forward.3} parent=39 // pred_region
        %s591 = smul.u32 16, %s21
        %p592 = scmp.lt.s32.totalorder %s20, 1
        %s593 = scalar_select %p592, %s20, 1
        %p594 = scmp.lt.s32.totalorder %s591, 15
        %s595 = scalar_select %p594, %s591, 15
        %s596 = smul.addr %s595, 2
        %s597 = smul.addr %s593, 32
        %s598 = sadd.s32 %s596, %s597
        %s599 = smul.addr %s598, 8
        %s600 = scalar_lea.vmem %s3, %s599
      $region44: #{cnn_block_forward.3} parent=39 // pred_fallthru
        _
    $region40: #{cnn_block_forward.3} parent=5 // pred_fallthru
      _
  $region6: #{cnn_block_forward.3} parent=0 // loop_footer
    %s13 = sadd.s32 1, %s9
  $region7: #{cnn_block_forward.3} parent=0 // loop_footer_branch
    %8 = sbr.rel target = $region3
  $region8: #{cnn_block_forward.3} parent=0 // loop_exit
    _

// kernel: cnn_block_forward.2
$region0: #{cnn_block_forward.2}
  #allocation0 [shape = 'u32[]', space=smem, size = 0x4, offset = 0x4, fixed_abs, tag = 'smem constant byte address 0x4 - core index']
  #allocation1 [shape = 'u32[144,128]{1,0:T(1,128)}', space=vmem, size = 0x12000, scoped, tag = 'internal scratch']
  #allocation2 [shape = 'f32[1,128]{1,0:T(1,128)}', space=vmem, size = 0x200, scoped, tag = 'scratch operand']
  #allocation3 [shape = 'f32[1,128]{1,0:T(1,128)}', space=vmem, size = 0x200, scoped, tag = 'scratch operand']
  %s0 = inlined_call_operand.vmem [shape: bf16[2,18,18,4], index: 0, kind: input, shape index: {}]
  %s1 = inlined_call_operand.vmem [shape: bf16[9,4,128], index: 1, kind: input, shape index: {}]
  %s2 = inlined_call_operand.vmem [shape: f32[1,128], index: 2, kind: input, shape index: {}]
  %s3 = inlined_call_operand.vmem [shape: f32[1,128], index: 3, kind: input, shape index: {}]
  %s4 = inlined_call_operand.vmem [shape: bf16[2,256,128], index: 4, kind: output, shape index: {0}]
  %s5 = inlined_call_operand.vmem [shape: f32[1,128], index: 5, kind: output, shape index: {1}]
  %s6 = inlined_call_operand.vmem [shape: f32[1,128], index: 6, kind: output, shape index: {2}]
  %7 = xla_tuple %s4, %s5, %s6
  %s8 = sld [smem:[#allocation0]]
  $region73: #{cnn_block_forward.2} parent=0
    _
  %s10 = ssub.s32 1, %s8
  %s11 = scalar_select 0, %s10, %s8
  loop: start=0, step=1, limit=4
  $region2: #{cnn_block_forward.2} parent=0 // loop_pre_header
    _
  $region3: #{cnn_block_forward.2} parent=0 // loop_header
    %s13 = sphi 0, %s17
    %p14 = scmp.ge.s32.totalorder %s13, 4
    %s20 = sphi 0, %s32
    %s21 = sphi 0, %s28
    %s22 = sphi 0, %s20
    %s23 = sphi 0, %s21
    %s24 = sphi 0, %s22
    %s25 = sphi 0, %s23
    %s35 = sphi 0, %s37
    %s38 = sphi 0, %s35
    %s39 = sphi 0, %s38
    %s55 = sphi 0, %s39
    %s61 = sphi 0, %s63
    %s64 = sphi 0, %s61
    %s65 = sphi 0, %s64
    %s81 = sphi 0, %s65
    %s87 = sphi 0, %s89
    %s90 = sphi 0, %s87
    %s91 = sphi 0, %s90
    %s107 = sphi 0, %s91
    %s113 = sphi 0, %s115
    %s116 = sphi 0, %s113
    %s117 = sphi 0, %s116
    %s133 = sphi 0, %s117
    %s141 = sphi 0, %s143
    %s144 = sphi 0, %s141
    %s145 = sphi 0, %s144
    %s161 = sphi 0, %s145
    %s167 = sphi 0, %s169
    %s170 = sphi 0, %s167
    %s171 = sphi 0, %s170
    %s187 = sphi 0, %s171
    %s193 = sphi 0, %s195
    %s196 = sphi 0, %s193
    %s197 = sphi 0, %s196
    %s213 = sphi 0, %s197
  $region4: #{cnn_block_forward.2} parent=0 // loop_header_branch
    %16 = sbr.rel (%p14) target = $region8
  $region5: #{cnn_block_forward.2} parent=0 // loop_body
    %s18 = ssub.s32 %s13, 1
    %s19 = ssub.s32 %s13, 2
    %s26 = sadd.s32 1, %s21
    %p27 = scmp.ge.s32.totalorder %s26, 2
    %s28 = scalar_select %p27, 0, %s26
    %s29 = sadd.s32 1, %s20
    %s30 = scalar_select %p27, %s29, %s20
    %p31 = scmp.ge.s32.totalorder %s30, 1
    %s32 = scalar_select %p31, 0, %s30
    %s33 = ssub.s32 %s21, %s28
    %p34 = scmp.eq.s32.totalorder %s33, 0
    %s36 = sadd.s32 %s35, 1
    %s37 = scalar_select %p34, %s35, %s36
    %p40 = pneg %p34
    %p41 = scmp.eq.s32.totalorder %s13, 1
    %p42 = por %p40, %p41
    %p43 = scmp.ne.s32.totalorder %s35, %s38
    %p44 = scmp.eq.s32.totalorder %s13, 0
    %p45 = por %p43, %p44
    %p46 = scmp.ne.s32.totalorder %s35, %s38
    %p47 = scmp.eq.s32.totalorder %s18, 1
    %p48 = por %p46, %p47
    %p49 = scmp.ne.s32.totalorder %s38, %s39
    %p50 = scmp.eq.s32.totalorder %s18, 0
    %p51 = por %p49, %p50
    %p52 = scmp.ne.s32.totalorder %s38, %s39
    %p53 = scmp.eq.s32.totalorder %s19, 1
    %p54 = por %p52, %p53
    %p56 = scmp.ne.s32.totalorder %s39, %s55
    %p57 = scmp.eq.s32.totalorder %s19, 0
    %p58 = por %p56, %p57
    %s59 = ssub.s32 %s20, %s32
    %p60 = scmp.eq.s32.totalorder %s59, 0
    %s62 = sadd.s32 %s61, 1
    %s63 = scalar_select %p60, %s61, %s62
    %p66 = pneg %p60
    %p67 = scmp.eq.s32.totalorder %s13, 1
    %p68 = por %p66, %p67
    %p69 = scmp.ne.s32.totalorder %s61, %s64
    %p70 = scmp.eq.s32.totalorder %s13, 0
    %p71 = por %p69, %p70
    %p72 = scmp.ne.s32.totalorder %s61, %s64
    %p73 = scmp.eq.s32.totalorder %s18, 1
    %p74 = por %p72, %p73
    %p75 = scmp.ne.s32.totalorder %s64, %s65
    %p76 = scmp.eq.s32.totalorder %s18, 0
    %p77 = por %p75, %p76
    %p78 = scmp.ne.s32.totalorder %s64, %s65
    %p79 = scmp.eq.s32.totalorder %s19, 1
    %p80 = por %p78, %p79
    %p82 = scmp.ne.s32.totalorder %s65, %s81
    %p83 = scmp.eq.s32.totalorder %s19, 0
    %p84 = por %p82, %p83
    %s85 = ssub.s32 %s20, %s32
    %p86 = scmp.eq.s32.totalorder %s85, 0
    %s88 = sadd.s32 %s87, 1
    %s89 = scalar_select %p86, %s87, %s88
    %p92 = pneg %p86
    %p93 = scmp.eq.s32.totalorder %s13, 1
    %p94 = por %p92, %p93
    %p95 = scmp.ne.s32.totalorder %s87, %s90
    %p96 = scmp.eq.s32.totalorder %s13, 0
    %p97 = por %p95, %p96
    %p98 = scmp.ne.s32.totalorder %s87, %s90
    %p99 = scmp.eq.s32.totalorder %s18, 1
    %p100 = por %p98, %p99
    %p101 = scmp.ne.s32.totalorder %s90, %s91
    %p102 = scmp.eq.s32.totalorder %s18, 0
    %p103 = por %p101, %p102
    %p104 = scmp.ne.s32.totalorder %s90, %s91
    %p105 = scmp.eq.s32.totalorder %s19, 1
    %p106 = por %p104, %p105
    %p108 = scmp.ne.s32.totalorder %s91, %s107
    %p109 = scmp.eq.s32.totalorder %s19, 0
    %p110 = por %p108, %p109
    %s111 = ssub.s32 %s20, %s32
    %p112 = scmp.eq.s32.totalorder %s111, 0
    %s114 = sadd.s32 %s113, 1
    %s115 = scalar_select %p112, %s113, %s114
    %p118 = pneg %p112
    %p119 = scmp.eq.s32.totalorder %s13, 1
    %p120 = por %p118, %p119
    %p121 = scmp.ne.s32.totalorder %s113, %s116
    %p122 = scmp.eq.s32.totalorder %s13, 0
    %p123 = por %p121, %p122
    %p124 = scmp.ne.s32.totalorder %s113, %s116
    %p125 = scmp.eq.s32.totalorder %s18, 1
    %p126 = por %p124, %p125
    %p127 = scmp.ne.s32.totalorder %s116, %s117
    %p128 = scmp.eq.s32.totalorder %s18, 0
    %p129 = por %p127, %p128
    %p130 = scmp.ne.s32.totalorder %s116, %s117
    %p131 = scmp.eq.s32.totalorder %s19, 1
    %p132 = por %p130, %p131
    %p134 = scmp.ne.s32.totalorder %s117, %s133
    %p135 = scmp.eq.s32.totalorder %s19, 0
    %p136 = por %p134, %p135
    %s137 = ssub.s32 %s21, %s28
    %s138 = ssub.s32 %s20, %s32
    %s139 = sor.u32 %s137, %s138
    %p140 = scmp.eq.s32.totalorder %s139, 0
    %s142 = sadd.s32 %s141, 1
    %s143 = scalar_select %p140, %s141, %s142
    %p146 = pneg %p140
    %p147 = scmp.eq.s32.totalorder %s13, 1
    %p148 = por %p146, %p147
    %p149 = scmp.ne.s32.totalorder %s141, %s144
    %p150 = scmp.eq.s32.totalorder %s13, 0
    %p151 = por %p149, %p150
    %p152 = scmp.ne.s32.totalorder %s141, %s144
    %p153 = scmp.eq.s32.totalorder %s18, 1
    %p154 = por %p152, %p153
    %p155 = scmp.ne.s32.totalorder %s144, %s145
    %p156 = scmp.eq.s32.totalorder %s18, 0
    %p157 = por %p155, %p156
    %p158 = scmp.ne.s32.totalorder %s144, %s145
    %p159 = scmp.eq.s32.totalorder %s19, 1
    %p160 = por %p158, %p159
    %p162 = scmp.ne.s32.totalorder %s145, %s161
    %p163 = scmp.eq.s32.totalorder %s19, 0
    %p164 = por %p162, %p163
    %s165 = ssub.s32 %s20, %s32
    %p166 = scmp.eq.s32.totalorder %s165, 0
    %s168 = sadd.s32 %s167, 1
    %s169 = scalar_select %p166, %s167, %s168
    %p172 = pneg %p166
    %p173 = scmp.eq.s32.totalorder %s13, 1
    %p174 = por %p172, %p173
    %p175 = scmp.ne.s32.totalorder %s167, %s170
    %p176 = scmp.eq.s32.totalorder %s13, 0
    %p177 = por %p175, %p176
    %p178 = scmp.ne.s32.totalorder %s167, %s170
    %p179 = scmp.eq.s32.totalorder %s18, 1
    %p180 = por %p178, %p179
    %p181 = scmp.ne.s32.totalorder %s170, %s171
    %p182 = scmp.eq.s32.totalorder %s18, 0
    %p183 = por %p181, %p182
    %p184 = scmp.ne.s32.totalorder %s170, %s171
    %p185 = scmp.eq.s32.totalorder %s19, 1
    %p186 = por %p184, %p185
    %p188 = scmp.ne.s32.totalorder %s171, %s187
    %p189 = scmp.eq.s32.totalorder %s19, 0
    %p190 = por %p188, %p189
    %s191 = ssub.s32 %s20, %s32
    %p192 = scmp.eq.s32.totalorder %s191, 0
    %s194 = sadd.s32 %s193, 1
    %s195 = scalar_select %p192, %s193, %s194
    %p198 = pneg %p192
    %p199 = scmp.eq.s32.totalorder %s13, 1
    %p200 = por %p198, %p199
    %p201 = scmp.ne.s32.totalorder %s193, %s196
    %p202 = scmp.eq.s32.totalorder %s13, 0
    %p203 = por %p201, %p202
    %p204 = scmp.ne.s32.totalorder %s193, %s196
    %p205 = scmp.eq.s32.totalorder %s18, 1
    %p206 = por %p204, %p205
    %p207 = scmp.ne.s32.totalorder %s196, %s197
    %p208 = scmp.eq.s32.totalorder %s18, 0
    %p209 = por %p207, %p208
    %p210 = scmp.ne.s32.totalorder %s196, %s197
    %p211 = scmp.eq.s32.totalorder %s19, 1
    %p212 = por %p210, %p211
    %p214 = scmp.ne.s32.totalorder %s197, %s213
    %p215 = scmp.eq.s32.totalorder %s19, 0
    %p216 = por %p214, %p215
    %p217 = scmp.le.s32.totalorder 1, %s13
    %p218 = scmp.lt.s32.totalorder %s13, 3
    %p219 = pnand %p217, %p218
    %p220 = pneg %p219
    // Predicated region
    $region9: #{cnn_block_forward.2} parent=5 // pred_check
      _
    $region10: #{cnn_block_forward.2} parent=5 // pred_check_branch
      %222 = sbr.rel (%p219) target = $region12
    $region11: #{cnn_block_forward.2} parent=5 // pred_region
      %s223 = ssub.s32 %s13, 1
      // Predicated region
      $region13: #{cnn_block_forward.2} parent=11 // pred_check
        %p224 = pneg %p77
      $region14: #{cnn_block_forward.2} parent=11 // pred_check_branch
        %226 = sbr.rel (%p224) target = $region16
      $region15: #{cnn_block_forward.2} parent=11 // pred_region
        %p227 = scmp.lt.s32.totalorder %s22, 0
        %s228 = scalar_select %p227, %s22, 0
        %s229 = smul.addr %s228, 2
        %s230 = scalar_lea.vmem %s1, %s229
      $region16: #{cnn_block_forward.2} parent=11 // pred_fallthru
        _
      // Predicated region
      $region17: #{cnn_block_forward.2} parent=11 // pred_check
        %p231 = pneg %p103
      $region18: #{cnn_block_forward.2} parent=11 // pred_check_branch
        %233 = sbr.rel (%p231) target = $region20
      $region19: #{cnn_block_forward.2} parent=11 // pred_region
        %p234 = scmp.lt.s32.totalorder %s22, 0
        %s235 = scalar_select %p234, %s22, 0
        %s236 = scalar_lea.vmem %s2, %s235
      $region20: #{cnn_block_forward.2} parent=11 // pred_fallthru
        _
      // Predicated region
      $region21: #{cnn_block_forward.2} parent=11 // pred_check
        %p237 = pneg %p129
      $region22: #{cnn_block_forward.2} parent=11 // pred_check_branch
        %239 = sbr.rel (%p237) target = $region24
      $region23: #{cnn_block_forward.2} parent=11 // pred_region
        %p240 = scmp.lt.s32.totalorder %s22, 0
        %s241 = scalar_select %p240, %s22, 0
        %s242 = scalar_lea.vmem %s3, %s241
      $region24: #{cnn_block_forward.2} parent=11 // pred_fallthru
        _
    $region12: #{cnn_block_forward.2} parent=5 // pred_fallthru
      _
    %p243 = scmp.lt.s32.totalorder %s13, 2
    // Predicated region
    $region25: #{cnn_block_forward.2} parent=5 // pred_check
      %p244 = pneg %p243
    $region26: #{cnn_block_forward.2} parent=5 // pred_check_branch
      %246 = sbr.rel (%p244) target = $region28
    $region27: #{cnn_block_forward.2} parent=5 // pred_region
      // Predicated region
      $region29: #{cnn_block_forward.2} parent=27 // pred_check
        %p247 = pneg %p45
      $region30: #{cnn_block_forward.2} parent=27 // pred_check_branch
        %249 = sbr.rel (%p247) target = $region32
      $region31: #{cnn_block_forward.2} parent=27 // pred_region
        %p250 = scmp.lt.s32.totalorder %s21, 1
        %s251 = scalar_select %p250, %s21, 1
        %s252 = smul.addr %s251, 54
        %s253 = smul.addr %s252, 4
        %s254 = scalar_lea.vmem %s0, %s253
      $region32: #{cnn_block_forward.2} parent=27 // pred_fallthru
        _
    $region28: #{cnn_block_forward.2} parent=5 // pred_fallthru
      _
    %p255 = scmp.le.s32.totalorder 1, %s13
    %p256 = scmp.lt.s32.totalorder %s13, 3
    %p257 = pnand %p255, %p256
    %p258 = pneg %p257
    // Predicated region
    $region33: #{cnn_block_forward.2} parent=5 // pred_check
      _
    $region34: #{cnn_block_forward.2} parent=5 // pred_check_branch
      %260 = sbr.rel (%p257) target = $region36
    $region35: #{cnn_block_forward.2} parent=5 // pred_region
      %s261 = ssub.s32 %s13, 1
      %p262 = scmp.lt.s32.totalorder %s23, 1
      %s263 = scalar_select %p262, %s23, 1
      %s264 = smul.addr %s263, 54
      %s265 = smul.addr %s264, 4
      %s266 = scalar_lea.vmem %s0, %s265
      %p267 = pneg %p51
      %p268 = pneg %p48
      %p269 = scmp.lt.s32.totalorder %s22, 0
      %s270 = scalar_select %p269, %s22, 0
      %s271 = smul.addr %s270, 2
      %s272 = scalar_lea.vmem %s1, %s271
      %p273 = pneg %p77
      %p274 = pneg %p74
      %p275 = scmp.lt.s32.totalorder %s22, 0
      %s276 = scalar_select %p275, %s22, 0
      %s277 = scalar_lea.vmem %s2, %s276
      %p278 = pneg %p103
      %p279 = pneg %p100
      %p280 = scmp.lt.s32.totalorder %s22, 0
      %s281 = scalar_select %p280, %s22, 0
      %s282 = scalar_lea.vmem %s3, %s281
      %p283 = pneg %p129
      %p284 = pneg %p126
      %p285 = pneg %p157
      %p286 = pneg %p154
      %p287 = scmp.lt.s32.totalorder %s23, 1
      %s288 = scalar_select %p287, %s23, 1
      %p289 = scmp.lt.s32.totalorder %s22, 0
      %s290 = scalar_select %p289, %s22, 0
      %s291 = smul.addr %s288, 32
      %s292 = sadd.s32 %s290, %s291
      %s293 = smul.addr %s292, 4
      %s294 = scalar_lea.vmem %s4, %s293
      %p295 = pneg %p183
      %p296 = pneg %p180
      %p297 = scmp.lt.s32.totalorder %s22, 0
      %s298 = scalar_select %p297, %s22, 0
      %s299 = scalar_lea.vmem %s5, %s298
      %p300 = pneg %p209
      %p301 = pneg %p206
      %p302 = scmp.lt.s32.totalorder %s22, 0
      %s303 = scalar_select %p302, %s22, 0
      %s304 = scalar_lea.vmem %s6, %s303
      %p305 = scmp.lt.s32.totalorder %s23, 1
      %s306 = scalar_select %p305, %s23, 1
      %s307 = smul.addr %s306, 54
      %s308 = smul.addr %s307, 4
      %s309 = scalar_lea.vmem %s0, %s308
      %p310 = scmp.lt.s32.totalorder %s22, 0
      %s311 = scalar_select %p310, %s22, 0
      %s312 = smul.addr %s311, 2
      %s313 = scalar_lea.vmem %s1, %s312
      %p314 = scmp.lt.s32.totalorder %s22, 0
      %s315 = scalar_select %p314, %s22, 0
      %s316 = scalar_lea.vmem %s2, %s315
      %p317 = scmp.lt.s32.totalorder %s22, 0
      %s318 = scalar_select %p317, %s22, 0
      %s319 = scalar_lea.vmem %s3, %s318
      %p320 = scmp.lt.s32.totalorder %s23, 1
      %s321 = scalar_select %p320, %s23, 1
      %p322 = scmp.lt.s32.totalorder %s22, 0
      %s323 = scalar_select %p322, %s22, 0
      %s324 = smul.addr %s321, 32
      %s325 = sadd.s32 %s323, %s324
      %s326 = smul.addr %s325, 4
      %s327 = scalar_lea.vmem %s4, %s326
      %p328 = scmp.lt.s32.totalorder %s22, 0
      %s329 = scalar_select %p328, %s22, 0
      %s330 = scalar_lea.vmem %s5, %s329
      %p331 = scmp.lt.s32.totalorder %s22, 0
      %s332 = scalar_select %p331, %s22, 0
      %s333 = scalar_lea.vmem %s6, %s332
      %p335 = scmp.eq.s32.totalorder %s23, 0
      // Predicated region
      $region37: #{cnn_block_forward.2} parent=35 // pred_check
        %p336 = pneg %p335
      $region38: #{cnn_block_forward.2} parent=35 // pred_check_branch
        %338 = sbr.rel (%p336) target = $region40
      $region39: #{cnn_block_forward.2} parent=35 // pred_region
        %339 = vst [vmem:[#allocation2] sm:$0x1] 0.0
        %340 = vst [vmem:[#allocation3] sm:$0x1] 0.0
      $region40: #{cnn_block_forward.2} parent=35 // pred_fallthru
        _
      %v341 = vld [vmem:[%s309] sm:$0xf]
      %v342 = vld [vmem:[%s309 + $0x4] sm:$0xf]
      %v343 = vld [vmem:[%s309 + $0x8] sm:$0x1]
      %v344 = vld [vmem:[%s309 + $0xc] sm:$0xf]
      %v345 = vld [vmem:[%s309 + $0x10] sm:$0xf]
      %v346 = vld [vmem:[%s309 + $0x14] sm:$0x1]
      %v347 = vld [vmem:[%s309 + $0x18] sm:$0xf]
      %v348 = vld [vmem:[%s309 + $0x1c] sm:$0xf]
      %v349 = vld [vmem:[%s309 + $0x20] sm:$0x1]
      %v350 = vld [vmem:[%s309 + $0x24] sm:$0xf]
      %v351 = vld [vmem:[%s309 + $0x28] sm:$0xf]
      %v352 = vld [vmem:[%s309 + $0x2c] sm:$0x1]
      %v353 = vld [vmem:[%s309 + $0x30] sm:$0xf]
      %v354 = vld [vmem:[%s309 + $0x34] sm:$0xf]
      %v355 = vld [vmem:[%s309 + $0x38] sm:$0x1]
      %v356 = vld [vmem:[%s309 + $0x3c] sm:$0xf]
      %v357 = vld [vmem:[%s309 + $0x40] sm:$0xf]
      %v358 = vld [vmem:[%s309 + $0x44] sm:$0x1]
      %v359 = vld [vmem:[%s309 + $0x48] sm:$0xf]
      %v360 = vld [vmem:[%s309 + $0x4c] sm:$0xf]
      %v361 = vld [vmem:[%s309 + $0x50] sm:$0x1]
      %v362 = vld [vmem:[%s309 + $0x54] sm:$0xf]
      %v363 = vld [vmem:[%s309 + $0x58] sm:$0xf]
      %v364 = vld [vmem:[%s309 + $0x5c] sm:$0x1]
      %v365 = vld [vmem:[%s309 + $0x60] sm:$0xf]
      %v366 = vld [vmem:[%s309 + $0x64] sm:$0xf]
      %v367 = vld [vmem:[%s309 + $0x68] sm:$0x1]
      %v368 = vld [vmem:[%s309 + $0x6c] sm:$0xf]
      %v369 = vld [vmem:[%s309 + $0x70] sm:$0xf]
      %v370 = vld [vmem:[%s309 + $0x74] sm:$0x1]
      %v371 = vld [vmem:[%s309 + $0x78] sm:$0xf]
      %v372 = vld [vmem:[%s309 + $0x7c] sm:$0xf]
      %v373 = vld [vmem:[%s309 + $0x80] sm:$0x1]
      %v374 = vld [vmem:[%s309 + $0x84] sm:$0xf]
      %v375 = vld [vmem:[%s309 + $0x88] sm:$0xf]
      %v376 = vld [vmem:[%s309 + $0x8c] sm:$0x1]
      %v377 = vld [vmem:[%s309 + $0x90] sm:$0xf]
      %v378 = vld [vmem:[%s309 + $0x94] sm:$0xf]
      %v379 = vld [vmem:[%s309 + $0x98] sm:$0x1]
      %v380 = vld [vmem:[%s309 + $0x9c] sm:$0xf]
      %v381 = vld [vmem:[%s309 + $0xa0] sm:$0xf]
      %v382 = vld [vmem:[%s309 + $0xa4] sm:$0x1]
      %v383 = vld [vmem:[%s309 + $0xa8] sm:$0xf]
      %v384 = vld [vmem:[%s309 + $0xac] sm:$0xf]
      %v385 = vld [vmem:[%s309 + $0xb0] sm:$0x1]
      %v386 = vld [vmem:[%s309 + $0xb4] sm:$0xf]
      %v387 = vld [vmem:[%s309 + $0xb8] sm:$0xf]
      %v388 = vld [vmem:[%s309 + $0xbc] sm:$0x1]
      %v389 = vld [vmem:[%s309 + $0xc0] sm:$0xf]
      %v390 = vld [vmem:[%s309 + $0xc4] sm:$0xf]
      %v391 = vld [vmem:[%s309 + $0xc8] sm:$0x1]
      %v392 = vld [vmem:[%s309 + $0xcc] sm:$0xf]
      %v393 = vld [vmem:[%s309 + $0xd0] sm:$0xf]
      %v394 = vld [vmem:[%s309 + $0xd4] sm:$0x1]
      %v395 = vld [vmem:[%s313] sm:$0x3]
      %vm396 = vsmask.f32 3328
      %vm397 = vsmask.f32 7440
      %vm398 = vmor %vm396, %vm397
      %v400 = vshrl.u32 %v341, 16
      %v402 = vrot.slane %v400, 4
      %v403 = vshll.u32 %v341, 16
      %v405 = vrot.slane %v403, 5
      %v406 = vor.u32 %v402, %v405
      %v407 = vrot.slane %v406, 4
      %v409 = vshll.u32 %v342, 16
      %v411 = vrot.slane %v409, 5
      %v412 = vsel %vm398, %v407, %v411
      %v413 = vshrl.u32 %v342, 16
      %v415 = vrot.slane %v413, 4
      %v416 = vor.u32 %v415, %v411
      %v417 = vrot.slane %v416, 4
      %v419 = vshll.u32 %v343, 16
      %v421 = vrot.slane %v419, 5
      %v422 = vsel %vm398, %v417, %v421
      %v424 = vshrl.u32 %v344, 16
      %v426 = vrot.slane %v424, 4
      %v427 = vshll.u32 %v344, 16
      %v429 = vrot.slane %v427, 5
      %v430 = vor.u32 %v426, %v429
      %v431 = vrot.slane %v430, 4
      %v433 = vshll.u32 %v345, 16
      %v435 = vrot.slane %v433, 5
      %v436 = vsel %vm398, %v431, %v435
      %v437 = vshrl.u32 %v345, 16
      %v439 = vrot.slane %v437, 4
      %v440 = vor.u32 %v439, %v435
      %v441 = vrot.slane %v440, 4
      %v443 = vshll.u32 %v346, 16
      %v445 = vrot.slane %v443, 5
      %v446 = vsel %vm398, %v441, %v445
      %v448 = vshrl.u32 %v347, 16
      %v450 = vrot.slane %v448, 4
      %v451 = vshll.u32 %v347, 16
      %v453 = vrot.slane %v451, 5
      %v454 = vor.u32 %v450, %v453
      %v455 = vrot.slane %v454, 4
      %v457 = vshll.u32 %v348, 16
      %v459 = vrot.slane %v457, 5
      %v460 = vsel %vm398, %v455, %v459
      %v461 = vshrl.u32 %v348, 16
      %v463 = vrot.slane %v461, 4
      %v464 = vor.u32 %v463, %v459
      %v465 = vrot.slane %v464, 4
      %v467 = vshll.u32 %v349, 16
      %v469 = vrot.slane %v467, 5
      %v470 = vsel %vm398, %v465, %v469
      %v472 = vshrl.u32 %v350, 16
      %v474 = vrot.slane %v472, 4
      %v475 = vshll.u32 %v350, 16
      %v477 = vrot.slane %v475, 5
      %v478 = vor.u32 %v474, %v477
      %v479 = vrot.slane %v478, 4
      %v481 = vshll.u32 %v351, 16
      %v483 = vrot.slane %v481, 5
      %v484 = vsel %vm398, %v479, %v483
      %v485 = vshrl.u32 %v351, 16
      %v487 = vrot.slane %v485, 4
      %v488 = vor.u32 %v487, %v483
      %v489 = vrot.slane %v488, 4
      %v491 = vshll.u32 %v352, 16
      %v493 = vrot.slane %v491, 5
      %v494 = vsel %vm398, %v489, %v493
      %v496 = vshrl.u32 %v353, 16
      %v498 = vrot.slane %v496, 4
      %v499 = vshll.u32 %v353, 16
      %v501 = vrot.slane %v499, 5
      %v502 = vor.u32 %v498, %v501
      %v503 = vrot.slane %v502, 4
      %v505 = vshll.u32 %v354, 16
      %v507 = vrot.slane %v505, 5
      %v508 = vsel %vm398, %v503, %v507
      %v509 = vshrl.u32 %v354, 16
      %v511 = vrot.slane %v509, 4
      %v512 = vor.u32 %v511, %v507
      %v513 = vrot.slane %v512, 4
      %v515 = vshll.u32 %v355, 16
      %v517 = vrot.slane %v515, 5
      %v518 = vsel %vm398, %v513, %v517
      %v520 = vshrl.u32 %v356, 16
      %v522 = vrot.slane %v520, 4
      %v523 = vshll.u32 %v356, 16
      %v525 = vrot.slane %v523, 5
      %v526 = vor.u32 %v522, %v525
      %v527 = vrot.slane %v526, 4
      %v529 = vshll.u32 %v357, 16
      %v531 = vrot.slane %v529, 5
      %v532 = vsel %vm398, %v527, %v531
      %v533 = vshrl.u32 %v357, 16
      %v535 = vrot.slane %v533, 4
      %v536 = vor.u32 %v535, %v531
      %v537 = vrot.slane %v536, 4
      %v539 = vshll.u32 %v358, 16
      %v541 = vrot.slane %v539, 5
      %v542 = vsel %vm398, %v537, %v541
      %v544 = vshrl.u32 %v359, 16
      %v546 = vrot.slane %v544, 4
      %v547 = vshll.u32 %v359, 16
      %v549 = vrot.slane %v547, 5
      %v550 = vor.u32 %v546, %v549
      %v551 = vrot.slane %v550, 4
      %v553 = vshll.u32 %v360, 16
      %v555 = vrot.slane %v553, 5
      %v556 = vsel %vm398, %v551, %v555
      %v557 = vshrl.u32 %v360, 16
      %v559 = vrot.slane %v557, 4
      %v560 = vor.u32 %v559, %v555
      %v561 = vrot.slane %v560, 4
      %v563 = vshll.u32 %v361, 16
      %v565 = vrot.slane %v563, 5
      %v566 = vsel %vm398, %v561, %v565
      %v568 = vshrl.u32 %v362, 16
      %v570 = vrot.slane %v568, 4
      %v571 = vshll.u32 %v362, 16
      %v573 = vrot.slane %v571, 5
      %v574 = vor.u32 %v570, %v573
      %v575 = vrot.slane %v574, 4
      %v577 = vshll.u32 %v363, 16
      %v579 = vrot.slane %v577, 5
      %v580 = vsel %vm398, %v575, %v579
      %v581 = vshrl.u32 %v363, 16
      %v583 = vrot.slane %v581, 4
      %v584 = vor.u32 %v583, %v579
      %v585 = vrot.slane %v584, 4
      %v587 = vshll.u32 %v364, 16
      %v589 = vrot.slane %v587, 5
      %v590 = vsel %vm398, %v585, %v589
      %v592 = vshrl.u32 %v365, 16
      %v594 = vrot.slane %v592, 4
      %v595 = vshll.u32 %v365, 16
      %v597 = vrot.slane %v595, 5
      %v598 = vor.u32 %v594, %v597
      %v599 = vrot.slane %v598, 4
      %v601 = vshll.u32 %v366, 16
      %v603 = vrot.slane %v601, 5
      %v604 = vsel %vm398, %v599, %v603
      %v605 = vshrl.u32 %v366, 16
      %v607 = vrot.slane %v605, 4
      %v608 = vor.u32 %v607, %v603
      %v609 = vrot.slane %v608, 4
      %v611 = vshll.u32 %v367, 16
      %v613 = vrot.slane %v611, 5
      %v614 = vsel %vm398, %v609, %v613
      %v616 = vshrl.u32 %v368, 16
      %v618 = vrot.slane %v616, 4
      %v619 = vshll.u32 %v368, 16
      %v621 = vrot.slane %v619, 5
      %v622 = vor.u32 %v618, %v621
      %v623 = vrot.slane %v622, 4
      %v625 = vshll.u32 %v369, 16
      %v627 = vrot.slane %v625, 5
      %v628 = vsel %vm398, %v623, %v627
      %v629 = vshrl.u32 %v369, 16
      %v631 = vrot.slane %v629, 4
      %v632 = vor.u32 %v631, %v627
      %v633 = vrot.slane %v632, 4
      %v635 = vshll.u32 %v370, 16
      %v637 = vrot.slane %v635, 5
      %v638 = vsel %vm398, %v633, %v637
      %v640 = vshrl.u32 %v371, 16
      %v642 = vrot.slane %v640, 4
      %v643 = vshll.u32 %v371, 16
      %v645 = vrot.slane %v643, 5
      %v646 = vor.u32 %v642, %v645
      %v647 = vrot.slane %v646, 4
      %v649 = vshll.u32 %v372, 16
      %v651 = vrot.slane %v649, 5
      %v652 = vsel %vm398, %v647, %v651
      %v653 = vshrl.u32 %v372, 16
      %v655 = vrot.slane %v653, 4
      %v656 = vor.u32 %v655, %v651
      %v657 = vrot.slane %v656, 4
      %v659 = vshll.u32 %v373, 16
      %v661 = vrot.slane %v659, 5
      %v662 = vsel %vm398, %v657, %v661
      %v664 = vshrl.u32 %v374, 16
      %v666 = vrot.slane %v664, 4
      %v667 = vshll.u32 %v374, 16
      %v669 = vrot.slane %v667, 5
      %v670 = vor.u32 %v666, %v669
      %v671 = vrot.slane %v670, 4
      %v673 = vshll.u32 %v375, 16
      %v675 = vrot.slane %v673, 5
      %v676 = vsel %vm398, %v671, %v675
      %v677 = vshrl.u32 %v375, 16
      %v679 = vrot.slane %v677, 4
      %v680 = vor.u32 %v679, %v675
      %v681 = vrot.slane %v680, 4
      %v683 = vshll.u32 %v376, 16
      %v685 = vrot.slane %v683, 5
      %v686 = vsel %vm398, %v681, %v685
      %v688 = vshrl.u32 %v377, 16
      %v690 = vrot.slane %v688, 4
      %v691 = vshll.u32 %v377, 16
      %v693 = vrot.slane %v691, 5
      %v694 = vor.u32 %v690, %v693
      %v695 = vrot.slane %v694, 4
      %v697 = vshll.u32 %v378, 16
      %v699 = vrot.slane %v697, 5
      %v700 = vsel %vm398, %v695, %v699
      %v701 = vshrl.u32 %v378, 16
      %v703 = vrot.slane %v701, 4
      %v704 = vor.u32 %v703, %v699
      %v705 = vrot.slane %v704, 4
      %v707 = vshll.u32 %v379, 16
      %v709 = vrot.slane %v707, 5
      %v710 = vsel %vm398, %v705, %v709
      %v712 = vshrl.u32 %v380, 16
      %v714 = vrot.slane %v712, 4
      %v715 = vshll.u32 %v380, 16
      %v717 = vrot.slane %v715, 5
      %v718 = vor.u32 %v714, %v717
      %v719 = vrot.slane %v718, 4
      %v721 = vshll.u32 %v381, 16
      %v723 = vrot.slane %v721, 5
      %v724 = vsel %vm398, %v719, %v723
      %v725 = vshrl.u32 %v381, 16
      %v727 = vrot.slane %v725, 4
      %v728 = vor.u32 %v727, %v723
      %v729 = vrot.slane %v728, 4
      %v731 = vshll.u32 %v382, 16
      %v733 = vrot.slane %v731, 5
      %v734 = vsel %vm398, %v729, %v733
      %v736 = vshrl.u32 %v383, 16
      %v738 = vrot.slane %v736, 4
      %v739 = vshll.u32 %v383, 16
      %v741 = vrot.slane %v739, 5
      %v742 = vor.u32 %v738, %v741
      %v743 = vrot.slane %v742, 4
      %v745 = vshll.u32 %v384, 16
      %v747 = vrot.slane %v745, 5
      %v748 = vsel %vm398, %v743, %v747
      %v749 = vshrl.u32 %v384, 16
      %v751 = vrot.slane %v749, 4
      %v752 = vor.u32 %v751, %v747
      %v753 = vrot.slane %v752, 4
      %v755 = vshll.u32 %v385, 16
      %v757 = vrot.slane %v755, 5
      %v758 = vsel %vm398, %v753, %v757
      %v760 = vshrl.u32 %v386, 16
      %v762 = vrot.slane %v760, 4
      %v763 = vshll.u32 %v386, 16
      %v765 = vrot.slane %v763, 5
      %v766 = vor.u32 %v762, %v765
      %v767 = vrot.slane %v766, 4
      %v769 = vshll.u32 %v387, 16
      %v771 = vrot.slane %v769, 5
      %v772 = vsel %vm398, %v767, %v771
      %v773 = vshrl.u32 %v387, 16
      %v775 = vrot.slane %v773, 4
      %v776 = vor.u32 %v775, %v771
      %v777 = vrot.slane %v776, 4
      %v779 = vshll.u32 %v388, 16
      %v781 = vrot.slane %v779, 5
      %v782 = vsel %vm398, %v777, %v781
      %s783 = scalar_lea.vmem %s313, 2
      %v784 = vld [vmem:[%s783] sm:$0x3]
      %v785 = vunpack.c.l.b16 %v412
      %v786 = vunpack.c.l.b16 %v422
      %v787 = vunpack.c.l.b16 %v436
      %v788 = vunpack.c.l.b16 %v446
      %v789 = vunpack.c.l.b16 %v460
      %v790 = vunpack.c.l.b16 %v470
      %v791 = vunpack.c.l.b16 %v484
      %v792 = vunpack.c.l.b16 %v494
      %v793 = vunpack.c.l.b16 %v508
      %v794 = vunpack.c.l.b16 %v518
      %v795 = vunpack.c.l.b16 %v532
      %v796 = vunpack.c.l.b16 %v542
      %v797 = vunpack.c.l.b16 %v556
      %v798 = vunpack.c.l.b16 %v566
      %v799 = vunpack.c.l.b16 %v580
      %v800 = vunpack.c.l.b16 %v590
      %v801 = vunpack.c.l.b16 %v604
      %v802 = vunpack.c.l.b16 %v614
      %v803 = vunpack.c.l.b16 %v628
      %v804 = vunpack.c.l.b16 %v638
      %v805 = vunpack.c.l.b16 %v652
      %v806 = vunpack.c.l.b16 %v662
      %v807 = vunpack.c.l.b16 %v676
      %v808 = vunpack.c.l.b16 %v686
      %v809 = vunpack.c.l.b16 %v700
      %v810 = vunpack.c.l.b16 %v710
      %v811 = vunpack.c.l.b16 %v724
      %v812 = vunpack.c.l.b16 %v734
      %v813 = vunpack.c.l.b16 %v748
      %v814 = vunpack.c.l.b16 %v758
      %v815 = vunpack.c.l.b16 %v772
      %v816 = vunpack.c.l.b16 %v782
      %v817 = vpack.c.b16 %v786, %v785
      %v818 = vpack.c.b16 %v788, %v787
      %v819 = vpack.c.b16 %v790, %v789
      %v820 = vpack.c.b16 %v792, %v791
      %v821 = vpack.c.b16 %v794, %v793
      %v822 = vpack.c.b16 %v796, %v795
      %v823 = vpack.c.b16 %v798, %v797
      %v824 = vpack.c.b16 %v800, %v799
      %v825 = vpack.c.b16 %v802, %v801
      %v826 = vpack.c.b16 %v804, %v803
      %v827 = vpack.c.b16 %v806, %v805
      %v828 = vpack.c.b16 %v808, %v807
      %v829 = vpack.c.b16 %v810, %v809
      %v830 = vpack.c.b16 %v812, %v811
      %v831 = vpack.c.b16 %v814, %v813
      %v832 = vpack.c.b16 %v816, %v815
      %vm833 = vcmask 31744
      %v835 = vsel %vm833, %v817, 0
      %v838 = vsel %vm833, %v818, 0
      %v841 = vsel %vm833, %v819, 0
      %v844 = vsel %vm833, %v820, 0
      %v847 = vsel %vm833, %v821, 0
      %v850 = vsel %vm833, %v822, 0
      %v853 = vsel %vm833, %v823, 0
      %v856 = vsel %vm833, %v824, 0
      %v859 = vsel %vm833, %v825, 0
      %v862 = vsel %vm833, %v826, 0
      %v865 = vsel %vm833, %v827, 0
      %v868 = vsel %vm833, %v828, 0
      %v871 = vsel %vm833, %v829, 0
      %v874 = vsel %vm833, %v830, 0
      %v877 = vsel %vm833, %v831, 0
      %v880 = vsel %vm833, %v832, 0
      %vm882 = vcmask 1041408
      %v884 = vsel %vm882, %v784, 0
      %886 = vmatprep.subr.bf16.mxu0 0
      %887 = vmatpush1.bf16.msra.mxu0 %v884
      %888 = vmatprep.subr.bf16.mxu0 0
      %889 = vmatpush1.bf16.msra.mxu0 0
      %890 = vmatprep.subr.bf16.mxu0 0
      %891 = vmatpush1.bf16.msra.mxu0 0
      %892 = vmatprep.subr.bf16.mxu0 0
      %893 = vmatpush1.bf16.msra.mxu0 0
      %894 = vmatprep.subr.bf16.mxu0 0
      %895 = vmatpush1.bf16.msra.mxu0 0
      %896 = vmatprep.subr.bf16.mxu0 0
      %897 = vmatpush1.bf16.msra.mxu0 0
      %898 = vmatprep.subr.bf16.mxu0 0
      %899 = vmatpush1.bf16.msra.mxu0 0
      %900 = vmatprep.subr.bf16.mxu0 0
      %901 = vmatpush1.bf16.msra.mxu0 0
      %902 = vmatprep.subr.bf16.mxu0 0
      %903 = vmatpush1.bf16.msra.mxu0 0
      %904 = vmatprep.subr.bf16.mxu0 0
      %905 = vmatpush1.bf16.msra.mxu0 0
      %906 = vmatprep.subr.bf16.mxu0 0
      %907 = vmatpush1.bf16.msra.mxu0 0
      %908 = vmatprep.subr.bf16.mxu0 0
      %909 = vmatpush1.bf16.msra.mxu0 0
      %910 = vmatprep.subr.bf16.mxu0 0
      %911 = vmatpush1.bf16.msra.mxu0 0
      %912 = vmatprep.subr.bf16.mxu0 0
      %913 = vmatpush1.bf16.msra.mxu0 0
      %914 = vmatprep.subr.bf16.mxu0 0
      %915 = vmatpush1.bf16.msra.mxu0 0
      %916 = vmatprep.subr.bf16.mxu0 0
      %917 = vmatpush1.bf16.msra.mxu0 0
      %918 = vmatprep.mubr.bf16.mxu0 0
      %919 = vmatmul.mubr.bf16.gmra.mrb[0].mxu0 %v835
      %v920 = vpop.f32.mrb[0].mxu0
      %v921 = vadd.f32 0.0, %v920
      %v922 = vpop.f32.mrb[0].mxu0
      %v923 = vpop.f32.mrb[0].mxu0
      %v924 = vadd.f32 0.0, %v923
      %v925 = vpop.f32.mrb[0].mxu0
      %926 = vmatprep.mubr.bf16.mxu0 0
      %927 = vmatmul.mubr.bf16.gmra.mrb[0].mxu0 %v838
      %v928 = vpop.f32.mrb[0].mxu0
      %v929 = vadd.f32 0.0, %v928
      %v930 = vpop.f32.mrb[0].mxu0
      %v931 = vpop.f32.mrb[0].mxu0
      %v932 = vadd.f32 0.0, %v931
      %v933 = vpop.f32.mrb[0].mxu0
      %934 = vmatprep.mubr.bf16.mxu0 0
      %935 = vmatmul.mubr.bf16.gmra.mrb[0].mxu0 %v841
      %v936 = vpop.f32.mrb[0].mxu0
      %v937 = vadd.f32 0.0, %v936
      %v938 = vpop.f32.mrb[0].mxu0
      %v939 = vpop.f32.mrb[0].mxu0
      %v940 = vadd.f32 0.0, %v939
      %v941 = vpop.f32.mrb[0].mxu0
      %942 = vmatprep.mubr.bf16.mxu0 0
      %943 = vmatmul.mubr.bf16.gmra.mrb[0].mxu0 %v844
      %v944 = vpop.f32.mrb[0].mxu0
      %v945 = vadd.f32 0.0, %v944
      %v946 = vpop.f32.mrb[0].mxu0
      %v947 = vpop.f32.mrb[0].mxu0
      %v948 = vadd.f32 0.0, %v947
      %v949 = vpop.f32.mrb[0].mxu0
      %950 = vmatprep.mubr.bf16.mxu0 0
      %951 = vmatmul.mubr.bf16.gmra.mrb[0].mxu0 %v847
      %v952 = vpop.f32.mrb[0].mxu0
      %v953 = vadd.f32 0.0, %v952
      %v954 = vpop.f32.mrb[0].mxu0
      %v955 = vpop.f32.mrb[0].mxu0
      %v956 = vadd.f32 0.0, %v955
      %v957 = vpop.f32.mrb[0].mxu0
      %958 = vmatprep.mubr.bf16.mxu0 0
      %959 = vmatmul.mubr.bf16.gmra.mrb[0].mxu0 %v850
      %v960 = vpop.f32.mrb[0].mxu0
      %v961 = vadd.f32 0.0, %v960
      %v962 = vpop.f32.mrb[0].mxu0
      %v963 = vpop.f32.mrb[0].mxu0
      %v964 = vadd.f32 0.0, %v963
      %v965 = vpop.f32.mrb[0].mxu0
      %966 = vmatprep.mubr.bf16.mxu0 0
      %967 = vmatmul.mubr.bf16.gmra.mrb[0].mxu0 %v853
      %v968 = vpop.f32.mrb[0].mxu0
      %v969 = vadd.f32 0.0, %v968
      %v970 = vpop.f32.mrb[0].mxu0
      %v971 = vpop.f32.mrb[0].mxu0
      %v972 = vadd.f32 0.0, %v971
      %v973 = vpop.f32.mrb[0].mxu0
      %974 = vmatprep.mubr.bf16.mxu0 0
      %975 = vmatmul.mubr.bf16.gmra.mrb[0].mxu0 %v856
      %v976 = vpop.f32.mrb[0].mxu0
      %v977 = vadd.f32 0.0, %v976
      %v978 = vpop.f32.mrb[0].mxu0
      %v979 = vpop.f32.mrb[0].mxu0
      %v980 = vadd.f32 0.0, %v979
      %v981 = vpop.f32.mrb[0].mxu0
      %982 = vmatprep.mubr.bf16.mxu0 0
      %983 = vmatmul.mubr.bf16.gmra.mrb[0].mxu0 %v859
      %v984 = vpop.f32.mrb[0].mxu0
      %v985 = vadd.f32 0.0, %v984
      %v986 = vpop.f32.mrb[0].mxu0
      %v987 = vpop.f32.mrb[0].mxu0
      %v988 = vadd.f32 0.0, %v987
      %v989 = vpop.f32.mrb[0].mxu0
      %990 = vmatprep.mubr.bf16.mxu0 0
      %991 = vmatmul.mubr.bf16.gmra.mrb[0].mxu0 %v862
      %v992 = vpop.f32.mrb[0].mxu0
      %v993 = vadd.f32 0.0, %v992
      %v994 = vpop.f32.mrb[0].mxu0
      %v995 = vpop.f32.mrb[0].mxu0
      %v996 = vadd.f32 0.0, %v995
      %v997 = vpop.f32.mrb[0].mxu0
      %998 = vmatprep.mubr.bf16.mxu0 0
      %999 = vmatmul.mubr.bf16.gmra.mrb[0].mxu0 %v865
      %v1000 = vpop.f32.mrb[0].mxu0
      %v1001 = vadd.f32 0.0, %v1000
      %v1002 = vpop.f32.mrb[0].mxu0
      %v1003 = vpop.f32.mrb[0].mxu0
      %v1004 = vadd.f32 0.0, %v1003
      %v1005 = vpop.f32.mrb[0].mxu0
      %1006 = vmatprep.mubr.bf16.mxu0 0
      %1007 = vmatmul.mubr.bf16.gmra.mrb[0].mxu0 %v868
      %v1008 = vpop.f32.mrb[0].mxu0
      %v1009 = vadd.f32 0.0, %v1008
      %v1010 = vpop.f32.mrb[0].mxu0
      %v1011 = vpop.f32.mrb[0].mxu0
      %v1012 = vadd.f32 0.0, %v1011
      %v1013 = vpop.f32.mrb[0].mxu0
      %1014 = vmatprep.mubr.bf16.mxu0 0
      %1015 = vmatmul.mubr.bf16.gmra.mrb[0].mxu0 %v871
      %v1016 = vpop.f32.mrb[0].mxu0
      %v1017 = vadd.f32 0.0, %v1016
      %v1018 = vpop.f32.mrb[0].mxu0
      %v1019 = vpop.f32.mrb[0].mxu0
      %v1020 = vadd.f32 0.0, %v1019
      %v1021 = vpop.f32.mrb[0].mxu0
      %1022 = vmatprep.mubr.bf16.mxu0 0
      %1023 = vmatmul.mubr.bf16.gmra.mrb[0].mxu0 %v874
      %v1024 = vpop.f32.mrb[0].mxu0
      %v1025 = vadd.f32 0.0, %v1024
      %v1026 = vpop.f32.mrb[0].mxu0
      %v1027 = vpop.f32.mrb[0].mxu0
      %v1028 = vadd.f32 0.0, %v1027
      %v1029 = vpop.f32.mrb[0].mxu0
      %1030 = vmatprep.mubr.bf16.mxu0 0
      %1031 = vmatmul.mubr.bf16.gmra.mrb[0].mxu0 %v877
      %v1032 = vpop.f32.mrb[0].mxu0
      %v1033 = vadd.f32 0.0, %v1032
      %v1034 = vpop.f32.mrb[0].mxu0
      %v1035 = vpop.f32.mrb[0].mxu0
      %v1036 = vadd.f32 0.0, %v1035
      %v1037 = vpop.f32.mrb[0].mxu0
      %1038 = vmatprep.mubr.bf16.mxu0 0
      %1039 = vmatmul.mubr.bf16.gmra.mrb[0].mxu0 %v880
      %v1040 = vpop.f32.mrb[0].mxu0
      %v1041 = vadd.f32 0.0, %v1040
      %v1042 = vpop.f32.mrb[0].mxu0
      %v1043 = vpop.f32.mrb[0].mxu0
      %v1044 = vadd.f32 0.0, %v1043
      %v1045 = vpop.f32.mrb[0].mxu0
      %1046 = vdwg.mxu0
      %v1079 = vunpack.c.l.b16 %v341
      %v1080 = vunpack.c.l.b16 %v342
      %v1081 = vunpack.c.l.b16 %v344
      %v1082 = vunpack.c.l.b16 %v345
      %v1083 = vunpack.c.l.b16 %v347
      %v1084 = vunpack.c.l.b16 %v348
      %v1085 = vunpack.c.l.b16 %v350
      %v1086 = vunpack.c.l.b16 %v351
      %v1087 = vunpack.c.l.b16 %v353
      %v1088 = vunpack.c.l.b16 %v354
      %v1089 = vunpack.c.l.b16 %v356
      %v1090 = vunpack.c.l.b16 %v357
      %v1091 = vunpack.c.l.b16 %v359
      %v1092 = vunpack.c.l.b16 %v360
      %v1093 = vunpack.c.l.b16 %v362
      %v1094 = vunpack.c.l.b16 %v363
      %v1095 = vunpack.c.l.b16 %v365
      %v1096 = vunpack.c.l.b16 %v366
      %v1097 = vunpack.c.l.b16 %v368
      %v1098 = vunpack.c.l.b16 %v369
      %v1099 = vunpack.c.l.b16 %v371
      %v1100 = vunpack.c.l.b16 %v372
      %v1101 = vunpack.c.l.b16 %v374
      %v1102 = vunpack.c.l.b16 %v375
      %v1103 = vunpack.c.l.b16 %v377
      %v1104 = vunpack.c.l.b16 %v378
      %v1105 = vunpack.c.l.b16 %v380
      %v1106 = vunpack.c.l.b16 %v381
      %v1107 = vunpack.c.l.b16 %v383
      %v1108 = vunpack.c.l.b16 %v384
      %v1109 = vunpack.c.l.b16 %v386
      %v1110 = vunpack.c.l.b16 %v387
      %v1111 = vpack.c.b16 %v1080, %v1079
      %v1112 = vpack.c.b16 %v1082, %v1081
      %v1113 = vpack.c.b16 %v1084, %v1083
      %v1114 = vpack.c.b16 %v1086, %v1085
      %v1115 = vpack.c.b16 %v1088, %v1087
      %v1116 = vpack.c.b16 %v1090, %v1089
      %v1117 = vpack.c.b16 %v1092, %v1091
      %v1118 = vpack.c.b16 %v1094, %v1093
      %v1119 = vpack.c.b16 %v1096, %v1095
      %v1120 = vpack.c.b16 %v1098, %v1097
      %v1121 = vpack.c.b16 %v1100, %v1099
      %v1122 = vpack.c.b16 %v1102, %v1101
      %v1123 = vpack.c.b16 %v1104, %v1103
      %v1124 = vpack.c.b16 %v1106, %v1105
      %v1125 = vpack.c.b16 %v1108, %v1107
      %v1126 = vpack.c.b16 %v1110, %v1109
      %v1128 = vsel %vm833, %v1111, 0
      %v1131 = vsel %vm833, %v1112, 0
      %v1134 = vsel %vm833, %v1113, 0
      %v1137 = vsel %vm833, %v1114, 0
      %v1140 = vsel %vm833, %v1115, 0
      %v1143 = vsel %vm833, %v1116, 0
      %v1146 = vsel %vm833, %v1117, 0
      %v1149 = vsel %vm833, %v1118, 0
      %v1152 = vsel %vm833, %v1119, 0
      %v1155 = vsel %vm833, %v1120, 0
      %v1158 = vsel %vm833, %v1121, 0
      %v1161 = vsel %vm833, %v1122, 0
      %v1164 = vsel %vm833, %v1123, 0
      %v1167 = vsel %vm833, %v1124, 0
      %v1170 = vsel %vm833, %v1125, 0
      %v1173 = vsel %vm833, %v1126, 0
      %v1176 = vsel %vm882, %v395, 0
      %1178 = vmatprep.subr.bf16.mxu0 0
      %1179 = vmatpush1.bf16.msra.mxu0 %v1176
      %1180 = vmatprep.subr.bf16.mxu0 0
      %1181 = vmatpush1.bf16.msra.mxu0 0
      %1182 = vmatprep.subr.bf16.mxu0 0
      %1183 = vmatpush1.bf16.msra.mxu0 0
      %1184 = vmatprep.subr.bf16.mxu0 0
      %1185 = vmatpush1.bf16.msra.mxu0 0
      %1186 = vmatprep.subr.bf16.mxu0 0
      %1187 = vmatpush1.bf16.msra.mxu0 0
      %1188 = vmatprep.subr.bf16.mxu0 0
      %1189 = vmatpush1.bf16.msra.mxu0 0
      %1190 = vmatprep.subr.bf16.mxu0 0
      %1191 = vmatpush1.bf16.msra.mxu0 0
      %1192 = vmatprep.subr.bf16.mxu0 0
      %1193 = vmatpush1.bf16.msra.mxu0 0
      %1194 = vmatprep.subr.bf16.mxu0 0
      %1195 = vmatpush1.bf16.msra.mxu0 0
      %1196 = vmatprep.subr.bf16.mxu0 0
      %1197 = vmatpush1.bf16.msra.mxu0 0
      %1198 = vmatprep.subr.bf16.mxu0 0
      %1199 = vmatpush1.bf16.msra.mxu0 0
      %1200 = vmatprep.subr.bf16.mxu0 0
      %1201 = vmatpush1.bf16.msra.mxu0 0
      %1202 = vmatprep.subr.bf16.mxu0 0
      %1203 = vmatpush1.bf16.msra.mxu0 0
      %1204 = vmatprep.subr.bf16.mxu0 0
      %1205 = vmatpush1.bf16.msra.mxu0 0
      %1206 = vmatprep.subr.bf16.mxu0 0
      %1207 = vmatpush1.bf16.msra.mxu0 0
      %1208 = vmatprep.subr.bf16.mxu0 0
      %1209 = vmatpush1.bf16.msra.mxu0 0
      %1210 = vmatprep.mubr.bf16.mxu0 0
      %1211 = vmatmul.mubr.bf16.gmra.mrb[0].mxu0 %v1128
      %v1212 = vpop.f32.mrb[0].mxu0
      %v1213 = vadd.f32 %v921, %v1212
      %v1214 = vpop.f32.mrb[0].mxu0
      %v1215 = vpop.f32.mrb[0].mxu0
      %v1216 = vadd.f32 %v924, %v1215
      %v1217 = vpop.f32.mrb[0].mxu0
      %1218 = vmatprep.mubr.bf16.mxu0 0
      %1219 = vmatmul.mubr.bf16.gmra.mrb[0].mxu0 %v1131
      %v1220 = vpop.f32.mrb[0].mxu0
      %v1221 = vadd.f32 %v929, %v1220
      %v1222 = vpop.f32.mrb[0].mxu0
      %v1223 = vpop.f32.mrb[0].mxu0
      %v1224 = vadd.f32 %v932, %v1223
      %v1225 = vpop.f32.mrb[0].mxu0
      %1226 = vmatprep.mubr.bf16.mxu0 0
      %1227 = vmatmul.mubr.bf16.gmra.mrb[0].mxu0 %v1134
      %v1228 = vpop.f32.mrb[0].mxu0
      %v1229 = vadd.f32 %v937, %v1228
      %v1230 = vpop.f32.mrb[0].mxu0
      %v1231 = vpop.f32.mrb[0].mxu0
      %v1232 = vadd.f32 %v940, %v1231
      %v1233 = vpop.f32.mrb[0].mxu0
      %1234 = vmatprep.mubr.bf16.mxu0 0
      %1235 = vmatmul.mubr.bf16.gmra.mrb[0].mxu0 %v1137
      %v1236 = vpop.f32.mrb[0].mxu0
      %v1237 = vadd.f32 %v945, %v1236
      %v1238 = vpop.f32.mrb[0].mxu0
      %v1239 = vpop.f32.mrb[0].mxu0
      %v1240 = vadd.f32 %v948, %v1239
      %v1241 = vpop.f32.mrb[0].mxu0
      %1242 = vmatprep.mubr.bf16.mxu0 0
      %1243 = vmatmul.mubr.bf16.gmra.mrb[0].mxu0 %v1140
      %v1244 = vpop.f32.mrb[0].mxu0
      %v1245 = vadd.f32 %v953, %v1244
      %v1246 = vpop.f32.mrb[0].mxu0
      %v1247 = vpop.f32.mrb[0].mxu0
      %v1248 = vadd.f32 %v956, %v1247
      %v1249 = vpop.f32.mrb[0].mxu0
      %1250 = vmatprep.mubr.bf16.mxu0 0
      %1251 = vmatmul.mubr.bf16.gmra.mrb[0].mxu0 %v1143
      %v1252 = vpop.f32.mrb[0].mxu0
      %v1253 = vadd.f32 %v961, %v1252
      %v1254 = vpop.f32.mrb[0].mxu0
      %v1255 = vpop.f32.mrb[0].mxu0
      %v1256 = vadd.f32 %v964, %v1255
      %v1257 = vpop.f32.mrb[0].mxu0
      %1258 = vmatprep.mubr.bf16.mxu0 0
      %1259 = vmatmul.mubr.bf16.gmra.mrb[0].mxu0 %v1146
      %v1260 = vpop.f32.mrb[0].mxu0
      %v1261 = vadd.f32 %v969, %v1260
      %v1262 = vpop.f32.mrb[0].mxu0
      %v1263 = vpop.f32.mrb[0].mxu0
      %v1264 = vadd.f32 %v972, %v1263
      %v1265 = vpop.f32.mrb[0].mxu0
      %1266 = vmatprep.mubr.bf16.mxu0 0
      %1267 = vmatmul.mubr.bf16.gmra.mrb[0].mxu0 %v1149
      %v1268 = vpop.f32.mrb[0].mxu0
      %v1269 = vadd.f32 %v977, %v1268
      %v1270 = vpop.f32.mrb[0].mxu0
      %v1271 = vpop.f32.mrb[0].mxu0
      %v1272 = vadd.f32 %v980, %v1271
      %v1273 = vpop.f32.mrb[0].mxu0
      %1274 = vmatprep.mubr.bf16.mxu0 0
      %1275 = vmatmul.mubr.bf16.gmra.mrb[0].mxu0 %v1152
      %v1276 = vpop.f32.mrb[0].mxu0
      %v1277 = vadd.f32 %v985, %v1276
      %v1278 = vpop.f32.mrb[0].mxu0
      %v1279 = vpop.f32.mrb[0].mxu0
      %v1280 = vadd.f32 %v988, %v1279
      %v1281 = vpop.f32.mrb[0].mxu0
      %1282 = vmatprep.mubr.bf16.mxu0 0
      %1283 = vmatmul.mubr.bf16.gmra.mrb[0].mxu0 %v1155
      %v1284 = vpop.f32.mrb[0].mxu0
      %v1285 = vadd.f32 %v993, %v1284
      %v1286 = vpop.f32.mrb[0].mxu0
      %v1287 = vpop.f32.mrb[0].mxu0
      %v1288 = vadd.f32 %v996, %v1287
      %v1289 = vpop.f32.mrb[0].mxu0
      %1290 = vmatprep.mubr.bf16.mxu0 0
      %1291 = vmatmul.mubr.bf16.gmra.mrb[0].mxu0 %v1158
      %v1292 = vpop.f32.mrb[0].mxu0
      %v1293 = vadd.f32 %v1001, %v1292
      %v1294 = vpop.f32.mrb[0].mxu0
      %v1295 = vpop.f32.mrb[0].mxu0
      %v1296 = vadd.f32 %v1004, %v1295
      %v1297 = vpop.f32.mrb[0].mxu0
      %1298 = vmatprep.mubr.bf16.mxu0 0
      %1299 = vmatmul.mubr.bf16.gmra.mrb[0].mxu0 %v1161
      %v1300 = vpop.f32.mrb[0].mxu0
      %v1301 = vadd.f32 %v1009, %v1300
      %v1302 = vpop.f32.mrb[0].mxu0
      %v1303 = vpop.f32.mrb[0].mxu0
      %v1304 = vadd.f32 %v1012, %v1303
      %v1305 = vpop.f32.mrb[0].mxu0
      %1306 = vmatprep.mubr.bf16.mxu0 0
      %1307 = vmatmul.mubr.bf16.gmra.mrb[0].mxu0 %v1164
      %v1308 = vpop.f32.mrb[0].mxu0
      %v1309 = vadd.f32 %v1017, %v1308
      %v1310 = vpop.f32.mrb[0].mxu0
      %v1311 = vpop.f32.mrb[0].mxu0
      %v1312 = vadd.f32 %v1020, %v1311
      %v1313 = vpop.f32.mrb[0].mxu0
      %1314 = vmatprep.mubr.bf16.mxu0 0
      %1315 = vmatmul.mubr.bf16.gmra.mrb[0].mxu0 %v1167
      %v1316 = vpop.f32.mrb[0].mxu0
      %v1317 = vadd.f32 %v1025, %v1316
      %v1318 = vpop.f32.mrb[0].mxu0
      %v1319 = vpop.f32.mrb[0].mxu0
      %v1320 = vadd.f32 %v1028, %v1319
      %v1321 = vpop.f32.mrb[0].mxu0
      %1322 = vmatprep.mubr.bf16.mxu0 0
      %1323 = vmatmul.mubr.bf16.gmra.mrb[0].mxu0 %v1170
      %v1324 = vpop.f32.mrb[0].mxu0
      %v1325 = vadd.f32 %v1033, %v1324
      %v1326 = vpop.f32.mrb[0].mxu0
      %v1327 = vpop.f32.mrb[0].mxu0
      %v1328 = vadd.f32 %v1036, %v1327
      %v1329 = vpop.f32.mrb[0].mxu0
      %1330 = vmatprep.mubr.bf16.mxu0 0
      %1331 = vmatmul.mubr.bf16.gmra.mrb[0].mxu0 %v1173
      %v1332 = vpop.f32.mrb[0].mxu0
      %v1333 = vadd.f32 %v1041, %v1332
      %v1334 = vpop.f32.mrb[0].mxu0
      %v1335 = vpop.f32.mrb[0].mxu0
      %v1336 = vadd.f32 %v1044, %v1335
      %v1337 = vpop.f32.mrb[0].mxu0
      %1338 = vdwg.mxu0
      %vm1355 = vcmask 1042432
      %vm1356 = vcmask 1046532
      %vm1357 = vmor %vm1355, %vm1356
      %v1358 = vrot.slane %v341, 5
      %v1359 = vrot.slane %v1358, 4
      %v1360 = vrot.slane %v342, 5
      %v1361 = vsel %vm1357, %v1359, %v1360
      %v1362 = vrot.slane %v1360, 4
      %v1363 = vrot.slane %v343, 5
      %v1364 = vsel %vm1357, %v1362, %v1363
      %v1365 = vrot.slane %v344, 5
      %v1366 = vrot.slane %v1365, 4
      %v1367 = vrot.slane %v345, 5
      %v1368 = vsel %vm1357, %v1366, %v1367
      %v1369 = vrot.slane %v1367, 4
      %v1370 = vrot.slane %v346, 5
      %v1371 = vsel %vm1357, %v1369, %v1370
      %v1372 = vrot.slane %v347, 5
      %v1373 = vrot.slane %v1372, 4
      %v1374 = vrot.slane %v348, 5
      %v1375 = vsel %vm1357, %v1373, %v1374
      %v1376 = vrot.slane %v1374, 4
      %v1377 = vrot.slane %v349, 5
      %v1378 = vsel %vm1357, %v1376, %v1377
      %v1379 = vrot.slane %v350, 5
      %v1380 = vrot.slane %v1379, 4
      %v1381 = vrot.slane %v351, 5
      %v1382 = vsel %vm1357, %v1380, %v1381
      %v1383 = vrot.slane %v1381, 4
      %v1384 = vrot.slane %v352, 5
      %v1385 = vsel %vm1357, %v1383, %v1384
      %v1386 = vrot.slane %v353, 5
      %v1387 = vrot.slane %v1386, 4
      %v1388 = vrot.slane %v354, 5
      %v1389 = vsel %vm1357, %v1387, %v1388
      %v1390 = vrot.slane %v1388, 4
      %v1391 = vrot.slane %v355, 5
      %v1392 = vsel %vm1357, %v1390, %v1391
      %v1393 = vrot.slane %v356, 5
      %v1394 = vrot.slane %v1393, 4
      %v1395 = vrot.slane %v357, 5
      %v1396 = vsel %vm1357, %v1394, %v1395
      %v1397 = vrot.slane %v1395, 4
      %v1398 = vrot.slane %v358, 5
      %v1399 = vsel %vm1357, %v1397, %v1398
      %v1400 = vrot.slane %v359, 5
      %v1401 = vrot.slane %v1400, 4
      %v1402 = vrot.slane %v360, 5
      %v1403 = vsel %vm1357, %v1401, %v1402
      %v1404 = vrot.slane %v1402, 4
      %v1405 = vrot.slane %v361, 5
      %v1406 = vsel %vm1357, %v1404, %v1405
      %v1407 = vrot.slane %v362, 5
      %v1408 = vrot.slane %v1407, 4
      %v1409 = vrot.slane %v363, 5
      %v1410 = vsel %vm1357, %v1408, %v1409
      %v1411 = vrot.slane %v1409, 4
      %v1412 = vrot.slane %v364, 5
      %v1413 = vsel %vm1357, %v1411, %v1412
      %v1414 = vrot.slane %v365, 5
      %v1415 = vrot.slane %v1414, 4
      %v1416 = vrot.slane %v366, 5
      %v1417 = vsel %vm1357, %v1415, %v1416
      %v1418 = vrot.slane %v1416, 4
      %v1419 = vrot.slane %v367, 5
      %v1420 = vsel %vm1357, %v1418, %v1419
      %v1421 = vrot.slane %v368, 5
      %v1422 = vrot.slane %v1421, 4
      %v1423 = vrot.slane %v369, 5
      %v1424 = vsel %vm1357, %v1422, %v1423
      %v1425 = vrot.slane %v1423, 4
      %v1426 = vrot.slane %v370, 5
      %v1427 = vsel %vm1357, %v1425, %v1426
      %v1428 = vrot.slane %v371, 5
      %v1429 = vrot.slane %v1428, 4
      %v1430 = vrot.slane %v372, 5
      %v1431 = vsel %vm1357, %v1429, %v1430
      %v1432 = vrot.slane %v1430, 4
      %v1433 = vrot.slane %v373, 5
      %v1434 = vsel %vm1357, %v1432, %v1433
      %v1435 = vrot.slane %v374, 5
      %v1436 = vrot.slane %v1435, 4
      %v1437 = vrot.slane %v375, 5
      %v1438 = vsel %vm1357, %v1436, %v1437
      %v1439 = vrot.slane %v1437, 4
      %v1440 = vrot.slane %v376, 5
      %v1441 = vsel %vm1357, %v1439, %v1440
      %v1442 = vrot.slane %v377, 5
      %v1443 = vrot.slane %v1442, 4
      %v1444 = vrot.slane %v378, 5
      %v1445 = vsel %vm1357, %v1443, %v1444
      %v1446 = vrot.slane %v1444, 4
      %v1447 = vrot.slane %v379, 5
      %v1448 = vsel %vm1357, %v1446, %v1447
      %v1449 = vrot.slane %v380, 5
      %v1450 = vrot.slane %v1449, 4
      %v1451 = vrot.slane %v381, 5
      %v1452 = vsel %vm1357, %v1450, %v1451
      %v1453 = vrot.slane %v1451, 4
      %v1454 = vrot.slane %v382, 5
      %v1455 = vsel %vm1357, %v1453, %v1454
      %v1456 = vrot.slane %v383, 5
      %v1457 = vrot.slane %v1456, 4
      %v1458 = vrot.slane %v384, 5
      %v1459 = vsel %vm1357, %v1457, %v1458
      %v1460 = vrot.slane %v1458, 4
      %v1461 = vrot.slane %v385, 5
      %v1462 = vsel %vm1357, %v1460, %v1461
      %v1463 = vrot.slane %v386, 5
      %v1464 = vrot.slane %v1463, 4
      %v1465 = vrot.slane %v387, 5
      %v1466 = vsel %vm1357, %v1464, %v1465
      %v1467 = vrot.slane %v1465, 4
      %v1468 = vrot.slane %v388, 5
      %v1469 = vsel %vm1357, %v1467, %v1468
      %s1470 = scalar_lea.vmem %s313, 4
      %v1471 = vld [vmem:[%s1470] sm:$0x3]
      %v1472 = vunpack.c.l.b16 %v1361
      %v1473 = vunpack.c.l.b16 %v1364
      %v1474 = vunpack.c.l.b16 %v1368
      %v1475 = vunpack.c.l.b16 %v1371
      %v1476 = vunpack.c.l.b16 %v1375
      %v1477 = vunpack.c.l.b16 %v1378
      %v1478 = vunpack.c.l.b16 %v1382
      %v1479 = vunpack.c.l.b16 %v1385
      %v1480 = vunpack.c.l.b16 %v1389
      %v1481 = vunpack.c.l.b16 %v1392
      %v1482 = vunpack.c.l.b16 %v1396
      %v1483 = vunpack.c.l.b16 %v1399
      %v1484 = vunpack.c.l.b16 %v1403
      %v1485 = vunpack.c.l.b16 %v1406
      %v1486 = vunpack.c.l.b16 %v1410
      %v1487 = vunpack.c.l.b16 %v1413
      %v1488 = vunpack.c.l.b16 %v1417
      %v1489 = vunpack.c.l.b16 %v1420
      %v1490 = vunpack.c.l.b16 %v1424
      %v1491 = vunpack.c.l.b16 %v1427
      %v1492 = vunpack.c.l.b16 %v1431
      %v1493 = vunpack.c.l.b16 %v1434
      %v1494 = vunpack.c.l.b16 %v1438
      %v1495 = vunpack.c.l.b16 %v1441
      %v1496 = vunpack.c.l.b16 %v1445
      %v1497 = vunpack.c.l.b16 %v1448
      %v1498 = vunpack.c.l.b16 %v1452
      %v1499 = vunpack.c.l.b16 %v1455
      %v1500 = vunpack.c.l.b16 %v1459
      %v1501 = vunpack.c.l.b16 %v1462
      %v1502 = vunpack.c.l.b16 %v1466
      %v1503 = vunpack.c.l.b16 %v1469
      %v1504 = vpack.c.b16 %v1473, %v1472
      %v1505 = vpack.c.b16 %v1475, %v1474
      %v1506 = vpack.c.b16 %v1477, %v1476
      %v1507 = vpack.c.b16 %v1479, %v1478
      %v1508 = vpack.c.b16 %v1481, %v1480
      %v1509 = vpack.c.b16 %v1483, %v1482
      %v1510 = vpack.c.b16 %v1485, %v1484
      %v1511 = vpack.c.b16 %v1487, %v1486
      %v1512 = vpack.c.b16 %v1489, %v1488
      %v1513 = vpack.c.b16 %v1491, %v1490
      %v1514 = vpack.c.b16 %v1493, %v1492
      %v1515 = vpack.c.b16 %v1495, %v1494
      %v1516 = vpack.c.b16 %v1497, %v1496
      %v1517 = vpack.c.b16 %v1499, %v1498
      %v1518 = vpack.c.b16 %v1501, %v1500
      %v1519 = vpack.c.b16 %v1503, %v1502
      %v1521 = vsel %vm833, %v1504, 0
      %v1524 = vsel %vm833, %v1505, 0
      %v1527 = vsel %vm833, %v1506, 0
      %v1530 = vsel %vm833, %v1507, 0
      %v1533 = vsel %vm833, %v1508, 0
      %v1536 = vsel %vm833, %v1509, 0
      %v1539 = vsel %vm833, %v1510, 0
      %v1542 = vsel %vm833, %v1511, 0
      %v1545 = vsel %vm833, %v1512, 0
      %v1548 = vsel %vm833, %v1513, 0
      %v1551 = vsel %vm833, %v1514, 0
      %v1554 = vsel %vm833, %v1515, 0
      %v1557 = vsel %vm833, %v1516, 0
      %v1560 = vsel %vm833, %v1517, 0
      %v1563 = vsel %vm833, %v1518, 0
      %v1566 = vsel %vm833, %v1519, 0
      %v1569 = vsel %vm882, %v1471, 0
      %1571 = vmatprep.subr.bf16.mxu0 0
      %1572 = vmatpush1.bf16.msra.mxu0 %v1569
      %1573 = vmatprep.subr.bf16.mxu0 0
      %1574 = vmatpush1.bf16.msra.mxu0 0
      %1575 = vmatprep.subr.bf16.mxu0 0
      %1576 = vmatpush1.bf16.msra.mxu0 0
      %1577 = vmatprep.subr.bf16.mxu0 0
      %1578 = vmatpush1.bf16.msra.mxu0 0
      %1579 = vmatprep.subr.bf16.mxu0 0
      %1580 = vmatpush1.bf16.msra.mxu0 0
      %1581 = vmatprep.subr.bf16.mxu0 0
      %1582 = vmatpush1.bf16.msra.mxu0 0
      %1583 = vmatprep.subr.bf16.mxu0 0
      %1584 = vmatpush1.bf16.msra.mxu0 0
      %1585 = vmatprep.subr.bf16.mxu0 0
      %1586 = vmatpush1.bf16.msra.mxu0 0
      %1587 = vmatprep.subr.bf16.mxu0 0
      %1588 = vmatpush1.bf16.msra.mxu0 0
      %1589 = vmatprep.subr.bf16.mxu0 0
      %1590 = vmatpush1.bf16.msra.mxu0 0
      %1591 = vmatprep.subr.bf16.mxu0 0
      %1592 = vmatpush1.bf16.msra.mxu0 0
      %1593 = vmatprep.subr.bf16.mxu0 0
      %1594 = vmatpush1.bf16.msra.mxu0 0
      %1595 = vmatprep.subr.bf16.mxu0 0
      %1596 = vmatpush1.bf16.msra.mxu0 0
      %1597 = vmatprep.subr.bf16.mxu0 0
      %1598 = vmatpush1.bf16.msra.mxu0 0
      %1599 = vmatprep.subr.bf16.mxu0 0
      %1600 = vmatpush1.bf16.msra.mxu0 0
      %1601 = vmatprep.subr.bf16.mxu0 0
      %1602 = vmatpush1.bf16.msra.mxu0 0
      %1603 = vmatprep.mubr.bf16.mxu0 0
      %1604 = vmatmul.mubr.bf16.gmra.mrb[0].mxu0 %v1521
      %v1605 = vpop.f32.mrb[0].mxu0
      %v1606 = vadd.f32 0.0, %v1605
      %v1607 = vpop.f32.mrb[0].mxu0
      %v1608 = vpop.f32.mrb[0].mxu0
      %v1609 = vadd.f32 0.0, %v1608
      %v1610 = vpop.f32.mrb[0].mxu0
      %1611 = vmatprep.mubr.bf16.mxu0 0
      %1612 = vmatmul.mubr.bf16.gmra.mrb[0].mxu0 %v1524
      %v1613 = vpop.f32.mrb[0].mxu0
      %v1614 = vadd.f32 0.0, %v1613
      %v1615 = vpop.f32.mrb[0].mxu0
      %v1616 = vpop.f32.mrb[0].mxu0
      %v1617 = vadd.f32 0.0, %v1616
      %v1618 = vpop.f32.mrb[0].mxu0
      %1619 = vmatprep.mubr.bf16.mxu0 0
      %1620 = vmatmul.mubr.bf16.gmra.mrb[0].mxu0 %v1527
      %v1621 = vpop.f32.mrb[0].mxu0
      %v1622 = vadd.f32 0.0, %v1621
      %v1623 = vpop.f32.mrb[0].mxu0
      %v1624 = vpop.f32.mrb[0].mxu0
      %v1625 = vadd.f32 0.0, %v1624
      %v1626 = vpop.f32.mrb[0].mxu0
      %1627 = vmatprep.mubr.bf16.mxu0 0
      %1628 = vmatmul.mubr.bf16.gmra.mrb[0].mxu0 %v1530
      %v1629 = vpop.f32.mrb[0].mxu0
      %v1630 = vadd.f32 0.0, %v1629
      %v1631 = vpop.f32.mrb[0].mxu0
      %v1632 = vpop.f32.mrb[0].mxu0
      %v1633 = vadd.f32 0.0, %v1632
      %v1634 = vpop.f32.mrb[0].mxu0
      %1635 = vmatprep.mubr.bf16.mxu0 0
      %1636 = vmatmul.mubr.bf16.gmra.mrb[0].mxu0 %v1533
      %v1637 = vpop.f32.mrb[0].mxu0
      %v1638 = vadd.f32 0.0, %v1637
      %v1639 = vpop.f32.mrb[0].mxu0
      %v1640 = vpop.f32.mrb[0].mxu0
      %v1641 = vadd.f32 0.0, %v1640
      %v1642 = vpop.f32.mrb[0].mxu0
      %1643 = vmatprep.mubr.bf16.mxu0 0
      %1644 = vmatmul.mubr.bf16.gmra.mrb[0].mxu0 %v1536
      %v1645 = vpop.f32.mrb[0].mxu0
      %v1646 = vadd.f32 0.0, %v1645
      %v1647 = vpop.f32.mrb[0].mxu0
      %v1648 = vpop.f32.mrb[0].mxu0
      %v1649 = vadd.f32 0.0, %v1648
      %v1650 = vpop.f32.mrb[0].mxu0
      %1651 = vmatprep.mubr.bf16.mxu0 0
      %1652 = vmatmul.mubr.bf16.gmra.mrb[0].mxu0 %v1539
      %v1653 = vpop.f32.mrb[0].mxu0
      %v1654 = vadd.f32 0.0, %v1653
      %v1655 = vpop.f32.mrb[0].mxu0
      %v1656 = vpop.f32.mrb[0].mxu0
      %v1657 = vadd.f32 0.0, %v1656
      %v1658 = vpop.f32.mrb[0].mxu0
      %1659 = vmatprep.mubr.bf16.mxu0 0
      %1660 = vmatmul.mubr.bf16.gmra.mrb[0].mxu0 %v1542
      %v1661 = vpop.f32.mrb[0].mxu0
      %v1662 = vadd.f32 0.0, %v1661
      %v1663 = vpop.f32.mrb[0].mxu0
      %v1664 = vpop.f32.mrb[0].mxu0
      %v1665 = vadd.f32 0.0, %v1664
      %v1666 = vpop.f32.mrb[0].mxu0
      %1667 = vmatprep.mubr.bf16.mxu0 0
      %1668 = vmatmul.mubr.bf16.gmra.mrb[0].mxu0 %v1545
      %v1669 = vpop.f32.mrb[0].mxu0
      %v1670 = vadd.f32 0.0, %v1669
      %v1671 = vpop.f32.mrb[0].mxu0
      %v1672 = vpop.f32.mrb[0].mxu0
      %v1673 = vadd.f32 0.0, %v1672
      %v1674 = vpop.f32.mrb[0].mxu0
      %1675 = vmatprep.mubr.bf16.mxu0 0
      %1676 = vmatmul.mubr.bf16.gmra.mrb[0].mxu0 %v1548
      %v1677 = vpop.f32.mrb[0].mxu0
      %v1678 = vadd.f32 0.0, %v1677
      %v1679 = vpop.f32.mrb[0].mxu0
      %v1680 = vpop.f32.mrb[0].mxu0
      %v1681 = vadd.f32 0.0, %v1680
      %v1682 = vpop.f32.mrb[0].mxu0
      %1683 = vmatprep.mubr.bf16.mxu0 0
      %1684 = vmatmul.mubr.bf16.gmra.mrb[0].mxu0 %v1551
      %v1685 = vpop.f32.mrb[0].mxu0
      %v1686 = vadd.f32 0.0, %v1685
      %v1687 = vpop.f32.mrb[0].mxu0
      %v1688 = vpop.f32.mrb[0].mxu0
      %v1689 = vadd.f32 0.0, %v1688
      %v1690 = vpop.f32.mrb[0].mxu0
      %1691 = vmatprep.mubr.bf16.mxu0 0
      %1692 = vmatmul.mubr.bf16.gmra.mrb[0].mxu0 %v1554
      %v1693 = vpop.f32.mrb[0].mxu0
      %v1694 = vadd.f32 0.0, %v1693
      %v1695 = vpop.f32.mrb[0].mxu0
      %v1696 = vpop.f32.mrb[0].mxu0
      %v1697 = vadd.f32 0.0, %v1696
      %v1698 = vpop.f32.mrb[0].mxu0
      %1699 = vmatprep.mubr.bf16.mxu0 0
      %1700 = vmatmul.mubr.bf16.gmra.mrb[0].mxu0 %v1557
      %v1701 = vpop.f32.mrb[0].mxu0
      %v1702 = vadd.f32 0.0, %v1701
      %v1703 = vpop.f32.mrb[0].mxu0
      %v1704 = vpop.f32.mrb[0].mxu0
      %v1705 = vadd.f32 0.0, %v1704
      %v1706 = vpop.f32.mrb[0].mxu0
      %1707 = vmatprep.mubr.bf16.mxu0 0
      %1708 = vmatmul.mubr.bf16.gmra.mrb[0].mxu0 %v1560
      %v1709 = vpop.f32.mrb[0].mxu0
      %v1710 = vadd.f32 0.0, %v1709
      %v1711 = vpop.f32.mrb[0].mxu0
      %v1712 = vpop.f32.mrb[0].mxu0
      %v1713 = vadd.f32 0.0, %v1712
      %v1714 = vpop.f32.mrb[0].mxu0
      %1715 = vmatprep.mubr.bf16.mxu0 0
      %1716 = vmatmul.mubr.bf16.gmra.mrb[0].mxu0 %v1563
      %v1717 = vpop.f32.mrb[0].mxu0
      %v1718 = vadd.f32 0.0, %v1717
      %v1719 = vpop.f32.mrb[0].mxu0
      %v1720 = vpop.f32.mrb[0].mxu0
      %v1721 = vadd.f32 0.0, %v1720
      %v1722 = vpop.f32.mrb[0].mxu0
      %1723 = vmatprep.mubr.bf16.mxu0 0
      %1724 = vmatmul.mubr.bf16.gmra.mrb[0].mxu0 %v1566
      %v1725 = vpop.f32.mrb[0].mxu0
      %v1726 = vadd.f32 0.0, %v1725
      %v1727 = vpop.f32.mrb[0].mxu0
      %v1728 = vpop.f32.mrb[0].mxu0
      %v1729 = vadd.f32 0.0, %v1728
      %v1730 = vpop.f32.mrb[0].mxu0
      %1731 = vdwg.mxu0
      %v1732 = vadd.f32 %v1213, %v1606
      %v1733 = vadd.f32 %v1216, %v1609
      %v1734 = vadd.f32 %v1221, %v1614
      %v1735 = vadd.f32 %v1224, %v1617
      %v1736 = vadd.f32 %v1229, %v1622
      %v1737 = vadd.f32 %v1232, %v1625
      %v1738 = vadd.f32 %v1237, %v1630
      %v1739 = vadd.f32 %v1240, %v1633
      %v1740 = vadd.f32 %v1245, %v1638
      %v1741 = vadd.f32 %v1248, %v1641
      %v1742 = vadd.f32 %v1253, %v1646
      %v1743 = vadd.f32 %v1256, %v1649
      %v1744 = vadd.f32 %v1261, %v1654
      %v1745 = vadd.f32 %v1264, %v1657
      %v1746 = vadd.f32 %v1269, %v1662
      %v1747 = vadd.f32 %v1272, %v1665
      %v1748 = vadd.f32 %v1277, %v1670
      %v1749 = vadd.f32 %v1280, %v1673
      %v1750 = vadd.f32 %v1285, %v1678
      %v1751 = vadd.f32 %v1288, %v1681
      %v1752 = vadd.f32 %v1293, %v1686
      %v1753 = vadd.f32 %v1296, %v1689
      %v1754 = vadd.f32 %v1301, %v1694
      %v1755 = vadd.f32 %v1304, %v1697
      %v1756 = vadd.f32 %v1309, %v1702
      %v1757 = vadd.f32 %v1312, %v1705
      %v1758 = vadd.f32 %v1317, %v1710
      %v1759 = vadd.f32 %v1320, %v1713
      %v1760 = vadd.f32 %v1325, %v1718
      %v1761 = vadd.f32 %v1328, %v1721
      %v1762 = vadd.f32 %v1333, %v1726
      %v1763 = vadd.f32 %v1336, %v1729
      %s1764 = scalar_lea.vmem %s313, 6
      %v1765 = vld [vmem:[%s1764] sm:$0x3]
      %v1768 = vunpack.c.l.b16 %v389
      %v1769 = vunpack.c.l.b16 %v390
      %v1770 = vpack.c.b16 %v1769, %v1768
      %v1772 = vsel %vm833, %v1770, 0
      %v1775 = vsel %vm882, %v1765, 0
      %1777 = vmatprep.subr.bf16.mxu0 0
      %1778 = vmatpush1.bf16.msra.mxu0 %v1775
      %1779 = vmatprep.subr.bf16.mxu0 0
      %1780 = vmatpush1.bf16.msra.mxu0 0
      %1781 = vmatprep.subr.bf16.mxu0 0
      %1782 = vmatpush1.bf16.msra.mxu0 0
      %1783 = vmatprep.subr.bf16.mxu0 0
      %1784 = vmatpush1.bf16.msra.mxu0 0
      %1785 = vmatprep.subr.bf16.mxu0 0
      %1786 = vmatpush1.bf16.msra.mxu0 0
      %1787 = vmatprep.subr.bf16.mxu0 0
      %1788 = vmatpush1.bf16.msra.mxu0 0
      %1789 = vmatprep.subr.bf16.mxu0 0
      %1790 = vmatpush1.bf16.msra.mxu0 0
      %1791 = vmatprep.subr.bf16.mxu0 0
      %1792 = vmatpush1.bf16.msra.mxu0 0
      %1793 = vmatprep.subr.bf16.mxu0 0
      %1794 = vmatpush1.bf16.msra.mxu0 0
      %1795 = vmatprep.subr.bf16.mxu0 0
      %1796 = vmatpush1.bf16.msra.mxu0 0
      %1797 = vmatprep.subr.bf16.mxu0 0
      %1798 = vmatpush1.bf16.msra.mxu0 0
      %1799 = vmatprep.subr.bf16.mxu0 0
      %1800 = vmatpush1.bf16.msra.mxu0 0
      %1801 = vmatprep.subr.bf16.mxu0 0
      %1802 = vmatpush1.bf16.msra.mxu0 0
      %1803 = vmatprep.subr.bf16.mxu0 0
      %1804 = vmatpush1.bf16.msra.mxu0 0
      %1805 = vmatprep.subr.bf16.mxu0 0
      %1806 = vmatpush1.bf16.msra.mxu0 0
      %1807 = vmatprep.subr.bf16.mxu0 0
      %1808 = vmatpush1.bf16.msra.mxu0 0
      %1809 = vmatprep.mubr.bf16.mxu0 0
      %1810 = vmatmul.mubr.bf16.gmra.mrb[0].mxu0 %v1131
      %v1811 = vpop.f32.mrb[0].mxu0
      %v1812 = vadd.f32 0.0, %v1811
      %v1813 = vpop.f32.mrb[0].mxu0
      %v1814 = vpop.f32.mrb[0].mxu0
      %v1815 = vadd.f32 0.0, %v1814
      %v1816 = vpop.f32.mrb[0].mxu0
      %1817 = vmatprep.mubr.bf16.mxu0 0
      %1818 = vmatmul.mubr.bf16.gmra.mrb[0].mxu0 %v1134
      %v1819 = vpop.f32.mrb[0].mxu0
      %v1820 = vadd.f32 0.0, %v1819
      %v1821 = vpop.f32.mrb[0].mxu0
      %v1822 = vpop.f32.mrb[0].mxu0
      %v1823 = vadd.f32 0.0, %v1822
      %v1824 = vpop.f32.mrb[0].mxu0
      %1825 = vmatprep.mubr.bf16.mxu0 0
      %1826 = vmatmul.mubr.bf16.gmra.mrb[0].mxu0 %v1137
      %v1827 = vpop.f32.mrb[0].mxu0
      %v1828 = vadd.f32 0.0, %v1827
      %v1829 = vpop.f32.mrb[0].mxu0
      %v1830 = vpop.f32.mrb[0].mxu0
      %v1831 = vadd.f32 0.0, %v1830
      %v1832 = vpop.f32.mrb[0].mxu0
      %1833 = vmatprep.mubr.bf16.mxu0 0
      %1834 = vmatmul.mubr.bf16.gmra.mrb[0].mxu0 %v1140
      %v1835 = vpop.f32.mrb[0].mxu0
      %v1836 = vadd.f32 0.0, %v1835
      %v1837 = vpop.f32.mrb[0].mxu0
      %v1838 = vpop.f32.mrb[0].mxu0
      %v1839 = vadd.f32 0.0, %v1838
      %v1840 = vpop.f32.mrb[0].mxu0
      %1841 = vmatprep.mubr.bf16.mxu0 0
      %1842 = vmatmul.mubr.bf16.gmra.mrb[0].mxu0 %v1143
      %v1843 = vpop.f32.mrb[0].mxu0
      %v1844 = vadd.f32 0.0, %v1843
      %v1845 = vpop.f32.mrb[0].mxu0
      %v1846 = vpop.f32.mrb[0].mxu0
      %v1847 = vadd.f32 0.0, %v1846
      %v1848 = vpop.f32.mrb[0].mxu0
      %1849 = vmatprep.mubr.bf16.mxu0 0
      %1850 = vmatmul.mubr.bf16.gmra.mrb[0].mxu0 %v1146
      %v1851 = vpop.f32.mrb[0].mxu0
      %v1852 = vadd.f32 0.0, %v1851
      %v1853 = vpop.f32.mrb[0].mxu0
      %v1854 = vpop.f32.mrb[0].mxu0
      %v1855 = vadd.f32 0.0, %v1854
      %v1856 = vpop.f32.mrb[0].mxu0
      %1857 = vmatprep.mubr.bf16.mxu0 0
      %1858 = vmatmul.mubr.bf16.gmra.mrb[0].mxu0 %v1149
      %v1859 = vpop.f32.mrb[0].mxu0
      %v1860 = vadd.f32 0.0, %v1859
      %v1861 = vpop.f32.mrb[0].mxu0
      %v1862 = vpop.f32.mrb[0].mxu0
      %v1863 = vadd.f32 0.0, %v1862
      %v1864 = vpop.f32.mrb[0].mxu0
      %1865 = vmatprep.mubr.bf16.mxu0 0
      %1866 = vmatmul.mubr.bf16.gmra.mrb[0].mxu0 %v1152
      %v1867 = vpop.f32.mrb[0].mxu0
      %v1868 = vadd.f32 0.0, %v1867
      %v1869 = vpop.f32.mrb[0].mxu0
      %v1870 = vpop.f32.mrb[0].mxu0
      %v1871 = vadd.f32 0.0, %v1870
      %v1872 = vpop.f32.mrb[0].mxu0
      %1873 = vmatprep.mubr.bf16.mxu0 0
      %1874 = vmatmul.mubr.bf16.gmra.mrb[0].mxu0 %v1155
      %v1875 = vpop.f32.mrb[0].mxu0
      %v1876 = vadd.f32 0.0, %v1875
      %v1877 = vpop.f32.mrb[0].mxu0
      %v1878 = vpop.f32.mrb[0].mxu0
      %v1879 = vadd.f32 0.0, %v1878
      %v1880 = vpop.f32.mrb[0].mxu0
      %1881 = vmatprep.mubr.bf16.mxu0 0
      %1882 = vmatmul.mubr.bf16.gmra.mrb[0].mxu0 %v1158
      %v1883 = vpop.f32.mrb[0].mxu0
      %v1884 = vadd.f32 0.0, %v1883
      %v1885 = vpop.f32.mrb[0].mxu0
      %v1886 = vpop.f32.mrb[0].mxu0
      %v1887 = vadd.f32 0.0, %v1886
      %v1888 = vpop.f32.mrb[0].mxu0
      %1889 = vmatprep.mubr.bf16.mxu0 0
      %1890 = vmatmul.mubr.bf16.gmra.mrb[0].mxu0 %v1161
      %v1891 = vpop.f32.mrb[0].mxu0
      %v1892 = vadd.f32 0.0, %v1891
      %v1893 = vpop.f32.mrb[0].mxu0
      %v1894 = vpop.f32.mrb[0].mxu0
      %v1895 = vadd.f32 0.0, %v1894
      %v1896 = vpop.f32.mrb[0].mxu0
      %1897 = vmatprep.mubr.bf16.mxu0 0
      %1898 = vmatmul.mubr.bf16.gmra.mrb[0].mxu0 %v1164
      %v1899 = vpop.f32.mrb[0].mxu0
      %v1900 = vadd.f32 0.0, %v1899
      %v1901 = vpop.f32.mrb[0].mxu0
      %v1902 = vpop.f32.mrb[0].mxu0
      %v1903 = vadd.f32 0.0, %v1902
      %v1904 = vpop.f32.mrb[0].mxu0
      %1905 = vmatprep.mubr.bf16.mxu0 0
      %1906 = vmatmul.mubr.bf16.gmra.mrb[0].mxu0 %v1167
      %v1907 = vpop.f32.mrb[0].mxu0
      %v1908 = vadd.f32 0.0, %v1907
      %v1909 = vpop.f32.mrb[0].mxu0
      %v1910 = vpop.f32.mrb[0].mxu0
      %v1911 = vadd.f32 0.0, %v1910
      %v1912 = vpop.f32.mrb[0].mxu0
      %1913 = vmatprep.mubr.bf16.mxu0 0
      %1914 = vmatmul.mubr.bf16.gmra.mrb[0].mxu0 %v1170
      %v1915 = vpop.f32.mrb[0].mxu0
      %v1916 = vadd.f32 0.0, %v1915
      %v1917 = vpop.f32.mrb[0].mxu0
      %v1918 = vpop.f32.mrb[0].mxu0
      %v1919 = vadd.f32 0.0, %v1918
      %v1920 = vpop.f32.mrb[0].mxu0
      %1921 = vmatprep.mubr.bf16.mxu0 0
      %1922 = vmatmul.mubr.bf16.gmra.mrb[0].mxu0 %v1173
      %v1923 = vpop.f32.mrb[0].mxu0
      %v1924 = vadd.f32 0.0, %v1923
      %v1925 = vpop.f32.mrb[0].mxu0
      %v1926 = vpop.f32.mrb[0].mxu0
      %v1927 = vadd.f32 0.0, %v1926
      %v1928 = vpop.f32.mrb[0].mxu0
      %1929 = vmatprep.mubr.bf16.mxu0 0
      %1930 = vmatmul.mubr.bf16.gmra.mrb[0].mxu0 %v1772
      %v1931 = vpop.f32.mrb[0].mxu0
      %v1932 = vadd.f32 0.0, %v1931
      %v1933 = vpop.f32.mrb[0].mxu0
      %v1934 = vpop.f32.mrb[0].mxu0
      %v1935 = vadd.f32 0.0, %v1934
      %v1936 = vpop.f32.mrb[0].mxu0
      %1937 = vdwg.mxu0
      %v1938 = vadd.f32 %v1732, %v1812
      %v1939 = vadd.f32 %v1733, %v1815
      %v1940 = vadd.f32 %v1734, %v1820
      %v1941 = vadd.f32 %v1735, %v1823
      %v1942 = vadd.f32 %v1736, %v1828
      %v1943 = vadd.f32 %v1737, %v1831
      %v1944 = vadd.f32 %v1738, %v1836
      %v1945 = vadd.f32 %v1739, %v1839
      %v1946 = vadd.f32 %v1740, %v1844
      %v1947 = vadd.f32 %v1741, %v1847
      %v1948 = vadd.f32 %v1742, %v1852
      %v1949 = vadd.f32 %v1743, %v1855
      %v1950 = vadd.f32 %v1744, %v1860
      %v1951 = vadd.f32 %v1745, %v1863
      %v1952 = vadd.f32 %v1746, %v1868
      %v1953 = vadd.f32 %v1747, %v1871
      %v1954 = vadd.f32 %v1748, %v1876
      %v1955 = vadd.f32 %v1749, %v1879
      %v1956 = vadd.f32 %v1750, %v1884
      %v1957 = vadd.f32 %v1751, %v1887
      %v1958 = vadd.f32 %v1752, %v1892
      %v1959 = vadd.f32 %v1753, %v1895
      %v1960 = vadd.f32 %v1754, %v1900
      %v1961 = vadd.f32 %v1755, %v1903
      %v1962 = vadd.f32 %v1756, %v1908
      %v1963 = vadd.f32 %v1757, %v1911
      %v1964 = vadd.f32 %v1758, %v1916
      %v1965 = vadd.f32 %v1759, %v1919
      %v1966 = vadd.f32 %v1760, %v1924
      %v1967 = vadd.f32 %v1761, %v1927
      %v1968 = vadd.f32 %v1762, %v1932
      %v1969 = vadd.f32 %v1763, %v1935
      %v1971 = vshrl.u32 %v389, 16
      %v1973 = vrot.slane %v1971, 4
      %v1974 = vshll.u32 %v389, 16
      %v1976 = vrot.slane %v1974, 5
      %v1977 = vor.u32 %v1973, %v1976
      %v1978 = vrot.slane %v1977, 4
      %v1980 = vshll.u32 %v390, 16
      %v1982 = vrot.slane %v1980, 5
      %v1983 = vsel %vm398, %v1978, %v1982
      %v1984 = vshrl.u32 %v390, 16
      %v1986 = vrot.slane %v1984, 4
      %v1987 = vor.u32 %v1986, %v1982
      %v1988 = vrot.slane %v1987, 4
      %v1990 = vshll.u32 %v391, 16
      %v1992 = vrot.slane %v1990, 5
      %v1993 = vsel %vm398, %v1988, %v1992
      %s1994 = scalar_lea.vmem %s313, 8
      %v1995 = vld [vmem:[%s1994] sm:$0x3]
      %v1996 = vunpack.c.l.b16 %v1983
      %v1997 = vunpack.c.l.b16 %v1993
      %v1998 = vpack.c.b16 %v1997, %v1996
      %v2000 = vsel %vm833, %v1998, 0
      %v2003 = vsel %vm882, %v1995, 0
      %2005 = vmatprep.subr.bf16.mxu0 0
      %2006 = vmatpush1.bf16.msra.mxu0 %v2003
      %2007 = vmatprep.subr.bf16.mxu0 0
      %2008 = vmatpush1.bf16.msra.mxu0 0
      %2009 = vmatprep.subr.bf16.mxu0 0
      %2010 = vmatpush1.bf16.msra.mxu0 0
      %2011 = vmatprep.subr.bf16.mxu0 0
      %2012 = vmatpush1.bf16.msra.mxu0 0
      %2013 = vmatprep.subr.bf16.mxu0 0
      %2014 = vmatpush1.bf16.msra.mxu0 0
      %2015 = vmatprep.subr.bf16.mxu0 0
      %2016 = vmatpush1.bf16.msra.mxu0 0
      %2017 = vmatprep.subr.bf16.mxu0 0
      %2018 = vmatpush1.bf16.msra.mxu0 0
      %2019 = vmatprep.subr.bf16.mxu0 0
      %2020 = vmatpush1.bf16.msra.mxu0 0
      %2021 = vmatprep.subr.bf16.mxu0 0
      %2022 = vmatpush1.bf16.msra.mxu0 0
      %2023 = vmatprep.subr.bf16.mxu0 0
      %2024 = vmatpush1.bf16.msra.mxu0 0
      %2025 = vmatprep.subr.bf16.mxu0 0
      %2026 = vmatpush1.bf16.msra.mxu0 0
      %2027 = vmatprep.subr.bf16.mxu0 0
      %2028 = vmatpush1.bf16.msra.mxu0 0
      %2029 = vmatprep.subr.bf16.mxu0 0
      %2030 = vmatpush1.bf16.msra.mxu0 0
      %2031 = vmatprep.subr.bf16.mxu0 0
      %2032 = vmatpush1.bf16.msra.mxu0 0
      %2033 = vmatprep.subr.bf16.mxu0 0
      %2034 = vmatpush1.bf16.msra.mxu0 0
      %2035 = vmatprep.subr.bf16.mxu0 0
      %2036 = vmatpush1.bf16.msra.mxu0 0
      %2037 = vmatprep.mubr.bf16.mxu0 0
      %2038 = vmatmul.mubr.bf16.gmra.mrb[0].mxu0 %v838
      %v2039 = vpop.f32.mrb[0].mxu0
      %v2040 = vadd.f32 0.0, %v2039
      %v2041 = vpop.f32.mrb[0].mxu0
      %v2042 = vpop.f32.mrb[0].mxu0
      %v2043 = vadd.f32 0.0, %v2042
      %v2044 = vpop.f32.mrb[0].mxu0
      %2045 = vmatprep.mubr.bf16.mxu0 0
      %2046 = vmatmul.mubr.bf16.gmra.mrb[0].mxu0 %v841
      %v2047 = vpop.f32.mrb[0].mxu0
      %v2048 = vadd.f32 0.0, %v2047
      %v2049 = vpop.f32.mrb[0].mxu0
      %v2050 = vpop.f32.mrb[0].mxu0
      %v2051 = vadd.f32 0.0, %v2050
      %v2052 = vpop.f32.mrb[0].mxu0
      %2053 = vmatprep.mubr.bf16.mxu0 0
      %2054 = vmatmul.mubr.bf16.gmra.mrb[0].mxu0 %v844
      %v2055 = vpop.f32.mrb[0].mxu0
      %v2056 = vadd.f32 0.0, %v2055
      %v2057 = vpop.f32.mrb[0].mxu0
      %v2058 = vpop.f32.mrb[0].mxu0
      %v2059 = vadd.f32 0.0, %v2058
      %v2060 = vpop.f32.mrb[0].mxu0
      %2061 = vmatprep.mubr.bf16.mxu0 0
      %2062 = vmatmul.mubr.bf16.gmra.mrb[0].mxu0 %v847
      %v2063 = vpop.f32.mrb[0].mxu0
      %v2064 = vadd.f32 0.0, %v2063
      %v2065 = vpop.f32.mrb[0].mxu0
      %v2066 = vpop.f32.mrb[0].mxu0
      %v2067 = vadd.f32 0.0, %v2066
      %v2068 = vpop.f32.mrb[0].mxu0
      %2069 = vmatprep.mubr.bf16.mxu0 0
      %2070 = vmatmul.mubr.bf16.gmra.mrb[0].mxu0 %v850
      %v2071 = vpop.f32.mrb[0].mxu0
      %v2072 = vadd.f32 0.0, %v2071
      %v2073 = vpop.f32.mrb[0].mxu0
      %v2074 = vpop.f32.mrb[0].mxu0
      %v2075 = vadd.f32 0.0, %v2074
      %v2076 = vpop.f32.mrb[0].mxu0
      %2077 = vmatprep.mubr.bf16.mxu0 0
      %2078 = vmatmul.mubr.bf16.gmra.mrb[0].mxu0 %v853
      %v2079 = vpop.f32.mrb[0].mxu0
      %v2080 = vadd.f32 0.0, %v2079
      %v2081 = vpop.f32.mrb[0].mxu0
      %v2082 = vpop.f32.mrb[0].mxu0
      %v2083 = vadd.f32 0.0, %v2082
      %v2084 = vpop.f32.mrb[0].mxu0
      %2085 = vmatprep.mubr.bf16.mxu0 0
      %2086 = vmatmul.mubr.bf16.gmra.mrb[0].mxu0 %v856
      %v2087 = vpop.f32.mrb[0].mxu0
      %v2088 = vadd.f32 0.0, %v2087
      %v2089 = vpop.f32.mrb[0].mxu0
      %v2090 = vpop.f32.mrb[0].mxu0
      %v2091 = vadd.f32 0.0, %v2090
      %v2092 = vpop.f32.mrb[0].mxu0
      %2093 = vmatprep.mubr.bf16.mxu0 0
      %2094 = vmatmul.mubr.bf16.gmra.mrb[0].mxu0 %v859
      %v2095 = vpop.f32.mrb[0].mxu0
      %v2096 = vadd.f32 0.0, %v2095
      %v2097 = vpop.f32.mrb[0].mxu0
      %v2098 = vpop.f32.mrb[0].mxu0
      %v2099 = vadd.f32 0.0, %v2098
      %v2100 = vpop.f32.mrb[0].mxu0
      %2101 = vmatprep.mubr.bf16.mxu0 0
      %2102 = vmatmul.mubr.bf16.gmra.mrb[0].mxu0 %v862
      %v2103 = vpop.f32.mrb[0].mxu0
      %v2104 = vadd.f32 0.0, %v2103
      %v2105 = vpop.f32.mrb[0].mxu0
      %v2106 = vpop.f32.mrb[0].mxu0
      %v2107 = vadd.f32 0.0, %v2106
      %v2108 = vpop.f32.mrb[0].mxu0
      %2109 = vmatprep.mubr.bf16.mxu0 0
      %2110 = vmatmul.mubr.bf16.gmra.mrb[0].mxu0 %v865
      %v2111 = vpop.f32.mrb[0].mxu0
      %v2112 = vadd.f32 0.0, %v2111
      %v2113 = vpop.f32.mrb[0].mxu0
      %v2114 = vpop.f32.mrb[0].mxu0
      %v2115 = vadd.f32 0.0, %v2114
      %v2116 = vpop.f32.mrb[0].mxu0
      %2117 = vmatprep.mubr.bf16.mxu0 0
      %2118 = vmatmul.mubr.bf16.gmra.mrb[0].mxu0 %v868
      %v2119 = vpop.f32.mrb[0].mxu0
      %v2120 = vadd.f32 0.0, %v2119
      %v2121 = vpop.f32.mrb[0].mxu0
      %v2122 = vpop.f32.mrb[0].mxu0
      %v2123 = vadd.f32 0.0, %v2122
      %v2124 = vpop.f32.mrb[0].mxu0
      %2125 = vmatprep.mubr.bf16.mxu0 0
      %2126 = vmatmul.mubr.bf16.gmra.mrb[0].mxu0 %v871
      %v2127 = vpop.f32.mrb[0].mxu0
      %v2128 = vadd.f32 0.0, %v2127
      %v2129 = vpop.f32.mrb[0].mxu0
      %v2130 = vpop.f32.mrb[0].mxu0
      %v2131 = vadd.f32 0.0, %v2130
      %v2132 = vpop.f32.mrb[0].mxu0
      %2133 = vmatprep.mubr.bf16.mxu0 0
      %2134 = vmatmul.mubr.bf16.gmra.mrb[0].mxu0 %v874
      %v2135 = vpop.f32.mrb[0].mxu0
      %v2136 = vadd.f32 0.0, %v2135
      %v2137 = vpop.f32.mrb[0].mxu0
      %v2138 = vpop.f32.mrb[0].mxu0
      %v2139 = vadd.f32 0.0, %v2138
      %v2140 = vpop.f32.mrb[0].mxu0
      %2141 = vmatprep.mubr.bf16.mxu0 0
      %2142 = vmatmul.mubr.bf16.gmra.mrb[0].mxu0 %v877
      %v2143 = vpop.f32.mrb[0].mxu0
      %v2144 = vadd.f32 0.0, %v2143
      %v2145 = vpop.f32.mrb[0].mxu0
      %v2146 = vpop.f32.mrb[0].mxu0
      %v2147 = vadd.f32 0.0, %v2146
      %v2148 = vpop.f32.mrb[0].mxu0
      %2149 = vmatprep.mubr.bf16.mxu0 0
      %2150 = vmatmul.mubr.bf16.gmra.mrb[0].mxu0 %v880
      %v2151 = vpop.f32.mrb[0].mxu0
      %v2152 = vadd.f32 0.0, %v2151
      %v2153 = vpop.f32.mrb[0].mxu0
      %v2154 = vpop.f32.mrb[0].mxu0
      %v2155 = vadd.f32 0.0, %v2154
      %v2156 = vpop.f32.mrb[0].mxu0
      %2157 = vmatprep.mubr.bf16.mxu0 0
      %2158 = vmatmul.mubr.bf16.gmra.mrb[0].mxu0 %v2000
      %v2159 = vpop.f32.mrb[0].mxu0
      %v2160 = vadd.f32 0.0, %v2159
      %v2161 = vpop.f32.mrb[0].mxu0
      %v2162 = vpop.f32.mrb[0].mxu0
      %v2163 = vadd.f32 0.0, %v2162
      %v2164 = vpop.f32.mrb[0].mxu0
      %2165 = vdwg.mxu0
      %v2166 = vadd.f32 %v1938, %v2040
      %v2167 = vadd.f32 %v1939, %v2043
      %v2168 = vadd.f32 %v1940, %v2048
      %v2169 = vadd.f32 %v1941, %v2051
      %v2170 = vadd.f32 %v1942, %v2056
      %v2171 = vadd.f32 %v1943, %v2059
      %v2172 = vadd.f32 %v1944, %v2064
      %v2173 = vadd.f32 %v1945, %v2067
      %v2174 = vadd.f32 %v1946, %v2072
      %v2175 = vadd.f32 %v1947, %v2075
      %v2176 = vadd.f32 %v1948, %v2080
      %v2177 = vadd.f32 %v1949, %v2083
      %v2178 = vadd.f32 %v1950, %v2088
      %v2179 = vadd.f32 %v1951, %v2091
      %v2180 = vadd.f32 %v1952, %v2096
      %v2181 = vadd.f32 %v1953, %v2099
      %v2182 = vadd.f32 %v1954, %v2104
      %v2183 = vadd.f32 %v1955, %v2107
      %v2184 = vadd.f32 %v1956, %v2112
      %v2185 = vadd.f32 %v1957, %v2115
      %v2186 = vadd.f32 %v1958, %v2120
      %v2187 = vadd.f32 %v1959, %v2123
      %v2188 = vadd.f32 %v1960, %v2128
      %v2189 = vadd.f32 %v1961, %v2131
      %v2190 = vadd.f32 %v1962, %v2136
      %v2191 = vadd.f32 %v1963, %v2139
      %v2192 = vadd.f32 %v1964, %v2144
      %v2193 = vadd.f32 %v1965, %v2147
      %v2194 = vadd.f32 %v1966, %v2152
      %v2195 = vadd.f32 %v1967, %v2155
      %v2196 = vadd.f32 %v1968, %v2160
      %v2197 = vadd.f32 %v1969, %v2163
      %v2199 = vrot.slane %v389, 5
      %v2200 = vrot.slane %v2199, 4
      %v2201 = vrot.slane %v390, 5
      %v2202 = vsel %vm1357, %v2200, %v2201
      %v2203 = vrot.slane %v2201, 4
      %v2204 = vrot.slane %v391, 5
      %v2205 = vsel %vm1357, %v2203, %v2204
      %s2206 = scalar_lea.vmem %s313, 10
      %v2207 = vld [vmem:[%s2206] sm:$0x3]
      %v2208 = vunpack.c.l.b16 %v2202
      %v2209 = vunpack.c.l.b16 %v2205
      %v2210 = vpack.c.b16 %v2209, %v2208
      %v2212 = vsel %vm833, %v2210, 0
      %v2215 = vsel %vm882, %v2207, 0
      %2217 = vmatprep.subr.bf16.mxu0 0
      %2218 = vmatpush1.bf16.msra.mxu0 %v2215
      %2219 = vmatprep.subr.bf16.mxu0 0
      %2220 = vmatpush1.bf16.msra.mxu0 0
      %2221 = vmatprep.subr.bf16.mxu0 0
      %2222 = vmatpush1.bf16.msra.mxu0 0
      %2223 = vmatprep.subr.bf16.mxu0 0
      %2224 = vmatpush1.bf16.msra.mxu0 0
      %2225 = vmatprep.subr.bf16.mxu0 0
      %2226 = vmatpush1.bf16.msra.mxu0 0
      %2227 = vmatprep.subr.bf16.mxu0 0
      %2228 = vmatpush1.bf16.msra.mxu0 0
      %2229 = vmatprep.subr.bf16.mxu0 0
      %2230 = vmatpush1.bf16.msra.mxu0 0
      %2231 = vmatprep.subr.bf16.mxu0 0
      %2232 = vmatpush1.bf16.msra.mxu0 0
      %2233 = vmatprep.subr.bf16.mxu0 0
      %2234 = vmatpush1.bf16.msra.mxu0 0
      %2235 = vmatprep.subr.bf16.mxu0 0
      %2236 = vmatpush1.bf16.msra.mxu0 0
      %2237 = vmatprep.subr.bf16.mxu0 0
      %2238 = vmatpush1.bf16.msra.mxu0 0
      %2239 = vmatprep.subr.bf16.mxu0 0
      %2240 = vmatpush1.bf16.msra.mxu0 0
      %2241 = vmatprep.subr.bf16.mxu0 0
      %2242 = vmatpush1.bf16.msra.mxu0 0
      %2243 = vmatprep.subr.bf16.mxu0 0
      %2244 = vmatpush1.bf16.msra.mxu0 0
      %2245 = vmatprep.subr.bf16.mxu0 0
      %2246 = vmatpush1.bf16.msra.mxu0 0
      %2247 = vmatprep.subr.bf16.mxu0 0
      %2248 = vmatpush1.bf16.msra.mxu0 0
      %2249 = vmatprep.mubr.bf16.mxu0 0
      %2250 = vmatmul.mubr.bf16.gmra.mrb[0].mxu0 %v1524
      %v2251 = vpop.f32.mrb[0].mxu0
      %v2252 = vadd.f32 0.0, %v2251
      %v2253 = vpop.f32.mrb[0].mxu0
      %v2254 = vpop.f32.mrb[0].mxu0
      %v2255 = vadd.f32 0.0, %v2254
      %v2256 = vpop.f32.mrb[0].mxu0
      %2257 = vmatprep.mubr.bf16.mxu0 0
      %2258 = vmatmul.mubr.bf16.gmra.mrb[0].mxu0 %v1527
      %v2259 = vpop.f32.mrb[0].mxu0
      %v2260 = vadd.f32 0.0, %v2259
      %v2261 = vpop.f32.mrb[0].mxu0
      %v2262 = vpop.f32.mrb[0].mxu0
      %v2263 = vadd.f32 0.0, %v2262
      %v2264 = vpop.f32.mrb[0].mxu0
      %2265 = vmatprep.mubr.bf16.mxu0 0
      %2266 = vmatmul.mubr.bf16.gmra.mrb[0].mxu0 %v1530
      %v2267 = vpop.f32.mrb[0].mxu0
      %v2268 = vadd.f32 0.0, %v2267
      %v2269 = vpop.f32.mrb[0].mxu0
      %v2270 = vpop.f32.mrb[0].mxu0
      %v2271 = vadd.f32 0.0, %v2270
      %v2272 = vpop.f32.mrb[0].mxu0
      %2273 = vmatprep.mubr.bf16.mxu0 0
      %2274 = vmatmul.mubr.bf16.gmra.mrb[0].mxu0 %v1533
      %v2275 = vpop.f32.mrb[0].mxu0
      %v2276 = vadd.f32 0.0, %v2275
      %v2277 = vpop.f32.mrb[0].mxu0
      %v2278 = vpop.f32.mrb[0].mxu0
      %v2279 = vadd.f32 0.0, %v2278
      %v2280 = vpop.f32.mrb[0].mxu0
      %2281 = vmatprep.mubr.bf16.mxu0 0
      %2282 = vmatmul.mubr.bf16.gmra.mrb[0].mxu0 %v1536
      %v2283 = vpop.f32.mrb[0].mxu0
      %v2284 = vadd.f32 0.0, %v2283
      %v2285 = vpop.f32.mrb[0].mxu0
      %v2286 = vpop.f32.mrb[0].mxu0
      %v2287 = vadd.f32 0.0, %v2286
      %v2288 = vpop.f32.mrb[0].mxu0
      %2289 = vmatprep.mubr.bf16.mxu0 0
      %2290 = vmatmul.mubr.bf16.gmra.mrb[0].mxu0 %v1539
      %v2291 = vpop.f32.mrb[0].mxu0
      %v2292 = vadd.f32 0.0, %v2291
      %v2293 = vpop.f32.mrb[0].mxu0
      %v2294 = vpop.f32.mrb[0].mxu0
      %v2295 = vadd.f32 0.0, %v2294
      %v2296 = vpop.f32.mrb[0].mxu0
      %2297 = vmatprep.mubr.bf16.mxu0 0
      %2298 = vmatmul.mubr.bf16.gmra.mrb[0].mxu0 %v1542
      %v2299 = vpop.f32.mrb[0].mxu0
      %v2300 = vadd.f32 0.0, %v2299
      %v2301 = vpop.f32.mrb[0].mxu0
      %v2302 = vpop.f32.mrb[0].mxu0
      %v2303 = vadd.f32 0.0, %v2302
      %v2304 = vpop.f32.mrb[0].mxu0
      %2305 = vmatprep.mubr.bf16.mxu0 0
      %2306 = vmatmul.mubr.bf16.gmra.mrb[0].mxu0 %v1545
      %v2307 = vpop.f32.mrb[0].mxu0
      %v2308 = vadd.f32 0.0, %v2307
      %v2309 = vpop.f32.mrb[0].mxu0
      %v2310 = vpop.f32.mrb[0].mxu0
      %v2311 = vadd.f32 0.0, %v2310
      %v2312 = vpop.f32.mrb[0].mxu0
      %2313 = vmatprep.mubr.bf16.mxu0 0
      %2314 = vmatmul.mubr.bf16.gmra.mrb[0].mxu0 %v1548
      %v2315 = vpop.f32.mrb[0].mxu0
      %v2316 = vadd.f32 0.0, %v2315
      %v2317 = vpop.f32.mrb[0].mxu0
      %v2318 = vpop.f32.mrb[0].mxu0
      %v2319 = vadd.f32 0.0, %v2318
      %v2320 = vpop.f32.mrb[0].mxu0
      %2321 = vmatprep.mubr.bf16.mxu0 0
      %2322 = vmatmul.mubr.bf16.gmra.mrb[0].mxu0 %v1551
      %v2323 = vpop.f32.mrb[0].mxu0
      %v2324 = vadd.f32 0.0, %v2323
      %v2325 = vpop.f32.mrb[0].mxu0
      %v2326 = vpop.f32.mrb[0].mxu0
      %v2327 = vadd.f32 0.0, %v2326
      %v2328 = vpop.f32.mrb[0].mxu0
      %2329 = vmatprep.mubr.bf16.mxu0 0
      %2330 = vmatmul.mubr.bf16.gmra.mrb[0].mxu0 %v1554
      %v2331 = vpop.f32.mrb[0].mxu0
      %v2332 = vadd.f32 0.0, %v2331
      %v2333 = vpop.f32.mrb[0].mxu0
      %v2334 = vpop.f32.mrb[0].mxu0
      %v2335 = vadd.f32 0.0, %v2334
      %v2336 = vpop.f32.mrb[0].mxu0
      %2337 = vmatprep.mubr.bf16.mxu0 0
      %2338 = vmatmul.mubr.bf16.gmra.mrb[0].mxu0 %v1557
      %v2339 = vpop.f32.mrb[0].mxu0
      %v2340 = vadd.f32 0.0, %v2339
      %v2341 = vpop.f32.mrb[0].mxu0
      %v2342 = vpop.f32.mrb[0].mxu0
      %v2343 = vadd.f32 0.0, %v2342
      %v2344 = vpop.f32.mrb[0].mxu0
      %2345 = vmatprep.mubr.bf16.mxu0 0
      %2346 = vmatmul.mubr.bf16.gmra.mrb[0].mxu0 %v1560
      %v2347 = vpop.f32.mrb[0].mxu0
      %v2348 = vadd.f32 0.0, %v2347
      %v2349 = vpop.f32.mrb[0].mxu0
      %v2350 = vpop.f32.mrb[0].mxu0
      %v2351 = vadd.f32 0.0, %v2350
      %v2352 = vpop.f32.mrb[0].mxu0
      %2353 = vmatprep.mubr.bf16.mxu0 0
      %2354 = vmatmul.mubr.bf16.gmra.mrb[0].mxu0 %v1563
      %v2355 = vpop.f32.mrb[0].mxu0
      %v2356 = vadd.f32 0.0, %v2355
      %v2357 = vpop.f32.mrb[0].mxu0
      %v2358 = vpop.f32.mrb[0].mxu0
      %v2359 = vadd.f32 0.0, %v2358
      %v2360 = vpop.f32.mrb[0].mxu0
      %2361 = vmatprep.mubr.bf16.mxu0 0
      %2362 = vmatmul.mubr.bf16.gmra.mrb[0].mxu0 %v1566
      %v2363 = vpop.f32.mrb[0].mxu0
      %v2364 = vadd.f32 0.0, %v2363
      %v2365 = vpop.f32.mrb[0].mxu0
      %v2366 = vpop.f32.mrb[0].mxu0
      %v2367 = vadd.f32 0.0, %v2366
      %v2368 = vpop.f32.mrb[0].mxu0
      %2369 = vmatprep.mubr.bf16.mxu0 0
      %2370 = vmatmul.mubr.bf16.gmra.mrb[0].mxu0 %v2212
      %v2371 = vpop.f32.mrb[0].mxu0
      %v2372 = vadd.f32 0.0, %v2371
      %v2373 = vpop.f32.mrb[0].mxu0
      %v2374 = vpop.f32.mrb[0].mxu0
      %v2375 = vadd.f32 0.0, %v2374
      %v2376 = vpop.f32.mrb[0].mxu0
      %2377 = vdwg.mxu0
      %v2378 = vadd.f32 %v2166, %v2252
      %v2379 = vadd.f32 %v2167, %v2255
      %v2380 = vadd.f32 %v2168, %v2260
      %v2381 = vadd.f32 %v2169, %v2263
      %v2382 = vadd.f32 %v2170, %v2268
      %v2383 = vadd.f32 %v2171, %v2271
      %v2384 = vadd.f32 %v2172, %v2276
      %v2385 = vadd.f32 %v2173, %v2279
      %v2386 = vadd.f32 %v2174, %v2284
      %v2387 = vadd.f32 %v2175, %v2287
      %v2388 = vadd.f32 %v2176, %v2292
      %v2389 = vadd.f32 %v2177, %v2295
      %v2390 = vadd.f32 %v2178, %v2300
      %v2391 = vadd.f32 %v2179, %v2303
      %v2392 = vadd.f32 %v2180, %v2308
      %v2393 = vadd.f32 %v2181, %v2311
      %v2394 = vadd.f32 %v2182, %v2316
      %v2395 = vadd.f32 %v2183, %v2319
      %v2396 = vadd.f32 %v2184, %v2324
      %v2397 = vadd.f32 %v2185, %v2327
      %v2398 = vadd.f32 %v2186, %v2332
      %v2399 = vadd.f32 %v2187, %v2335
      %v2400 = vadd.f32 %v2188, %v2340
      %v2401 = vadd.f32 %v2189, %v2343
      %v2402 = vadd.f32 %v2190, %v2348
      %v2403 = vadd.f32 %v2191, %v2351
      %v2404 = vadd.f32 %v2192, %v2356
      %v2405 = vadd.f32 %v2193, %v2359
      %v2406 = vadd.f32 %v2194, %v2364
      %v2407 = vadd.f32 %v2195, %v2367
      %v2408 = vadd.f32 %v2196, %v2372
      %v2409 = vadd.f32 %v2197, %v2375
      %s2410 = scalar_lea.vmem %s313, 12
      %v2411 = vld [vmem:[%s2410] sm:$0x3]
      %v2414 = vunpack.c.l.b16 %v392
      %v2415 = vunpack.c.l.b16 %v393
      %v2416 = vpack.c.b16 %v2415, %v2414
      %v2418 = vsel %vm833, %v2416, 0
      %v2421 = vsel %vm882, %v2411, 0
      %2423 = vmatprep.subr.bf16.mxu0 0
      %2424 = vmatpush1.bf16.msra.mxu0 %v2421
      %2425 = vmatprep.subr.bf16.mxu0 0
      %2426 = vmatpush1.bf16.msra.mxu0 0
      %2427 = vmatprep.subr.bf16.mxu0 0
      %2428 = vmatpush1.bf16.msra.mxu0 0
      %2429 = vmatprep.subr.bf16.mxu0 0
      %2430 = vmatpush1.bf16.msra.mxu0 0
      %2431 = vmatprep.subr.bf16.mxu0 0
      %2432 = vmatpush1.bf16.msra.mxu0 0
      %2433 = vmatprep.subr.bf16.mxu0 0
      %2434 = vmatpush1.bf16.msra.mxu0 0
      %2435 = vmatprep.subr.bf16.mxu0 0
      %2436 = vmatpush1.bf16.msra.mxu0 0
      %2437 = vmatprep.subr.bf16.mxu0 0
      %2438 = vmatpush1.bf16.msra.mxu0 0
      %2439 = vmatprep.subr.bf16.mxu0 0
      %2440 = vmatpush1.bf16.msra.mxu0 0
      %2441 = vmatprep.subr.bf16.mxu0 0
      %2442 = vmatpush1.bf16.msra.mxu0 0
      %2443 = vmatprep.subr.bf16.mxu0 0
      %2444 = vmatpush1.bf16.msra.mxu0 0
      %2445 = vmatprep.subr.bf16.mxu0 0
      %2446 = vmatpush1.bf16.msra.mxu0 0
      %2447 = vmatprep.subr.bf16.mxu0 0
      %2448 = vmatpush1.bf16.msra.mxu0 0
      %2449 = vmatprep.subr.bf16.mxu0 0
      %2450 = vmatpush1.bf16.msra.mxu0 0
      %2451 = vmatprep.subr.bf16.mxu0 0
      %2452 = vmatpush1.bf16.msra.mxu0 0
      %2453 = vmatprep.subr.bf16.mxu0 0
      %2454 = vmatpush1.bf16.msra.mxu0 0
      %2455 = vmatprep.mubr.bf16.mxu0 0
      %2456 = vmatmul.mubr.bf16.gmra.mrb[0].mxu0 %v1134
      %v2457 = vpop.f32.mrb[0].mxu0
      %v2458 = vadd.f32 0.0, %v2457
      %v2459 = vpop.f32.mrb[0].mxu0
      %v2460 = vpop.f32.mrb[0].mxu0
      %v2461 = vadd.f32 0.0, %v2460
      %v2462 = vpop.f32.mrb[0].mxu0
      %2463 = vmatprep.mubr.bf16.mxu0 0
      %2464 = vmatmul.mubr.bf16.gmra.mrb[0].mxu0 %v1137
      %v2465 = vpop.f32.mrb[0].mxu0
      %v2466 = vadd.f32 0.0, %v2465
      %v2467 = vpop.f32.mrb[0].mxu0
      %v2468 = vpop.f32.mrb[0].mxu0
      %v2469 = vadd.f32 0.0, %v2468
      %v2470 = vpop.f32.mrb[0].mxu0
      %2471 = vmatprep.mubr.bf16.mxu0 0
      %2472 = vmatmul.mubr.bf16.gmra.mrb[0].mxu0 %v1140
      %v2473 = vpop.f32.mrb[0].mxu0
      %v2474 = vadd.f32 0.0, %v2473
      %v2475 = vpop.f32.mrb[0].mxu0
      %v2476 = vpop.f32.mrb[0].mxu0
      %v2477 = vadd.f32 0.0, %v2476
      %v2478 = vpop.f32.mrb[0].mxu0
      %2479 = vmatprep.mubr.bf16.mxu0 0
      %2480 = vmatmul.mubr.bf16.gmra.mrb[0].mxu0 %v1143
      %v2481 = vpop.f32.mrb[0].mxu0
      %v2482 = vadd.f32 0.0, %v2481
      %v2483 = vpop.f32.mrb[0].mxu0
      %v2484 = vpop.f32.mrb[0].mxu0
      %v2485 = vadd.f32 0.0, %v2484
      %v2486 = vpop.f32.mrb[0].mxu0
      %2487 = vmatprep.mubr.bf16.mxu0 0
      %2488 = vmatmul.mubr.bf16.gmra.mrb[0].mxu0 %v1146
      %v2489 = vpop.f32.mrb[0].mxu0
      %v2490 = vadd.f32 0.0, %v2489
      %v2491 = vpop.f32.mrb[0].mxu0
      %v2492 = vpop.f32.mrb[0].mxu0
      %v2493 = vadd.f32 0.0, %v2492
      %v2494 = vpop.f32.mrb[0].mxu0
      %2495 = vmatprep.mubr.bf16.mxu0 0
      %2496 = vmatmul.mubr.bf16.gmra.mrb[0].mxu0 %v1149
      %v2497 = vpop.f32.mrb[0].mxu0
      %v2498 = vadd.f32 0.0, %v2497
      %v2499 = vpop.f32.mrb[0].mxu0
      %v2500 = vpop.f32.mrb[0].mxu0
      %v2501 = vadd.f32 0.0, %v2500
      %v2502 = vpop.f32.mrb[0].mxu0
      %2503 = vmatprep.mubr.bf16.mxu0 0
      %2504 = vmatmul.mubr.bf16.gmra.mrb[0].mxu0 %v1152
      %v2505 = vpop.f32.mrb[0].mxu0
      %v2506 = vadd.f32 0.0, %v2505
      %v2507 = vpop.f32.mrb[0].mxu0
      %v2508 = vpop.f32.mrb[0].mxu0
      %v2509 = vadd.f32 0.0, %v2508
      %v2510 = vpop.f32.mrb[0].mxu0
      %2511 = vmatprep.mubr.bf16.mxu0 0
      %2512 = vmatmul.mubr.bf16.gmra.mrb[0].mxu0 %v1155
      %v2513 = vpop.f32.mrb[0].mxu0
      %v2514 = vadd.f32 0.0, %v2513
      %v2515 = vpop.f32.mrb[0].mxu0
      %v2516 = vpop.f32.mrb[0].mxu0
      %v2517 = vadd.f32 0.0, %v2516
      %v2518 = vpop.f32.mrb[0].mxu0
      %2519 = vmatprep.mubr.bf16.mxu0 0
      %2520 = vmatmul.mubr.bf16.gmra.mrb[0].mxu0 %v1158
      %v2521 = vpop.f32.mrb[0].mxu0
      %v2522 = vadd.f32 0.0, %v2521
      %v2523 = vpop.f32.mrb[0].mxu0
      %v2524 = vpop.f32.mrb[0].mxu0
      %v2525 = vadd.f32 0.0, %v2524
      %v2526 = vpop.f32.mrb[0].mxu0
      %2527 = vmatprep.mubr.bf16.mxu0 0
      %2528 = vmatmul.mubr.bf16.gmra.mrb[0].mxu0 %v1161
      %v2529 = vpop.f32.mrb[0].mxu0
      %v2530 = vadd.f32 0.0, %v2529
      %v2531 = vpop.f32.mrb[0].mxu0
      %v2532 = vpop.f32.mrb[0].mxu0
      %v2533 = vadd.f32 0.0, %v2532
      %v2534 = vpop.f32.mrb[0].mxu0
      %2535 = vmatprep.mubr.bf16.mxu0 0
      %2536 = vmatmul.mubr.bf16.gmra.mrb[0].mxu0 %v1164
      %v2537 = vpop.f32.mrb[0].mxu0
      %v2538 = vadd.f32 0.0, %v2537
      %v2539 = vpop.f32.mrb[0].mxu0
      %v2540 = vpop.f32.mrb[0].mxu0
      %v2541 = vadd.f32 0.0, %v2540
      %v2542 = vpop.f32.mrb[0].mxu0
      %2543 = vmatprep.mubr.bf16.mxu0 0
      %2544 = vmatmul.mubr.bf16.gmra.mrb[0].mxu0 %v1167
      %v2545 = vpop.f32.mrb[0].mxu0
      %v2546 = vadd.f32 0.0, %v2545
      %v2547 = vpop.f32.mrb[0].mxu0
      %v2548 = vpop.f32.mrb[0].mxu0
      %v2549 = vadd.f32 0.0, %v2548
      %v2550 = vpop.f32.mrb[0].mxu0
      %2551 = vmatprep.mubr.bf16.mxu0 0
      %2552 = vmatmul.mubr.bf16.gmra.mrb[0].mxu0 %v1170
      %v2553 = vpop.f32.mrb[0].mxu0
      %v2554 = vadd.f32 0.0, %v2553
      %v2555 = vpop.f32.mrb[0].mxu0
      %v2556 = vpop.f32.mrb[0].mxu0
      %v2557 = vadd.f32 0.0, %v2556
      %v2558 = vpop.f32.mrb[0].mxu0
      %2559 = vmatprep.mubr.bf16.mxu0 0
      %2560 = vmatmul.mubr.bf16.gmra.mrb[0].mxu0 %v1173
      %v2561 = vpop.f32.mrb[0].mxu0
      %v2562 = vadd.f32 0.0, %v2561
      %v2563 = vpop.f32.mrb[0].mxu0
      %v2564 = vpop.f32.mrb[0].mxu0
      %v2565 = vadd.f32 0.0, %v2564
      %v2566 = vpop.f32.mrb[0].mxu0
      %2567 = vmatprep.mubr.bf16.mxu0 0
      %2568 = vmatmul.mubr.bf16.gmra.mrb[0].mxu0 %v1772
      %v2569 = vpop.f32.mrb[0].mxu0
      %v2570 = vadd.f32 0.0, %v2569
      %v2571 = vpop.f32.mrb[0].mxu0
      %v2572 = vpop.f32.mrb[0].mxu0
      %v2573 = vadd.f32 0.0, %v2572
      %v2574 = vpop.f32.mrb[0].mxu0
      %2575 = vmatprep.mubr.bf16.mxu0 0
      %2576 = vmatmul.mubr.bf16.gmra.mrb[0].mxu0 %v2418
      %v2577 = vpop.f32.mrb[0].mxu0
      %v2578 = vadd.f32 0.0, %v2577
      %v2579 = vpop.f32.mrb[0].mxu0
      %v2580 = vpop.f32.mrb[0].mxu0
      %v2581 = vadd.f32 0.0, %v2580
      %v2582 = vpop.f32.mrb[0].mxu0
      %2583 = vdwg.mxu0
      %v2584 = vadd.f32 %v2378, %v2458
      %v2585 = vadd.f32 %v2379, %v2461
      %v2586 = vadd.f32 %v2380, %v2466
      %v2587 = vadd.f32 %v2381, %v2469
      %v2588 = vadd.f32 %v2382, %v2474
      %v2589 = vadd.f32 %v2383, %v2477
      %v2590 = vadd.f32 %v2384, %v2482
      %v2591 = vadd.f32 %v2385, %v2485
      %v2592 = vadd.f32 %v2386, %v2490
      %v2593 = vadd.f32 %v2387, %v2493
      %v2594 = vadd.f32 %v2388, %v2498
      %v2595 = vadd.f32 %v2389, %v2501
      %v2596 = vadd.f32 %v2390, %v2506
      %v2597 = vadd.f32 %v2391, %v2509
      %v2598 = vadd.f32 %v2392, %v2514
      %v2599 = vadd.f32 %v2393, %v2517
      %v2600 = vadd.f32 %v2394, %v2522
      %v2601 = vadd.f32 %v2395, %v2525
      %v2602 = vadd.f32 %v2396, %v2530
      %v2603 = vadd.f32 %v2397, %v2533
      %v2604 = vadd.f32 %v2398, %v2538
      %v2605 = vadd.f32 %v2399, %v2541
      %v2606 = vadd.f32 %v2400, %v2546
      %v2607 = vadd.f32 %v2401, %v2549
      %v2608 = vadd.f32 %v2402, %v2554
      %v2609 = vadd.f32 %v2403, %v2557
      %v2610 = vadd.f32 %v2404, %v2562
      %v2611 = vadd.f32 %v2405, %v2565
      %v2612 = vadd.f32 %v2406, %v2570
      %v2613 = vadd.f32 %v2407, %v2573
      %v2614 = vadd.f32 %v2408, %v2578
      %v2615 = vadd.f32 %v2409, %v2581
      %v2617 = vshrl.u32 %v392, 16
      %v2619 = vrot.slane %v2617, 4
      %v2620 = vshll.u32 %v392, 16
      %v2622 = vrot.slane %v2620, 5
      %v2623 = vor.u32 %v2619, %v2622
      %v2624 = vrot.slane %v2623, 4
      %v2626 = vshll.u32 %v393, 16
      %v2628 = vrot.slane %v2626, 5
      %v2629 = vsel %vm398, %v2624, %v2628
      %v2630 = vshrl.u32 %v393, 16
      %v2632 = vrot.slane %v2630, 4
      %v2633 = vor.u32 %v2632, %v2628
      %v2634 = vrot.slane %v2633, 4
      %v2636 = vshll.u32 %v394, 16
      %v2638 = vrot.slane %v2636, 5
      %v2639 = vsel %vm398, %v2634, %v2638
      %s2640 = scalar_lea.vmem %s313, 14
      %v2641 = vld [vmem:[%s2640] sm:$0x3]
      %v2642 = vunpack.c.l.b16 %v2629
      %v2643 = vunpack.c.l.b16 %v2639
      %v2644 = vpack.c.b16 %v2643, %v2642
      %v2646 = vsel %vm833, %v2644, 0
      %v2649 = vsel %vm882, %v2641, 0
      %2651 = vmatprep.subr.bf16.mxu0 0
      %2652 = vmatpush1.bf16.msra.mxu0 %v2649
      %2653 = vmatprep.subr.bf16.mxu0 0
      %2654 = vmatpush1.bf16.msra.mxu0 0
      %2655 = vmatprep.subr.bf16.mxu0 0
      %2656 = vmatpush1.bf16.msra.mxu0 0
      %2657 = vmatprep.subr.bf16.mxu0 0
      %2658 = vmatpush1.bf16.msra.mxu0 0
      %2659 = vmatprep.subr.bf16.mxu0 0
      %2660 = vmatpush1.bf16.msra.mxu0 0
      %2661 = vmatprep.subr.bf16.mxu0 0
      %2662 = vmatpush1.bf16.msra.mxu0 0
      %2663 = vmatprep.subr.bf16.mxu0 0
      %2664 = vmatpush1.bf16.msra.mxu0 0
      %2665 = vmatprep.subr.bf16.mxu0 0
      %2666 = vmatpush1.bf16.msra.mxu0 0
      %2667 = vmatprep.subr.bf16.mxu0 0
      %2668 = vmatpush1.bf16.msra.mxu0 0
      %2669 = vmatprep.subr.bf16.mxu0 0
      %2670 = vmatpush1.bf16.msra.mxu0 0
      %2671 = vmatprep.subr.bf16.mxu0 0
      %2672 = vmatpush1.bf16.msra.mxu0 0
      %2673 = vmatprep.subr.bf16.mxu0 0
      %2674 = vmatpush1.bf16.msra.mxu0 0
      %2675 = vmatprep.subr.bf16.mxu0 0
      %2676 = vmatpush1.bf16.msra.mxu0 0
      %2677 = vmatprep.subr.bf16.mxu0 0
      %2678 = vmatpush1.bf16.msra.mxu0 0
      %2679 = vmatprep.subr.bf16.mxu0 0
      %2680 = vmatpush1.bf16.msra.mxu0 0
      %2681 = vmatprep.subr.bf16.mxu0 0
      %2682 = vmatpush1.bf16.msra.mxu0 0
      %2683 = vmatprep.mubr.bf16.mxu0 0
      %2684 = vmatmul.mubr.bf16.gmra.mrb[0].mxu0 %v841
      %v2685 = vpop.f32.mrb[0].mxu0
      %v2686 = vadd.f32 0.0, %v2685
      %v2687 = vpop.f32.mrb[0].mxu0
      %v2688 = vpop.f32.mrb[0].mxu0
      %v2689 = vadd.f32 0.0, %v2688
      %v2690 = vpop.f32.mrb[0].mxu0
      %2691 = vmatprep.mubr.bf16.mxu0 0
      %2692 = vmatmul.mubr.bf16.gmra.mrb[0].mxu0 %v844
      %v2693 = vpop.f32.mrb[0].mxu0
      %v2694 = vadd.f32 0.0, %v2693
      %v2695 = vpop.f32.mrb[0].mxu0
      %v2696 = vpop.f32.mrb[0].mxu0
      %v2697 = vadd.f32 0.0, %v2696
      %v2698 = vpop.f32.mrb[0].mxu0
      %2699 = vmatprep.mubr.bf16.mxu0 0
      %2700 = vmatmul.mubr.bf16.gmra.mrb[0].mxu0 %v847
      %v2701 = vpop.f32.mrb[0].mxu0
      %v2702 = vadd.f32 0.0, %v2701
      %v2703 = vpop.f32.mrb[0].mxu0
      %v2704 = vpop.f32.mrb[0].mxu0
      %v2705 = vadd.f32 0.0, %v2704
      %v2706 = vpop.f32.mrb[0].mxu0
      %2707 = vmatprep.mubr.bf16.mxu0 0
      %2708 = vmatmul.mubr.bf16.gmra.mrb[0].mxu0 %v850
      %v2709 = vpop.f32.mrb[0].mxu0
      %v2710 = vadd.f32 0.0, %v2709
      %v2711 = vpop.f32.mrb[0].mxu0
      %v2712 = vpop.f32.mrb[0].mxu0
      %v2713 = vadd.f32 0.0, %v2712
      %v2714 = vpop.f32.mrb[0].mxu0
      %2715 = vmatprep.mubr.bf16.mxu0 0
      %2716 = vmatmul.mubr.bf16.gmra.mrb[0].mxu0 %v853
      %v2717 = vpop.f32.mrb[0].mxu0
      %v2718 = vadd.f32 0.0, %v2717
      %v2719 = vpop.f32.mrb[0].mxu0
      %v2720 = vpop.f32.mrb[0].mxu0
      %v2721 = vadd.f32 0.0, %v2720
      %v2722 = vpop.f32.mrb[0].mxu0
      %2723 = vmatprep.mubr.bf16.mxu0 0
      %2724 = vmatmul.mubr.bf16.gmra.mrb[0].mxu0 %v856
      %v2725 = vpop.f32.mrb[0].mxu0
      %v2726 = vadd.f32 0.0, %v2725
      %v2727 = vpop.f32.mrb[0].mxu0
      %v2728 = vpop.f32.mrb[0].mxu0
      %v2729 = vadd.f32 0.0, %v2728
      %v2730 = vpop.f32.mrb[0].mxu0
      %2731 = vmatprep.mubr.bf16.mxu0 0
      %2732 = vmatmul.mubr.bf16.gmra.mrb[0].mxu0 %v859
      %v2733 = vpop.f32.mrb[0].mxu0
      %v2734 = vadd.f32 0.0, %v2733
      %v2735 = vpop.f32.mrb[0].mxu0
      %v2736 = vpop.f32.mrb[0].mxu0
      %v2737 = vadd.f32 0.0, %v2736
      %v2738 = vpop.f32.mrb[0].mxu0
      %2739 = vmatprep.mubr.bf16.mxu0 0
      %2740 = vmatmul.mubr.bf16.gmra.mrb[0].mxu0 %v862
      %v2741 = vpop.f32.mrb[0].mxu0
      %v2742 = vadd.f32 0.0, %v2741
      %v2743 = vpop.f32.mrb[0].mxu0
      %v2744 = vpop.f32.mrb[0].mxu0
      %v2745 = vadd.f32 0.0, %v2744
      %v2746 = vpop.f32.mrb[0].mxu0
      %2747 = vmatprep.mubr.bf16.mxu0 0
      %2748 = vmatmul.mubr.bf16.gmra.mrb[0].mxu0 %v865
      %v2749 = vpop.f32.mrb[0].mxu0
      %v2750 = vadd.f32 0.0, %v2749
      %v2751 = vpop.f32.mrb[0].mxu0
      %v2752 = vpop.f32.mrb[0].mxu0
      %v2753 = vadd.f32 0.0, %v2752
      %v2754 = vpop.f32.mrb[0].mxu0
      %2755 = vmatprep.mubr.bf16.mxu0 0
      %2756 = vmatmul.mubr.bf16.gmra.mrb[0].mxu0 %v868
      %v2757 = vpop.f32.mrb[0].mxu0
      %v2758 = vadd.f32 0.0, %v2757
      %v2759 = vpop.f32.mrb[0].mxu0
      %v2760 = vpop.f32.mrb[0].mxu0
      %v2761 = vadd.f32 0.0, %v2760
      %v2762 = vpop.f32.mrb[0].mxu0
      %2763 = vmatprep.mubr.bf16.mxu0 0
      %2764 = vmatmul.mubr.bf16.gmra.mrb[0].mxu0 %v871
      %v2765 = vpop.f32.mrb[0].mxu0
      %v2766 = vadd.f32 0.0, %v2765
      %v2767 = vpop.f32.mrb[0].mxu0
      %v2768 = vpop.f32.mrb[0].mxu0
      %v2769 = vadd.f32 0.0, %v2768
      %v2770 = vpop.f32.mrb[0].mxu0
      %2771 = vmatprep.mubr.bf16.mxu0 0
      %2772 = vmatmul.mubr.bf16.gmra.mrb[0].mxu0 %v874
      %v2773 = vpop.f32.mrb[0].mxu0
      %v2774 = vadd.f32 0.0, %v2773
      %v2775 = vpop.f32.mrb[0].mxu0
      %v2776 = vpop.f32.mrb[0].mxu0
      %v2777 = vadd.f32 0.0, %v2776
      %v2778 = vpop.f32.mrb[0].mxu0
      %2779 = vmatprep.mubr.bf16.mxu0 0
      %2780 = vmatmul.mubr.bf16.gmra.mrb[0].mxu0 %v877
      %v2781 = vpop.f32.mrb[0].mxu0
      %v2782 = vadd.f32 0.0, %v2781
      %v2783 = vpop.f32.mrb[0].mxu0
      %v2784 = vpop.f32.mrb[0].mxu0
      %v2785 = vadd.f32 0.0, %v2784
      %v2786 = vpop.f32.mrb[0].mxu0
      %2787 = vmatprep.mubr.bf16.mxu0 0
      %2788 = vmatmul.mubr.bf16.gmra.mrb[0].mxu0 %v880
      %v2789 = vpop.f32.mrb[0].mxu0
      %v2790 = vadd.f32 0.0, %v2789
      %v2791 = vpop.f32.mrb[0].mxu0
      %v2792 = vpop.f32.mrb[0].mxu0
      %v2793 = vadd.f32 0.0, %v2792
      %v2794 = vpop.f32.mrb[0].mxu0
      %2795 = vmatprep.mubr.bf16.mxu0 0
      %2796 = vmatmul.mubr.bf16.gmra.mrb[0].mxu0 %v2000
      %v2797 = vpop.f32.mrb[0].mxu0
      %v2798 = vadd.f32 0.0, %v2797
      %v2799 = vpop.f32.mrb[0].mxu0
      %v2800 = vpop.f32.mrb[0].mxu0
      %v2801 = vadd.f32 0.0, %v2800
      %v2802 = vpop.f32.mrb[0].mxu0
      %2803 = vmatprep.mubr.bf16.mxu0 0
      %2804 = vmatmul.mubr.bf16.gmra.mrb[0].mxu0 %v2646
      %v2805 = vpop.f32.mrb[0].mxu0
      %v2806 = vadd.f32 0.0, %v2805
      %v2807 = vpop.f32.mrb[0].mxu0
      %v2808 = vpop.f32.mrb[0].mxu0
      %v2809 = vadd.f32 0.0, %v2808
      %v2810 = vpop.f32.mrb[0].mxu0
      %2811 = vdwg.mxu0
      %v2812 = vadd.f32 %v2584, %v2686
      %v2813 = vadd.f32 %v2585, %v2689
      %v2814 = vadd.f32 %v2586, %v2694
      %v2815 = vadd.f32 %v2587, %v2697
      %v2816 = vadd.f32 %v2588, %v2702
      %v2817 = vadd.f32 %v2589, %v2705
      %v2818 = vadd.f32 %v2590, %v2710
      %v2819 = vadd.f32 %v2591, %v2713
      %v2820 = vadd.f32 %v2592, %v2718
      %v2821 = vadd.f32 %v2593, %v2721
      %v2822 = vadd.f32 %v2594, %v2726
      %v2823 = vadd.f32 %v2595, %v2729
      %v2824 = vadd.f32 %v2596, %v2734
      %v2825 = vadd.f32 %v2597, %v2737
      %v2826 = vadd.f32 %v2598, %v2742
      %v2827 = vadd.f32 %v2599, %v2745
      %v2828 = vadd.f32 %v2600, %v2750
      %v2829 = vadd.f32 %v2601, %v2753
      %v2830 = vadd.f32 %v2602, %v2758
      %v2831 = vadd.f32 %v2603, %v2761
      %v2832 = vadd.f32 %v2604, %v2766
      %v2833 = vadd.f32 %v2605, %v2769
      %v2834 = vadd.f32 %v2606, %v2774
      %v2835 = vadd.f32 %v2607, %v2777
      %v2836 = vadd.f32 %v2608, %v2782
      %v2837 = vadd.f32 %v2609, %v2785
      %v2838 = vadd.f32 %v2610, %v2790
      %v2839 = vadd.f32 %v2611, %v2793
      %v2840 = vadd.f32 %v2612, %v2798
      %v2841 = vadd.f32 %v2613, %v2801
      %v2842 = vadd.f32 %v2614, %v2806
      %v2843 = vadd.f32 %v2615, %v2809
      %v2845 = vrot.slane %v392, 5
      %v2846 = vrot.slane %v2845, 4
      %v2847 = vrot.slane %v393, 5
      %v2848 = vsel %vm1357, %v2846, %v2847
      %v2849 = vrot.slane %v2847, 4
      %v2850 = vrot.slane %v394, 5
      %v2851 = vsel %vm1357, %v2849, %v2850
      %s2852 = scalar_lea.vmem %s313, 16
      %v2853 = vld [vmem:[%s2852] sm:$0x3]
      %v2854 = vunpack.c.l.b16 %v2848
      %v2855 = vunpack.c.l.b16 %v2851
      %v2856 = vpack.c.b16 %v2855, %v2854
      %v2858 = vsel %vm833, %v2856, 0
      %v2861 = vsel %vm882, %v2853, 0
      %2863 = vmatprep.subr.bf16.mxu0 0
      %2864 = vmatpush1.bf16.msra.mxu0 %v2861
      %2865 = vmatprep.subr.bf16.mxu0 0
      %2866 = vmatpush1.bf16.msra.mxu0 0
      %2867 = vmatprep.subr.bf16.mxu0 0
      %2868 = vmatpush1.bf16.msra.mxu0 0
      %2869 = vmatprep.subr.bf16.mxu0 0
      %2870 = vmatpush1.bf16.msra.mxu0 0
      %2871 = vmatprep.subr.bf16.mxu0 0
      %2872 = vmatpush1.bf16.msra.mxu0 0
      %2873 = vmatprep.subr.bf16.mxu0 0
      %2874 = vmatpush1.bf16.msra.mxu0 0
      %2875 = vmatprep.subr.bf16.mxu0 0
      %2876 = vmatpush1.bf16.msra.mxu0 0
      %2877 = vmatprep.subr.bf16.mxu0 0
      %2878 = vmatpush1.bf16.msra.mxu0 0
      %2879 = vmatprep.subr.bf16.mxu0 0
      %2880 = vmatpush1.bf16.msra.mxu0 0
      %2881 = vmatprep.subr.bf16.mxu0 0
      %2882 = vmatpush1.bf16.msra.mxu0 0
      %2883 = vmatprep.subr.bf16.mxu0 0
      %2884 = vmatpush1.bf16.msra.mxu0 0
      %2885 = vmatprep.subr.bf16.mxu0 0
      %2886 = vmatpush1.bf16.msra.mxu0 0
      %2887 = vmatprep.subr.bf16.mxu0 0
      %2888 = vmatpush1.bf16.msra.mxu0 0
      %2889 = vmatprep.subr.bf16.mxu0 0
      %2890 = vmatpush1.bf16.msra.mxu0 0
      %2891 = vmatprep.subr.bf16.mxu0 0
      %2892 = vmatpush1.bf16.msra.mxu0 0
      %2893 = vmatprep.subr.bf16.mxu0 0
      %2894 = vmatpush1.bf16.msra.mxu0 0
      %2895 = vmatprep.mubr.bf16.mxu0 0
      %2896 = vmatmul.mubr.bf16.gmra.mrb[0].mxu0 %v1527
      %v2897 = vpop.f32.mrb[0].mxu0
      %v2898 = vadd.f32 0.0, %v2897
      %v2899 = vpop.f32.mrb[0].mxu0
      %v2900 = vpop.f32.mrb[0].mxu0
      %v2901 = vadd.f32 0.0, %v2900
      %v2902 = vpop.f32.mrb[0].mxu0
      %2903 = vmatprep.mubr.bf16.mxu0 0
      %2904 = vmatmul.mubr.bf16.gmra.mrb[0].mxu0 %v1530
      %v2905 = vpop.f32.mrb[0].mxu0
      %v2906 = vadd.f32 0.0, %v2905
      %v2907 = vpop.f32.mrb[0].mxu0
      %v2908 = vpop.f32.mrb[0].mxu0
      %v2909 = vadd.f32 0.0, %v2908
      %v2910 = vpop.f32.mrb[0].mxu0
      %2911 = vmatprep.mubr.bf16.mxu0 0
      %2912 = vmatmul.mubr.bf16.gmra.mrb[0].mxu0 %v1533
      %v2913 = vpop.f32.mrb[0].mxu0
      %v2914 = vadd.f32 0.0, %v2913
      %v2915 = vpop.f32.mrb[0].mxu0
      %v2916 = vpop.f32.mrb[0].mxu0
      %v2917 = vadd.f32 0.0, %v2916
      %v2918 = vpop.f32.mrb[0].mxu0
      %2919 = vmatprep.mubr.bf16.mxu0 0
      %2920 = vmatmul.mubr.bf16.gmra.mrb[0].mxu0 %v1536
      %v2921 = vpop.f32.mrb[0].mxu0
      %v2922 = vadd.f32 0.0, %v2921
      %v2923 = vpop.f32.mrb[0].mxu0
      %v2924 = vpop.f32.mrb[0].mxu0
      %v2925 = vadd.f32 0.0, %v2924
      %v2926 = vpop.f32.mrb[0].mxu0
      %2927 = vmatprep.mubr.bf16.mxu0 0
      %2928 = vmatmul.mubr.bf16.gmra.mrb[0].mxu0 %v1539
      %v2929 = vpop.f32.mrb[0].mxu0
      %v2930 = vadd.f32 0.0, %v2929
      %v2931 = vpop.f32.mrb[0].mxu0
      %v2932 = vpop.f32.mrb[0].mxu0
      %v2933 = vadd.f32 0.0, %v2932
      %v2934 = vpop.f32.mrb[0].mxu0
      %2935 = vmatprep.mubr.bf16.mxu0 0
      %2936 = vmatmul.mubr.bf16.gmra.mrb[0].mxu0 %v1542
      %v2937 = vpop.f32.mrb[0].mxu0
      %v2938 = vadd.f32 0.0, %v2937
      %v2939 = vpop.f32.mrb[0].mxu0
      %v2940 = vpop.f32.mrb[0].mxu0
      %v2941 = vadd.f32 0.0, %v2940
      %v2942 = vpop.f32.mrb[0].mxu0
      %2943 = vmatprep.mubr.bf16.mxu0 0
      %2944 = vmatmul.mubr.bf16.gmra.mrb[0].mxu0 %v1545
      %v2945 = vpop.f32.mrb[0].mxu0
      %v2946 = vadd.f32 0.0, %v2945
      %v2947 = vpop.f32.mrb[0].mxu0
      %v2948 = vpop.f32.mrb[0].mxu0
      %v2949 = vadd.f32 0.0, %v2948
      %v2950 = vpop.f32.mrb[0].mxu0
      %2951 = vmatprep.mubr.bf16.mxu0 0
      %2952 = vmatmul.mubr.bf16.gmra.mrb[0].mxu0 %v1548
      %v2953 = vpop.f32.mrb[0].mxu0
      %v2954 = vadd.f32 0.0, %v2953
      %v2955 = vpop.f32.mrb[0].mxu0
      %v2956 = vpop.f32.mrb[0].mxu0
      %v2957 = vadd.f32 0.0, %v2956
      %v2958 = vpop.f32.mrb[0].mxu0
      %2959 = vmatprep.mubr.bf16.mxu0 0
      %2960 = vmatmul.mubr.bf16.gmra.mrb[0].mxu0 %v1551
      %v2961 = vpop.f32.mrb[0].mxu0
      %v2962 = vadd.f32 0.0, %v2961
      %v2963 = vpop.f32.mrb[0].mxu0
      %v2964 = vpop.f32.mrb[0].mxu0
      %v2965 = vadd.f32 0.0, %v2964
      %v2966 = vpop.f32.mrb[0].mxu0
      %2967 = vmatprep.mubr.bf16.mxu0 0
      %2968 = vmatmul.mubr.bf16.gmra.mrb[0].mxu0 %v1554
      %v2969 = vpop.f32.mrb[0].mxu0
      %v2970 = vadd.f32 0.0, %v2969
      %v2971 = vpop.f32.mrb[0].mxu0
      %v2972 = vpop.f32.mrb[0].mxu0
      %v2973 = vadd.f32 0.0, %v2972
      %v2974 = vpop.f32.mrb[0].mxu0
      %2975 = vmatprep.mubr.bf16.mxu0 0
      %2976 = vmatmul.mubr.bf16.gmra.mrb[0].mxu0 %v1557
      %v2977 = vpop.f32.mrb[0].mxu0
      %v2978 = vadd.f32 0.0, %v2977
      %v2979 = vpop.f32.mrb[0].mxu0
      %v2980 = vpop.f32.mrb[0].mxu0
      %v2981 = vadd.f32 0.0, %v2980
      %v2982 = vpop.f32.mrb[0].mxu0
      %2983 = vmatprep.mubr.bf16.mxu0 0
      %2984 = vmatmul.mubr.bf16.gmra.mrb[0].mxu0 %v1560
      %v2985 = vpop.f32.mrb[0].mxu0
      %v2986 = vadd.f32 0.0, %v2985
      %v2987 = vpop.f32.mrb[0].mxu0
      %v2988 = vpop.f32.mrb[0].mxu0
      %v2989 = vadd.f32 0.0, %v2988
      %v2990 = vpop.f32.mrb[0].mxu0
      %2991 = vmatprep.mubr.bf16.mxu0 0
      %2992 = vmatmul.mubr.bf16.gmra.mrb[0].mxu0 %v1563
      %v2993 = vpop.f32.mrb[0].mxu0
      %v2994 = vadd.f32 0.0, %v2993
      %v2995 = vpop.f32.mrb[0].mxu0
      %v2996 = vpop.f32.mrb[0].mxu0
      %v2997 = vadd.f32 0.0, %v2996
      %v2998 = vpop.f32.mrb[0].mxu0
      %2999 = vmatprep.mubr.bf16.mxu0 0
      %3000 = vmatmul.mubr.bf16.gmra.mrb[0].mxu0 %v1566
      %v3001 = vpop.f32.mrb[0].mxu0
      %v3002 = vadd.f32 0.0, %v3001
      %v3003 = vpop.f32.mrb[0].mxu0
      %v3004 = vpop.f32.mrb[0].mxu0
      %v3005 = vadd.f32 0.0, %v3004
      %v3006 = vpop.f32.mrb[0].mxu0
      %3007 = vmatprep.mubr.bf16.mxu0 0
      %3008 = vmatmul.mubr.bf16.gmra.mrb[0].mxu0 %v2212
      %v3009 = vpop.f32.mrb[0].mxu0
      %v3010 = vadd.f32 0.0, %v3009
      %v3011 = vpop.f32.mrb[0].mxu0
      %v3012 = vpop.f32.mrb[0].mxu0
      %v3013 = vadd.f32 0.0, %v3012
      %v3014 = vpop.f32.mrb[0].mxu0
      %3015 = vmatprep.mubr.bf16.mxu0 0
      %3016 = vmatmul.mubr.bf16.gmra.mrb[0].mxu0 %v2858
      %v3017 = vpop.f32.mrb[0].mxu0
      %v3018 = vadd.f32 0.0, %v3017
      %v3019 = vpop.f32.mrb[0].mxu0
      %v3020 = vpop.f32.mrb[0].mxu0
      %v3021 = vadd.f32 0.0, %v3020
      %v3022 = vpop.f32.mrb[0].mxu0
      %3023 = vdwg.mxu0
      %v3024 = vadd.f32 %v2812, %v2898
      %v3025 = vadd.f32 %v2813, %v2901
      %v3026 = vadd.f32 %v2814, %v2906
      %v3027 = vadd.f32 %v2815, %v2909
      %v3028 = vadd.f32 %v2816, %v2914
      %v3029 = vadd.f32 %v2817, %v2917
      %v3030 = vadd.f32 %v2818, %v2922
      %v3031 = vadd.f32 %v2819, %v2925
      %v3032 = vadd.f32 %v2820, %v2930
      %v3033 = vadd.f32 %v2821, %v2933
      %v3034 = vadd.f32 %v2822, %v2938
      %v3035 = vadd.f32 %v2823, %v2941
      %v3036 = vadd.f32 %v2824, %v2946
      %v3037 = vadd.f32 %v2825, %v2949
      %v3038 = vadd.f32 %v2826, %v2954
      %v3039 = vadd.f32 %v2827, %v2957
      %v3040 = vadd.f32 %v2828, %v2962
      %v3041 = vadd.f32 %v2829, %v2965
      %v3042 = vadd.f32 %v2830, %v2970
      %v3043 = vadd.f32 %v2831, %v2973
      %v3044 = vadd.f32 %v2832, %v2978
      %v3045 = vadd.f32 %v2833, %v2981
      %v3046 = vadd.f32 %v2834, %v2986
      %v3047 = vadd.f32 %v2835, %v2989
      %v3048 = vadd.f32 %v2836, %v2994
      %v3049 = vadd.f32 %v2837, %v2997
      %v3050 = vadd.f32 %v2838, %v3002
      %v3051 = vadd.f32 %v2839, %v3005
      %v3052 = vadd.f32 %v2840, %v3010
      %v3053 = vadd.f32 %v2841, %v3013
      %v3054 = vadd.f32 %v2842, %v3018
      %v3055 = vadd.f32 %v2843, %v3021
      %v3056 = vpack.c.bf16 %v3025, %v3024
      %v3057 = vpack.c.bf16 %v3027, %v3026
      %v3058 = vpack.c.bf16 %v3029, %v3028
      %v3059 = vpack.c.bf16 %v3031, %v3030
      %v3060 = vpack.c.bf16 %v3033, %v3032
      %v3061 = vpack.c.bf16 %v3035, %v3034
      %v3062 = vpack.c.bf16 %v3037, %v3036
      %v3063 = vpack.c.bf16 %v3039, %v3038
      %v3064 = vpack.c.bf16 %v3041, %v3040
      %v3065 = vpack.c.bf16 %v3043, %v3042
      %v3066 = vpack.c.bf16 %v3045, %v3044
      %v3067 = vpack.c.bf16 %v3047, %v3046
      %v3068 = vpack.c.bf16 %v3049, %v3048
      %v3069 = vpack.c.bf16 %v3051, %v3050
      %v3070 = vpack.c.bf16 %v3053, %v3052
      %v3071 = vpack.c.bf16 %v3055, %v3054
      %v3088 = vunpack.c.l.b16 %v3056
      %v3089 = vunpack.c.h.b16 %v3056
      %v3090 = vunpack.c.l.b16 %v3057
      %v3091 = vunpack.c.h.b16 %v3057
      %v3092 = vunpack.c.l.b16 %v3058
      %v3093 = vunpack.c.h.b16 %v3058
      %v3094 = vunpack.c.l.b16 %v3059
      %v3095 = vunpack.c.h.b16 %v3059
      %v3096 = vunpack.c.l.b16 %v3060
      %v3097 = vunpack.c.h.b16 %v3060
      %v3098 = vunpack.c.l.b16 %v3061
      %v3099 = vunpack.c.h.b16 %v3061
      %v3100 = vunpack.c.l.b16 %v3062
      %v3101 = vunpack.c.h.b16 %v3062
      %v3102 = vunpack.c.l.b16 %v3063
      %v3103 = vunpack.c.h.b16 %v3063
      %v3104 = vunpack.c.l.b16 %v3064
      %v3105 = vunpack.c.h.b16 %v3064
      %v3106 = vunpack.c.l.b16 %v3065
      %v3107 = vunpack.c.h.b16 %v3065
      %v3108 = vunpack.c.l.b16 %v3066
      %v3109 = vunpack.c.h.b16 %v3066
      %v3110 = vunpack.c.l.b16 %v3067
      %v3111 = vunpack.c.h.b16 %v3067
      %v3112 = vunpack.c.l.b16 %v3068
      %v3113 = vunpack.c.h.b16 %v3068
      %v3114 = vunpack.c.l.b16 %v3069
      %v3115 = vunpack.c.h.b16 %v3069
      %v3116 = vunpack.c.l.b16 %v3070
      %v3117 = vunpack.c.h.b16 %v3070
      %v3118 = vunpack.c.l.b16 %v3071
      %v3119 = vunpack.c.h.b16 %v3071
      %v3120 = vpack.c.b16 %v3088, %v3088
      %v3121 = vpack.c.b16 %v3089, %v3089
      %v3122 = vpack.c.b16 %v3090, %v3090
      %v3123 = vpack.c.b16 %v3091, %v3091
      %v3124 = vpack.c.b16 %v3092, %v3092
      %v3125 = vpack.c.b16 %v3093, %v3093
      %v3126 = vpack.c.b16 %v3094, %v3094
      %v3127 = vpack.c.b16 %v3095, %v3095
      %v3128 = vpack.c.b16 %v3096, %v3096
      %v3129 = vpack.c.b16 %v3097, %v3097
      %v3130 = vpack.c.b16 %v3098, %v3098
      %v3131 = vpack.c.b16 %v3099, %v3099
      %v3132 = vpack.c.b16 %v3100, %v3100
      %v3133 = vpack.c.b16 %v3101, %v3101
      %v3134 = vpack.c.b16 %v3102, %v3102
      %v3135 = vpack.c.b16 %v3103, %v3103
      %v3136 = vpack.c.b16 %v3104, %v3104
      %v3137 = vpack.c.b16 %v3105, %v3105
      %v3138 = vpack.c.b16 %v3106, %v3106
      %v3139 = vpack.c.b16 %v3107, %v3107
      %v3140 = vpack.c.b16 %v3108, %v3108
      %v3141 = vpack.c.b16 %v3109, %v3109
      %v3142 = vpack.c.b16 %v3110, %v3110
      %v3143 = vpack.c.b16 %v3111, %v3111
      %v3144 = vpack.c.b16 %v3112, %v3112
      %v3145 = vpack.c.b16 %v3113, %v3113
      %v3146 = vpack.c.b16 %v3114, %v3114
      %v3147 = vpack.c.b16 %v3115, %v3115
      %v3148 = vpack.c.b16 %v3116, %v3116
      %v3149 = vpack.c.b16 %v3117, %v3117
      %v3150 = vpack.c.b16 %v3118, %v3118
      %v3151 = vpack.c.b16 %v3119, %v3119
      %3184 = vst [vmem:[%s327] sm:$0xf] %v3120
      %3185 = vst [vmem:[%s327 + $0x4] sm:$0xf] %v3121
      %3186 = vst [vmem:[%s327 + $0x8] sm:$0xf] %v3122
      %3187 = vst [vmem:[%s327 + $0xc] sm:$0xf] %v3123
      %3188 = vst [vmem:[%s327 + $0x10] sm:$0xf] %v3124
      %3189 = vst [vmem:[%s327 + $0x14] sm:$0xf] %v3125
      %3190 = vst [vmem:[%s327 + $0x18] sm:$0xf] %v3126
      %3191 = vst [vmem:[%s327 + $0x1c] sm:$0xf] %v3127
      %3192 = vst [vmem:[%s327 + $0x20] sm:$0xf] %v3128
      %3193 = vst [vmem:[%s327 + $0x24] sm:$0xf] %v3129
      %3194 = vst [vmem:[%s327 + $0x28] sm:$0xf] %v3130
      %3195 = vst [vmem:[%s327 + $0x2c] sm:$0xf] %v3131
      %3196 = vst [vmem:[%s327 + $0x30] sm:$0xf] %v3132
      %3197 = vst [vmem:[%s327 + $0x34] sm:$0xf] %v3133
      %3198 = vst [vmem:[%s327 + $0x38] sm:$0xf] %v3134
      %3199 = vst [vmem:[%s327 + $0x3c] sm:$0xf] %v3135
      %3200 = vst [vmem:[%s327 + $0x40] sm:$0xf] %v3136
      %3201 = vst [vmem:[%s327 + $0x44] sm:$0xf] %v3137
      %3202 = vst [vmem:[%s327 + $0x48] sm:$0xf] %v3138
      %3203 = vst [vmem:[%s327 + $0x4c] sm:$0xf] %v3139
      %3204 = vst [vmem:[%s327 + $0x50] sm:$0xf] %v3140
      %3205 = vst [vmem:[%s327 + $0x54] sm:$0xf] %v3141
      %3206 = vst [vmem:[%s327 + $0x58] sm:$0xf] %v3142
      %3207 = vst [vmem:[%s327 + $0x5c] sm:$0xf] %v3143
      %3208 = vst [vmem:[%s327 + $0x60] sm:$0xf] %v3144
      %3209 = vst [vmem:[%s327 + $0x64] sm:$0xf] %v3145
      %3210 = vst [vmem:[%s327 + $0x68] sm:$0xf] %v3146
      %3211 = vst [vmem:[%s327 + $0x6c] sm:$0xf] %v3147
      %3212 = vst [vmem:[%s327 + $0x70] sm:$0xf] %v3148
      %3213 = vst [vmem:[%s327 + $0x74] sm:$0xf] %v3149
      %3214 = vst [vmem:[%s327 + $0x78] sm:$0xf] %v3150
      %3215 = vst [vmem:[%s327 + $0x7c] sm:$0xf] %v3151
      %v3216 = vld [vmem:[#allocation2] sm:$0x1]
      %v3217 = vadd.f32 %v3024, %v3025
      %v3218 = vadd.f32 %v3217, %v3026
      %v3219 = vadd.f32 %v3218, %v3027
      %v3220 = vadd.f32 %v3219, %v3028
      %v3221 = vadd.f32 %v3220, %v3029
      %v3222 = vadd.f32 %v3221, %v3030
      %v3223 = vadd.f32 %v3222, %v3031
      %v3224 = vadd.f32 %v3223, %v3032
      %v3225 = vadd.f32 %v3224, %v3033
      %v3226 = vadd.f32 %v3225, %v3034
      %v3227 = vadd.f32 %v3226, %v3035
      %v3228 = vadd.f32 %v3227, %v3036
      %v3229 = vadd.f32 %v3228, %v3037
      %v3230 = vadd.f32 %v3229, %v3038
      %v3231 = vadd.f32 %v3230, %v3039
      %v3232 = vadd.f32 %v3231, %v3040
      %v3233 = vadd.f32 %v3232, %v3041
      %v3234 = vadd.f32 %v3233, %v3042
      %v3235 = vadd.f32 %v3234, %v3043
      %v3236 = vadd.f32 %v3235, %v3044
      %v3237 = vadd.f32 %v3236, %v3045
      %v3238 = vadd.f32 %v3237, %v3046
      %v3239 = vadd.f32 %v3238, %v3047
      %v3240 = vadd.f32 %v3239, %v3048
      %v3241 = vadd.f32 %v3240, %v3049
      %v3242 = vadd.f32 %v3241, %v3050
      %v3243 = vadd.f32 %v3242, %v3051
      %v3244 = vadd.f32 %v3243, %v3052
      %v3245 = vadd.f32 %v3244, %v3053
      %v3246 = vadd.f32 %v3245, %v3054
      %v3247 = vadd.f32 %v3246, %v3055
      %v3248 = vrot.slane %v3247, 4
      %v3249 = vadd.f32 %v3247, %v3248
      %v3250 = vrot.slane %v3249, 2
      %v3251 = vadd.f32 %v3249, %v3250
      %v3252 = vrot.slane %v3251, 1
      %v3253 = vadd.f32 %v3251, %v3252
      %v3254 = vadd.f32 %v3216, %v3253
      %3255 = vst [vmem:[#allocation2] sm:$0x1] %v3254
      %v3256 = vld [vmem:[#allocation3] sm:$0x1]
      %v3257 = vmul.f32 %v3024, %v3024
      %v3258 = vmul.f32 %v3025, %v3025
      %v3259 = vmul.f32 %v3026, %v3026
      %v3260 = vmul.f32 %v3027, %v3027
      %v3261 = vmul.f32 %v3028, %v3028
      %v3262 = vmul.f32 %v3029, %v3029
      %v3263 = vmul.f32 %v3030, %v3030
      %v3264 = vmul.f32 %v3031, %v3031
      %v3265 = vmul.f32 %v3032, %v3032
      %v3266 = vmul.f32 %v3033, %v3033
      %v3267 = vmul.f32 %v3034, %v3034
      %v3268 = vmul.f32 %v3035, %v3035
      %v3269 = vmul.f32 %v3036, %v3036
      %v3270 = vmul.f32 %v3037, %v3037
      %v3271 = vmul.f32 %v3038, %v3038
      %v3272 = vmul.f32 %v3039, %v3039
      %v3273 = vmul.f32 %v3040, %v3040
      %v3274 = vmul.f32 %v3041, %v3041
      %v3275 = vmul.f32 %v3042, %v3042
      %v3276 = vmul.f32 %v3043, %v3043
      %v3277 = vmul.f32 %v3044, %v3044
      %v3278 = vmul.f32 %v3045, %v3045
      %v3279 = vmul.f32 %v3046, %v3046
      %v3280 = vmul.f32 %v3047, %v3047
      %v3281 = vmul.f32 %v3048, %v3048
      %v3282 = vmul.f32 %v3049, %v3049
      %v3283 = vmul.f32 %v3050, %v3050
      %v3284 = vmul.f32 %v3051, %v3051
      %v3285 = vmul.f32 %v3052, %v3052
      %v3286 = vmul.f32 %v3053, %v3053
      %v3287 = vmul.f32 %v3054, %v3054
      %v3288 = vmul.f32 %v3055, %v3055
      %v3289 = vadd.f32 %v3257, %v3258
      %v3290 = vadd.f32 %v3289, %v3259
      %v3291 = vadd.f32 %v3290, %v3260
      %v3292 = vadd.f32 %v3291, %v3261
      %v3293 = vadd.f32 %v3292, %v3262
      %v3294 = vadd.f32 %v3293, %v3263
      %v3295 = vadd.f32 %v3294, %v3264
      %v3296 = vadd.f32 %v3295, %v3265
      %v3297 = vadd.f32 %v3296, %v3266
      %v3298 = vadd.f32 %v3297, %v3267
      %v3299 = vadd.f32 %v3298, %v3268
      %v3300 = vadd.f32 %v3299, %v3269
      %v3301 = vadd.f32 %v3300, %v3270
      %v3302 = vadd.f32 %v3301, %v3271
      %v3303 = vadd.f32 %v3302, %v3272
      %v3304 = vadd.f32 %v3303, %v3273
      %v3305 = vadd.f32 %v3304, %v3274
      %v3306 = vadd.f32 %v3305, %v3275
      %v3307 = vadd.f32 %v3306, %v3276
      %v3308 = vadd.f32 %v3307, %v3277
      %v3309 = vadd.f32 %v3308, %v3278
      %v3310 = vadd.f32 %v3309, %v3279
      %v3311 = vadd.f32 %v3310, %v3280
      %v3312 = vadd.f32 %v3311, %v3281
      %v3313 = vadd.f32 %v3312, %v3282
      %v3314 = vadd.f32 %v3313, %v3283
      %v3315 = vadd.f32 %v3314, %v3284
      %v3316 = vadd.f32 %v3315, %v3285
      %v3317 = vadd.f32 %v3316, %v3286
      %v3318 = vadd.f32 %v3317, %v3287
      %v3319 = vadd.f32 %v3318, %v3288
      %v3320 = vrot.slane %v3319, 4
      %v3321 = vadd.f32 %v3319, %v3320
      %v3322 = vrot.slane %v3321, 2
      %v3323 = vadd.f32 %v3321, %v3322
      %v3324 = vrot.slane %v3323, 1
      %v3325 = vadd.f32 %v3323, %v3324
      %v3326 = vadd.f32 %v3256, %v3325
      %3327 = vst [vmem:[#allocation3] sm:$0x1] %v3326
      %p3328 = scmp.eq.s32.totalorder %s23, 1
      // Predicated region
      $region41: #{cnn_block_forward.2} parent=35 // pred_check
        %p3329 = pneg %p3328
      $region42: #{cnn_block_forward.2} parent=35 // pred_check_branch
        %3331 = sbr.rel (%p3329) target = $region44
      $region43: #{cnn_block_forward.2} parent=35 // pred_region
        %v3332 = vld [vmem:[#allocation2] sm:$0x1]
        %v3333 = vmul.f32 %v3332, 0.001953125
        %v3334 = vld [vmem:[#allocation3] sm:$0x1]
        %v3335 = vmul.f32 %v3334, 0.001953125
        %v3336 = vmul.f32 %v3333, %v3333
        %v3337 = vsub.f32 %v3335, %v3336
        %v3338 = vmax.f32 %v3337, 0.0
        %v3339 = vld [vmem:[%s316] sm:$0x1]
        %v3340 = vadd.f32 %v3338, 1e-05
        %v3341 = vrsqrt.pop %v3340
        %v3342 = vmul.f32 %v3339, %v3341
        %3343 = vst [vmem:[%s330] sm:$0x1] %v3342
        %v3344 = vld [vmem:[%s319] sm:$0x1]
        %v3345 = vmul.f32 %v3333, %v3342
        %v3346 = vsub.f32 %v3344, %v3345
        %3347 = vst [vmem:[%s333] sm:$0x1] %v3346
      $region44: #{cnn_block_forward.2} parent=35 // pred_fallthru
        _
      %p3348 = scmp.lt.s32.totalorder %s23, 1
      %s3349 = scalar_select %p3348, %s23, 1
      %p3350 = scmp.lt.s32.totalorder %s22, 0
      %s3351 = scalar_select %p3350, %s22, 0
      %s3352 = smul.addr %s3349, 32
      %s3353 = sadd.s32 %s3351, %s3352
      %s3354 = smul.addr %s3353, 4
      %s3355 = scalar_lea.vmem %s4, %s3354
      %p3356 = scmp.lt.s32.totalorder %s22, 0
      %s3357 = scalar_select %p3356, %s22, 0
      %s3358 = scalar_lea.vmem %s5, %s3357
      %p3359 = scmp.lt.s32.totalorder %s22, 0
      %s3360 = scalar_select %p3359, %s22, 0
      %s3361 = scalar_lea.vmem %s6, %s3360
      // Predicated region
      $region45: #{cnn_block_forward.2} parent=35 // pred_check
        %p3362 = pneg %p154
      $region46: #{cnn_block_forward.2} parent=35 // pred_check_branch
        %3364 = sbr.rel (%p3362) target = $region48
      $region47: #{cnn_block_forward.2} parent=35 // pred_region
        _
      $region48: #{cnn_block_forward.2} parent=35 // pred_fallthru
        _
      // Predicated region
      $region49: #{cnn_block_forward.2} parent=35 // pred_check
        %p3365 = pneg %p180
      $region50: #{cnn_block_forward.2} parent=35 // pred_check_branch
        %3367 = sbr.rel (%p3365) target = $region52
      $region51: #{cnn_block_forward.2} parent=35 // pred_region
        _
      $region52: #{cnn_block_forward.2} parent=35 // pred_fallthru
        _
      // Predicated region
      $region53: #{cnn_block_forward.2} parent=35 // pred_check
        %p3368 = pneg %p206
      $region54: #{cnn_block_forward.2} parent=35 // pred_check_branch
        %3370 = sbr.rel (%p3368) target = $region56
      $region55: #{cnn_block_forward.2} parent=35 // pred_region
        _
      $region56: #{cnn_block_forward.2} parent=35 // pred_fallthru
        _
      // Predicated region
      $region57: #{cnn_block_forward.2} parent=35 // pred_check
        %p3371 = pneg %p180
      $region58: #{cnn_block_forward.2} parent=35 // pred_check_branch
        %3373 = sbr.rel (%p3371) target = $region60
      $region59: #{cnn_block_forward.2} parent=35 // pred_region
        %p3374 = scmp.lt.s32.totalorder %s22, 0
        %s3375 = scalar_select %p3374, %s22, 0
        %s3376 = scalar_lea.vmem %s5, %s3375
      $region60: #{cnn_block_forward.2} parent=35 // pred_fallthru
        _
      // Predicated region
      $region61: #{cnn_block_forward.2} parent=35 // pred_check
        %p3377 = pneg %p206
      $region62: #{cnn_block_forward.2} parent=35 // pred_check_branch
        %3379 = sbr.rel (%p3377) target = $region64
      $region63: #{cnn_block_forward.2} parent=35 // pred_region
        %p3380 = scmp.lt.s32.totalorder %s22, 0
        %s3381 = scalar_select %p3380, %s22, 0
        %s3382 = scalar_lea.vmem %s6, %s3381
      $region64: #{cnn_block_forward.2} parent=35 // pred_fallthru
        _
    $region36: #{cnn_block_forward.2} parent=5 // pred_fallthru
      _
    %p3383 = scmp.le.s32.totalorder 2, %s13
    // Predicated region
    $region65: #{cnn_block_forward.2} parent=5 // pred_check
      %p3384 = pneg %p3383
    $region66: #{cnn_block_forward.2} parent=5 // pred_check_branch
      %3386 = sbr.rel (%p3384) target = $region68
    $region67: #{cnn_block_forward.2} parent=5 // pred_region
      %s3387 = ssub.s32 %s13, 2
      // Predicated region
      $region69: #{cnn_block_forward.2} parent=67 // pred_check
        %p3388 = pneg %p160
      $region70: #{cnn_block_forward.2} parent=67 // pred_check_branch
        %3390 = sbr.rel (%p3388) target = $region72
      $region71: #{cnn_block_forward.2} parent=67 // pred_region
        %p3391 = scmp.lt.s32.totalorder %s25, 1
        %s3392 = scalar_select %p3391, %s25, 1
        %p3393 = scmp.lt.s32.totalorder %s24, 0
        %s3394 = scalar_select %p3393, %s24, 0
        %s3395 = smul.addr %s3392, 32
        %s3396 = sadd.s32 %s3394, %s3395
        %s3397 = smul.addr %s3396, 4
        %s3398 = scalar_lea.vmem %s4, %s3397
      $region72: #{cnn_block_forward.2} parent=67 // pred_fallthru
        _
    $region68: #{cnn_block_forward.2} parent=5 // pred_fallthru
      _
  $region6: #{cnn_block_forward.2} parent=0 // loop_footer
    %s17 = sadd.s32 1, %s13
  $region7: #{cnn_block_forward.2} parent=0 // loop_footer_branch
    %12 = sbr.rel target = $region3
  $region8: #{cnn_block_forward.2} parent=0 // loop_exit
    _

</llo_original>
